<compile_context>
chip_gen: v6e
topology: v6e:2x2x1
jax: 0.10.0
libtpu: 0.0.40
codegen_flags: <defaults>
</compile_context>

<pallas_src>
import math
from functools import partial

import jax
import jax.numpy as jnp
from jax import lax
from jax.experimental import pallas as pl
from jax.experimental.pallas import tpu as pltpu

INF8 = 255
NEG_INF = -1e30          # finite "minus infinity" for masked attention entries


# ----------------------------- in-kernel helpers -----------------------------

def _layernorm(x, g, b, eps=1e-5):
    mu = jnp.mean(x, axis=-1, keepdims=True)
    xc = x - mu
    var = jnp.mean(xc * xc, axis=-1, keepdims=True)
    return xc * lax.rsqrt(var + eps) * g + b


def _erf(x):
    # Abramowitz & Stegun 7.1.26 rational approximation (|err| < 1.5e-7);
    # matches torch's exact erf-based nn.GELU() to float32 precision.
    a1, a2, a3, a4, a5 = 0.254829592, -0.284496736, 1.421413741, -1.453152027, 1.061405429
    p = 0.3275911
    s = jnp.where(x >= 0.0, 1.0, -1.0)
    ax = jnp.abs(x)
    t = 1.0 / (1.0 + p * ax)
    poly = ((((a5 * t + a4) * t + a3) * t + a2) * t + a1) * t
    return s * (1.0 - poly * jnp.exp(-ax * ax))


def _gelu(x):
    return 0.5 * x * (1.0 + _erf(x * (1.0 / math.sqrt(2.0))))


# ------------------------------ fused GT kernel -------------------------------

def _gt_fused_kernel(num_heads, num_nodes, var_vfeat, block_graphs,
                     x_ref, ids_ref, codes_ref, node_w_ref, node_b_ref,
                     vfeat_ref, emb_ref, vecs_ref, w_attn_ref,
                     w1_ref, b1_ref, w2_ref, fin_ref, out_w_ref, out_b_ref,
                     o_ref, act_s):
    """One (graph block b, layer l) grid step; act_s is the resident activation."""
    l = pl.program_id(1)
    H = act_s.shape[-1]
    nh = num_heads
    dk = H // nh
    Bt = block_graphs
    N = x_ref.shape[1]
    M = Bt * N
    scale = dk ** -0.5

    # ---- layer 0: node encoder + virtual-node feature add (in-kernel) ----
    @pl.when(l == 0)
    def _():
        xin = x_ref[...].reshape(M, x_ref.shape[2])
        feat = (jnp.dot(xin, node_w_ref[...], preferred_element_type=jnp.float32)
                + node_b_ref[...])
        if var_vfeat:
            ids = ids_ref[...]                                 # (M, 1) int32
            for g in range(vfeat_ref.shape[0]):                # static, tiny
                feat = feat + jnp.where(ids == num_nodes + g,
                                        vfeat_ref[g:g + 1, :], 0.0)
        act_s[...] = feat

    x = act_s[...]                                             # (M, H) f32, resident

    vecs = vecs_ref[0]                                         # (9, H) packed per-layer vecs
    ln1_g, ln1_b = vecs[0:1], vecs[1:2]
    bq, bk, bv, bo = vecs[2:3], vecs[3:4], vecs[4:5], vecs[5:6]
    ln2_g, ln2_b, b2 = vecs[6:7], vecs[7:8], vecs[8:9]

    # structural-bias one-hot, built from integer codes streamed once per block
    onehot = (codes_ref[...] ==
              lax.broadcasted_iota(jnp.int32, (Bt, N, N, 256), 3))   # bool

    # ---- self-attention block (pre-LN, residual) ----
    y = _layernorm(x, ln1_g, ln1_b).astype(jnp.bfloat16)
    q = (jnp.dot(y, w_attn_ref[0, 0], preferred_element_type=jnp.float32) + bq) * scale
    k = jnp.dot(y, w_attn_ref[0, 1], preferred_element_type=jnp.float32) + bk
    v = jnp.dot(y, w_attn_ref[0, 2], preferred_element_type=jnp.float32) + bv

    emb_l = emb_ref[0]                                         # (nh, 256), NEG_INF at col INF8
    ctx = []
    for h in range(nh):                                        # static head loop (nh small)
        sl = slice(h * dk, (h + 1) * dk)
        q_h = q[:, sl].reshape(Bt, N, dk)
        k_h = k[:, sl].reshape(Bt, N, dk)
        v_h = v[:, sl].reshape(Bt, N, dk)
        # graph-batched q @ k^T for this head
        s = jnp.einsum('bqd,bkd->bqk', q_h, k_h,
                       preferred_element_type=jnp.float32)     # (Bt, N, N) f32
        # per-head bias lookup: one-hot select + lane reduction (mask baked in)
        bias_h = jnp.sum(jnp.where(onehot,
                                   emb_l[h:h + 1, :].reshape(1, 1, 1, 256),
                                   0.0), axis=-1)              # (Bt, N, N)
        s = s + bias_h
        s = s - jnp.max(s, axis=-1, keepdims=True)
        p = jnp.exp(s)
        p = p * pl.reciprocal(jnp.sum(p, axis=-1, keepdims=True), approx=True)
        ctx.append(jnp.einsum('bqk,bkd->bqd', p, v_h,
                              preferred_element_type=jnp.float32))
    # contexts stay in registers; single full-width output projection
    ctx = jnp.concatenate(ctx, axis=-1).reshape(M, H).astype(jnp.bfloat16)
    x = x + jnp.dot(ctx, w_attn_ref[0, 3], preferred_element_type=jnp.float32) + bo

    # ---- feed-forward block (pre-LN, residual) ----
    y = _layernorm(x, ln2_g, ln2_b).astype(jnp.bfloat16)
    hdn = _gelu(jnp.dot(y, w1_ref[0], preferred_element_type=jnp.float32) + b1_ref[0])
    x = x + jnp.dot(hdn.astype(jnp.bfloat16), w2_ref[0],
                    preferred_element_type=jnp.float32) + b2
    act_s[...] = x

    # ---- last layer: final LayerNorm + downstream projection on node 0 ----
    @pl.when(l == pl.num_programs(1) - 1)
    def _():
        x0 = x.reshape(Bt, N, H)[:, 0:1, :].reshape(Bt, H)
        y0 = _layernorm(x0, fin_ref[0:1], fin_ref[1:2])
        o_ref[...] = (jnp.dot(y0, out_w_ref[...],
                              preferred_element_type=jnp.float32)
                      + out_b_ref[...])[:, None, :]


# --------------------------------- wrapper ------------------------------------

def gt_forward(params, x, attn_codes, ids, *, num_heads, num_nodes, var_vfeat,
               block_graphs=None):
    B, N, input_dim = x.shape
    H = params['node_w'].shape[1]
    out_dim = params['out_w'].shape[1]
    layers = params['layers']
    n_layers = len(layers)
    nh = num_heads
    Fd = layers[0]['w1'].shape[1]

    if block_graphs is None:
        block_graphs = min(B, max(1, 128 // N))   # fill the MXU M dimension
    assert B % block_graphs == 0
    Bt = block_graphs
    n_blocks = B // Bt

    # small integer side inputs for the in-kernel gathers
    codes = jnp.clip(attn_codes.astype(jnp.int32), 0, INF8)          # (B, N, N, 1)
    ids2d = ids.astype(jnp.int32).reshape(B * N, 1)                  # (B*N, 1)

    # ---- stacked per-layer parameters (bf16 for the large streamed weights) ----
    vecs = jnp.stack([jnp.stack([L['ln1_g'], L['ln1_b'], L['bq'], L['bk'],
                                 L['bv'], L['bo'], L['ln2_g'], L['ln2_b'],
                                 L['b2']]) for L in layers])          # (L,9,H) f32
    w_attn = jnp.stack([jnp.stack([L['wq'], L['wk'], L['wv'], L['wo']])
                        for L in layers]).astype(jnp.bfloat16)        # (L,4,H,H)
    w1s = jnp.stack([L['w1'] for L in layers]).astype(jnp.bfloat16)   # (L,H,F)
    b1s = jnp.stack([L['b1'] for L in layers])[:, None, :]            # (L,1,F) f32
    w2s = jnp.stack([L['w2'] for L in layers]).astype(jnp.bfloat16)   # (L,F,H)

    # per-layer bias tables (L, nh, 256); masked code INF8 baked to finite NEG_INF
    # (torch sets those entries to -inf after the embedding lookup).
    emb = jnp.stack([L['bias_emb'].T for L in layers])                # (L,nh,256) f32
    emb = emb.at[:, :, INF8].set(NEG_INF)

    node_b = params['node_b'][None, :]                                # (1,H)
    if var_vfeat:
        vfeat = params['virtual_feat']                                # (G,H)
    else:
        vfeat = jnp.zeros((1, H), jnp.float32)
    fin = jnp.stack([params['final_g'], params['final_b']])           # (2,H)
    out_w = params['out_w']                                           # (H,out)
    out_b = params['out_b'][None, :]                                  # (1,out)

    out = pl.pallas_call(
        partial(_gt_fused_kernel, nh, num_nodes, var_vfeat, Bt),
        out_shape=jax.ShapeDtypeStruct((B, 1, out_dim), jnp.float32),
        grid=(n_blocks, n_layers),
        in_specs=[
            pl.BlockSpec((Bt, N, input_dim), lambda b, l: (b, 0, 0)),      # x
            pl.BlockSpec((Bt * N, 1), lambda b, l: (b, 0)),                # ids
            pl.BlockSpec((Bt, N, N, 1), lambda b, l: (b, 0, 0, 0)),        # codes (int)
            pl.BlockSpec((input_dim, H), lambda b, l: (0, 0)),             # node_w
            pl.BlockSpec((1, H), lambda b, l: (0, 0)),                     # node_b
            pl.BlockSpec((vfeat.shape[0], H), lambda b, l: (0, 0)),        # virtual_feat
            pl.BlockSpec((1, nh, 256), lambda b, l: (l, 0, 0)),            # bias tables
            pl.BlockSpec((1, 9, H), lambda b, l: (l, 0, 0)),               # per-layer vecs
            pl.BlockSpec((1, 4, H, H), lambda b, l: (l, 0, 0, 0)),         # wq/wk/wv/wo (bf16)
            pl.BlockSpec((1, H, Fd), lambda b, l: (l, 0, 0)),              # w1 (bf16)
            pl.BlockSpec((1, 1, Fd), lambda b, l: (l, 0, 0)),              # b1
            pl.BlockSpec((1, Fd, H), lambda b, l: (l, 0, 0)),              # w2 (bf16)
            pl.BlockSpec((2, H), lambda b, l: (0, 0)),                     # final LN
            pl.BlockSpec((H, out_dim), lambda b, l: (0, 0)),               # out_w
            pl.BlockSpec((1, out_dim), lambda b, l: (0, 0)),               # out_b
        ],
        out_specs=pl.BlockSpec((Bt, 1, out_dim), lambda b, l: (b, 0, 0)),
        scratch_shapes=[pltpu.VMEM((Bt * N, H), jnp.float32)],   # resident activation
        compiler_params=pltpu.CompilerParams(
            dimension_semantics=("parallel", "arbitrary"),
            vmem_limit_bytes=64 * 1024 * 1024),
    )(x, ids2d, codes, params['node_w'], node_b, vfeat, emb, vecs,
      w_attn, w1s, b1s, w2s, fin, out_w, out_b)
    return out[:, 0, :]


# ----------------------------- parameter creation ------------------------------

def init_gt_params(key, *, n_layers, num_heads, input_dim, hidden_dim, ffn_dim,
                   output_dim, num_global_node, var_vfeat):
    std = 0.02 / math.sqrt(n_layers)
    keys = iter(jax.random.split(key, 8 + 8 * n_layers))

    def lin(in_d, out_d):
        w = jax.random.normal(next(keys), (in_d, out_d), jnp.float32) * std
        return w, jnp.zeros((out_d,), jnp.float32)

    params = {}
    params['node_w'], params['node_b'] = lin(input_dim, hidden_dim)
    if var_vfeat:
        params['virtual_feat'] = jax.random.normal(
            next(keys), (num_global_node, hidden_dim), jnp.float32)

    layers = []
    for _ in range(n_layers):
        L = {}
        L['ln1_g'] = jnp.ones((hidden_dim,), jnp.float32)
        L['ln1_b'] = jnp.zeros((hidden_dim,), jnp.float32)
        L['wq'], L['bq'] = lin(hidden_dim, hidden_dim)
        L['wk'], L['bk'] = lin(hidden_dim, hidden_dim)
        L['wv'], L['bv'] = lin(hidden_dim, hidden_dim)
        L['wo'], L['bo'] = lin(hidden_dim, hidden_dim)
        emb = jax.random.normal(next(keys), (INF8 + 1, num_heads),
                                jnp.float32) * 0.02
        L['bias_emb'] = emb.at[INF8].set(0.0)        # padding_idx row
        L['ln2_g'] = jnp.ones((hidden_dim,), jnp.float32)
        L['ln2_b'] = jnp.zeros((hidden_dim,), jnp.float32)
        L['w1'], L['b1'] = lin(hidden_dim, ffn_dim)
        L['w2'], L['b2'] = lin(ffn_dim, hidden_dim)
        layers.append(L)
    params['layers'] = layers

    params['final_g'] = jnp.ones((hidden_dim,), jnp.float32)
    params['final_b'] = jnp.zeros((hidden_dim,), jnp.float32)
    params['out_w'], params['out_b'] = lin(hidden_dim, output_dim)
    return params


# ------------------------------------ main -------------------------------------

if __name__ == "__main__":
    # small shapes consistent with the module
    B, N = 4, 8
    input_dim, hidden_dim, ffn_dim, output_dim = 16, 32, 64, 8
    n_layers, num_heads = 2, 4
    num_global_node, num_nodes = 2, 6
    var_vfeat = True

    key = jax.random.PRNGKey(0)
    kp, kx, kb = jax.random.split(key, 3)

    params = init_gt_params(kp, n_layers=n_layers, num_heads=num_heads,
                            input_dim=input_dim, hidden_dim=hidden_dim,
                            ffn_dim=ffn_dim, output_dim=output_dim,
                            num_global_node=num_global_node,
                            var_vfeat=var_vfeat)

    # batched_data.x
    x = jax.random.normal(kx, (B, N, input_dim), jnp.float32)
    # batched_data.attn_bias: integer structural codes in [0, INF8], INF8 = masked
    codes = jax.random.randint(kb, (B, N, N, 1), 0, 8, dtype=jnp.int32)
    diag = jnp.arange(N)
    codes = codes.at[:, diag, diag, 0].set(0)           # self-distance 0
    codes = codes.at[:, 0, N - 1, 0].set(INF8)          # exercise the mask
    # batched_data.ids: nodes with id >= num_nodes get a virtual feature added
    ids = jnp.tile(jnp.arange(N, dtype=jnp.int32), (B, 1))

    fwd = jax.jit(partial(gt_forward, num_heads=num_heads,
                          num_nodes=num_nodes, var_vfeat=var_vfeat,
                          block_graphs=2))
    out = fwd(params, x, codes, ids)
    jax.block_until_ready(out)
    assert out.shape == (B, output_dim)
    assert bool(jnp.all(jnp.isfinite(out)))
    print("KERNEL_OK")
</pallas_src>

<mosaic_0001>
module attributes {stable_mosaic.version = 11 : i64} {
  func.func @_gt_fused_kernel(%arg0: i32, %arg1: i32, %arg2: memref<2x8x16xf32, #tpu.memory_space<vmem>>, %arg3: memref<16x1xi32, #tpu.memory_space<vmem>>, %arg4: memref<2x8x8x1xi32, #tpu.memory_space<vmem>>, %arg5: memref<16x32xf32, #tpu.memory_space<vmem>>, %arg6: memref<1x32xf32, #tpu.memory_space<vmem>>, %arg7: memref<2x32xf32, #tpu.memory_space<vmem>>, %arg8: memref<1x4x256xf32, #tpu.memory_space<vmem>>, %arg9: memref<1x9x32xf32, #tpu.memory_space<vmem>>, %arg10: memref<1x4x32x32xbf16, #tpu.memory_space<vmem>>, %arg11: memref<1x32x64xbf16, #tpu.memory_space<vmem>>, %arg12: memref<1x1x64xf32, #tpu.memory_space<vmem>>, %arg13: memref<1x64x32xbf16, #tpu.memory_space<vmem>>, %arg14: memref<2x32xf32, #tpu.memory_space<vmem>>, %arg15: memref<32x8xf32, #tpu.memory_space<vmem>>, %arg16: memref<1x8xf32, #tpu.memory_space<vmem>>, %arg17: memref<2x1x8xf32, #tpu.memory_space<vmem>>, %arg18: memref<16x32xf32, #tpu.memory_space<vmem>>) attributes {dimension_semantics = [#tpu.dimension_semantics<parallel>, #tpu.dimension_semantics<arbitrary>], iteration_bounds = array<i64: 2, 2>, scalar_prefetch = 0 : i64, scratch_operands = 1 : i64, tpu.core_type = #tpu.core_type<tc>, window_params = [{transform_indices = @transform_0, window_bounds = array<i64: 2, 8, 16>}, {transform_indices = @transform_1, window_bounds = array<i64: 16, 1>}, {transform_indices = @transform_2, window_bounds = array<i64: 2, 8, 8, 1>}, {pipeline_mode = #tpu.pipeline_mode<synchronous>, transform_indices = @transform_3, window_bounds = array<i64: 16, 32>}, {pipeline_mode = #tpu.pipeline_mode<synchronous>, transform_indices = @transform_4, window_bounds = array<i64: 1, 32>}, {pipeline_mode = #tpu.pipeline_mode<synchronous>, transform_indices = @transform_5, window_bounds = array<i64: 2, 32>}, {transform_indices = @transform_6, window_bounds = array<i64: 1, 4, 256>}, {transform_indices = @transform_7, window_bounds = array<i64: 1, 9, 32>}, {transform_indices = @transform_8, window_bounds = array<i64: 1, 4, 32, 32>}, {transform_indices = @transform_9, window_bounds = array<i64: 1, 32, 64>}, {transform_indices = @transform_10, window_bounds = array<i64: 1, 1, 64>}, {transform_indices = @transform_11, window_bounds = array<i64: 1, 64, 32>}, {pipeline_mode = #tpu.pipeline_mode<synchronous>, transform_indices = @transform_12, window_bounds = array<i64: 2, 32>}, {pipeline_mode = #tpu.pipeline_mode<synchronous>, transform_indices = @transform_13, window_bounds = array<i64: 32, 8>}, {pipeline_mode = #tpu.pipeline_mode<synchronous>, transform_indices = @transform_14, window_bounds = array<i64: 1, 8>}, {transform_indices = @transform_15, window_bounds = array<i64: 2, 1, 8>}]} {
    %c0_i32 = arith.constant 0 : i32
    %0 = arith.cmpi eq, %arg1, %c0_i32 : i32
    %1 = arith.extui %0 : i1 to i32
    %c0_i32_0 = arith.constant 0 : i32
    %2 = arith.cmpi ne, %1, %c0_i32_0 : i32
    scf.if %2 {
      %c0_93 = arith.constant 0 : index
      %c0_94 = arith.constant 0 : index
      %c0_95 = arith.constant 0 : index
      %252 = vector.load %arg2[%c0_93, %c0_94, %c0_95] : memref<2x8x16xf32, #tpu.memory_space<vmem>>, vector<2x8x16xf32>
      %253 = vector.shape_cast %252 : vector<2x8x16xf32> to vector<16x16xf32>
      %c0_96 = arith.constant 0 : index
      %c0_97 = arith.constant 0 : index
      %254 = vector.load %arg5[%c0_96, %c0_97] : memref<16x32xf32, #tpu.memory_space<vmem>>, vector<16x32xf32>
      %cst_98 = arith.constant dense<0.000000e+00> : vector<16x32xf32>
      %255 = tpu.matmul %253, %254, %cst_98 {dimension_numbers = #tpu.dot_dimension_numbers<[1], [0], [0], [1], [0, 0, 1, 1], [], []>} : vector<16x16xf32>, vector<16x32xf32>, vector<16x32xf32> -> vector<16x32xf32>
      %c0_99 = arith.constant 0 : index
      %c0_100 = arith.constant 0 : index
      %256 = vector.load %arg6[%c0_99, %c0_100] : memref<1x32xf32, #tpu.memory_space<vmem>>, vector<1x32xf32>
      %257 = vector.broadcast %256 : vector<1x32xf32> to vector<16x32xf32>
      %258 = arith.addf %255, %257 : vector<16x32xf32>
      %c0_101 = arith.constant 0 : index
      %c0_102 = arith.constant 0 : index
      %259 = vector.load %arg3[%c0_101, %c0_102] : memref<16x1xi32, #tpu.memory_space<vmem>>, vector<16x1xi32>
      %c6_i32 = arith.constant 6 : i32
      %260 = vector.broadcast %c6_i32 : i32 to vector<16x1xi32>
      %261 = arith.cmpi eq, %259, %260 : vector<16x1xi32>
      %c0_103 = arith.constant 0 : index
      %c0_104 = arith.constant 0 : index
      %262 = vector.load %arg7[%c0_103, %c0_104] : memref<2x32xf32, #tpu.memory_space<vmem>>, vector<1x32xf32>
      %cst_105 = arith.constant 0.000000e+00 : f32
      %263 = vector.shape_cast %261 : vector<16x1xi1> to vector<16x1xi1>
      %264 = vector.broadcast %263 : vector<16x1xi1> to vector<16x32xi1>
      %265 = vector.shape_cast %262 : vector<1x32xf32> to vector<1x32xf32>
      %266 = vector.broadcast %265 : vector<1x32xf32> to vector<16x32xf32>
      %267 = vector.broadcast %cst_105 : f32 to vector<16x32xf32>
      %268 = arith.select %264, %266, %267 : vector<16x32xi1>, vector<16x32xf32>
      %269 = arith.addf %258, %268 : vector<16x32xf32>
      %c7_i32 = arith.constant 7 : i32
      %270 = vector.broadcast %c7_i32 : i32 to vector<16x1xi32>
      %271 = arith.cmpi eq, %259, %270 : vector<16x1xi32>
      %c1_106 = arith.constant 1 : index
      %c0_107 = arith.constant 0 : index
      %272 = vector.load %arg7[%c1_106, %c0_107] : memref<2x32xf32, #tpu.memory_space<vmem>>, vector<1x32xf32>
      %cst_108 = arith.constant 0.000000e+00 : f32
      %273 = vector.shape_cast %271 : vector<16x1xi1> to vector<16x1xi1>
      %274 = vector.broadcast %273 : vector<16x1xi1> to vector<16x32xi1>
      %275 = vector.shape_cast %272 : vector<1x32xf32> to vector<1x32xf32>
      %276 = vector.broadcast %275 : vector<1x32xf32> to vector<16x32xf32>
      %277 = vector.broadcast %cst_108 : f32 to vector<16x32xf32>
      %278 = arith.select %274, %276, %277 : vector<16x32xi1>, vector<16x32xf32>
      %279 = arith.addf %269, %278 : vector<16x32xf32>
      %c0_109 = arith.constant 0 : index
      %c0_110 = arith.constant 0 : index
      %280 = vector.load %arg18[%c0_109, %c0_110] : memref<16x32xf32, #tpu.memory_space<vmem>>, vector<16x32xf32>
      tpu.vector_store %arg18[%c0_109, %c0_110], %279 {strides = array<i32>} : memref<16x32xf32, #tpu.memory_space<vmem>>, vector<16x32xf32>,
    } else {
    }
    %c0 = arith.constant 0 : index
    %c0_1 = arith.constant 0 : index
    %3 = vector.load %arg18[%c0, %c0_1] : memref<16x32xf32, #tpu.memory_space<vmem>>, vector<16x32xf32>
    %c0_2 = arith.constant 0 : index
    %c0_3 = arith.constant 0 : index
    %c0_4 = arith.constant 0 : index
    %4 = vector.load %arg9[%c0_2, %c0_3, %c0_4] : memref<1x9x32xf32, #tpu.memory_space<vmem>>, vector<1x9x32xf32>
    %5 = vector.shape_cast %4 : vector<1x9x32xf32> to vector<9x32xf32>
    %6 = vector.extract_strided_slice %5 {offsets = [0, 0], sizes = [1, 32], strides = [1, 1]} : vector<9x32xf32> to vector<1x32xf32>
    %7 = vector.extract_strided_slice %5 {offsets = [1, 0], sizes = [1, 32], strides = [1, 1]} : vector<9x32xf32> to vector<1x32xf32>
    %8 = vector.extract_strided_slice %5 {offsets = [2, 0], sizes = [1, 32], strides = [1, 1]} : vector<9x32xf32> to vector<1x32xf32>
    %9 = vector.extract_strided_slice %5 {offsets = [3, 0], sizes = [1, 32], strides = [1, 1]} : vector<9x32xf32> to vector<1x32xf32>
    %10 = vector.extract_strided_slice %5 {offsets = [4, 0], sizes = [1, 32], strides = [1, 1]} : vector<9x32xf32> to vector<1x32xf32>
    %11 = vector.extract_strided_slice %5 {offsets = [5, 0], sizes = [1, 32], strides = [1, 1]} : vector<9x32xf32> to vector<1x32xf32>
    %12 = vector.extract_strided_slice %5 {offsets = [6, 0], sizes = [1, 32], strides = [1, 1]} : vector<9x32xf32> to vector<1x32xf32>
    %13 = vector.extract_strided_slice %5 {offsets = [7, 0], sizes = [1, 32], strides = [1, 1]} : vector<9x32xf32> to vector<1x32xf32>
    %14 = vector.extract_strided_slice %5 {offsets = [8, 0], sizes = [1, 32], strides = [1, 1]} : vector<9x32xf32> to vector<1x32xf32>
    %c0_5 = arith.constant 0 : index
    %c0_6 = arith.constant 0 : index
    %c0_7 = arith.constant 0 : index
    %c0_8 = arith.constant 0 : index
    %15 = vector.load %arg4[%c0_5, %c0_6, %c0_7, %c0_8] : memref<2x8x8x1xi32, #tpu.memory_space<vmem>>, vector<2x8x8x1xi32>
    %16 = tpu.iota {dimensions = array<i32: 3>} : vector<2x8x8x256xi32>
    %17 = vector.broadcast %15 : vector<2x8x8x1xi32> to vector<2x8x8x256xi32>
    %18 = arith.cmpi eq, %17, %16 : vector<2x8x8x256xi32>
    %cst = arith.constant dense<0.000000e+00> : vector<16xf32>
    %19 = vector.multi_reduction <add>, %3, %cst [1] : vector<16x32xf32> to vector<16xf32>
    %20 = vector.shape_cast %19 : vector<16xf32> to vector<16x1xf32>
    %cst_9 = arith.constant 3.200000e+01 : f32
    %21 = vector.broadcast %cst_9 : f32 to vector<16x1xf32>
    %22 = arith.divf %20, %21 : vector<16x1xf32>
    %23 = vector.broadcast %22 : vector<16x1xf32> to vector<16x32xf32>
    %24 = arith.subf %3, %23 : vector<16x32xf32>
    %25 = arith.mulf %24, %24 : vector<16x32xf32>
    %cst_10 = arith.constant dense<0.000000e+00> : vector<16xf32>
    %26 = vector.multi_reduction <add>, %25, %cst_10 [1] : vector<16x32xf32> to vector<16xf32>
    %27 = vector.shape_cast %26 : vector<16xf32> to vector<16x1xf32>
    %cst_11 = arith.constant 3.200000e+01 : f32
    %28 = vector.broadcast %cst_11 : f32 to vector<16x1xf32>
    %29 = arith.divf %27, %28 : vector<16x1xf32>
    %cst_12 = arith.constant 9.99999974E-6 : f32
    %30 = vector.broadcast %cst_12 : f32 to vector<16x1xf32>
    %31 = arith.addf %29, %30 : vector<16x1xf32>
    %32 = math.rsqrt %31 : vector<16x1xf32>
    %33 = vector.broadcast %32 : vector<16x1xf32> to vector<16x32xf32>
    %34 = arith.mulf %24, %33 : vector<16x32xf32>
    %35 = vector.broadcast %6 : vector<1x32xf32> to vector<16x32xf32>
    %36 = arith.mulf %34, %35 : vector<16x32xf32>
    %37 = vector.broadcast %7 : vector<1x32xf32> to vector<16x32xf32>
    %38 = arith.addf %36, %37 : vector<16x32xf32>
    %39 = arith.truncf %38 : vector<16x32xf32> to vector<16x32xbf16>
    %c0_13 = arith.constant 0 : index
    %c0_14 = arith.constant 0 : index
    %c0_15 = arith.constant 0 : index
    %c0_16 = arith.constant 0 : index
    %40 = vector.load %arg10[%c0_13, %c0_14, %c0_15, %c0_16] : memref<1x4x32x32xbf16, #tpu.memory_space<vmem>>, vector<1x1x32x32xbf16>
    %41 = vector.shape_cast %40 : vector<1x1x32x32xbf16> to vector<32x32xbf16>
    %cst_17 = arith.constant dense<0.000000e+00> : vector<16x32xf32>
    %42 = tpu.matmul %39, %41, %cst_17 {dimension_numbers = #tpu.dot_dimension_numbers<[1], [0], [0], [1], [0, 0, 1, 1], [], []>} : vector<16x32xbf16>, vector<32x32xbf16>, vector<16x32xf32> -> vector<16x32xf32>
    %43 = vector.broadcast %8 : vector<1x32xf32> to vector<16x32xf32>
    %44 = arith.addf %42, %43 : vector<16x32xf32>
    %cst_18 = arith.constant 0.353553385 : f32
    %45 = vector.broadcast %cst_18 : f32 to vector<16x32xf32>
    %46 = arith.mulf %44, %45 : vector<16x32xf32>
    %c0_19 = arith.constant 0 : index
    %c1 = arith.constant 1 : index
    %c0_20 = arith.constant 0 : index
    %c0_21 = arith.constant 0 : index
    %47 = vector.load %arg10[%c0_19, %c1, %c0_20, %c0_21] : memref<1x4x32x32xbf16, #tpu.memory_space<vmem>>, vector<1x1x32x32xbf16>
    %48 = vector.shape_cast %47 : vector<1x1x32x32xbf16> to vector<32x32xbf16>
    %cst_22 = arith.constant dense<0.000000e+00> : vector<16x32xf32>
    %49 = tpu.matmul %39, %48, %cst_22 {dimension_numbers = #tpu.dot_dimension_numbers<[1], [0], [0], [1], [0, 0, 1, 1], [], []>} : vector<16x32xbf16>, vector<32x32xbf16>, vector<16x32xf32> -> vector<16x32xf32>
    %50 = vector.broadcast %9 : vector<1x32xf32> to vector<16x32xf32>
    %51 = arith.addf %49, %50 : vector<16x32xf32>
    %c0_23 = arith.constant 0 : index
    %c2 = arith.constant 2 : index
    %c0_24 = arith.constant 0 : index
    %c0_25 = arith.constant 0 : index
    %52 = vector.load %arg10[%c0_23, %c2, %c0_24, %c0_25] : memref<1x4x32x32xbf16, #tpu.memory_space<vmem>>, vector<1x1x32x32xbf16>
    %53 = vector.shape_cast %52 : vector<1x1x32x32xbf16> to vector<32x32xbf16>
    %cst_26 = arith.constant dense<0.000000e+00> : vector<16x32xf32>
    %54 = tpu.matmul %39, %53, %cst_26 {dimension_numbers = #tpu.dot_dimension_numbers<[1], [0], [0], [1], [0, 0, 1, 1], [], []>} : vector<16x32xbf16>, vector<32x32xbf16>, vector<16x32xf32> -> vector<16x32xf32>
    %55 = vector.broadcast %10 : vector<1x32xf32> to vector<16x32xf32>
    %56 = arith.addf %54, %55 : vector<16x32xf32>
    %c0_27 = arith.constant 0 : index
    %c0_28 = arith.constant 0 : index
    %c0_29 = arith.constant 0 : index
    %57 = vector.load %arg8[%c0_27, %c0_28, %c0_29] : memref<1x4x256xf32, #tpu.memory_space<vmem>>, vector<1x4x256xf32>
    %58 = vector.shape_cast %57 : vector<1x4x256xf32> to vector<4x256xf32>
    %59 = vector.extract_strided_slice %46 {offsets = [0, 0], sizes = [16, 8], strides = [1, 1]} : vector<16x32xf32> to vector<16x8xf32>
    %60 = vector.shape_cast %59 : vector<16x8xf32> to vector<2x8x8xf32>
    %61 = vector.extract_strided_slice %51 {offsets = [0, 0], sizes = [16, 8], strides = [1, 1]} : vector<16x32xf32> to vector<16x8xf32>
    %62 = vector.shape_cast %61 : vector<16x8xf32> to vector<2x8x8xf32>
    %63 = vector.extract_strided_slice %56 {offsets = [0, 0], sizes = [16, 8], strides = [1, 1]} : vector<16x32xf32> to vector<16x8xf32>
    %64 = vector.shape_cast %63 : vector<16x8xf32> to vector<2x8x8xf32>
    "tpu.trace_start"() <{level = 10 : i32, message = "bqd,bkd->bqk"}> : () -> ()
    %cst_30 = arith.constant dense<0.000000e+00> : vector<2x8x8xf32>
    %65 = tpu.matmul %60, %62, %cst_30 {dimension_numbers = #tpu.dot_dimension_numbers<[2], [2], [1], [1], [0, 0, 0, 1, 1, 1], [0], [0]>} : vector<2x8x8xf32>, vector<2x8x8xf32>, vector<2x8x8xf32> -> vector<2x8x8xf32>
    "tpu.trace_stop"() : () -> ()
    %66 = vector.extract_strided_slice %58 {offsets = [0, 0], sizes = [1, 256], strides = [1, 1]} : vector<4x256xf32> to vector<1x256xf32>
    %67 = vector.shape_cast %66 : vector<1x256xf32> to vector<1x1x1x256xf32>
    %cst_31 = arith.constant 0.000000e+00 : f32
    %68 = vector.shape_cast %67 : vector<1x1x1x256xf32> to vector<1x1x1x256xf32>
    %69 = vector.broadcast %68 : vector<1x1x1x256xf32> to vector<2x8x8x256xf32>
    %70 = vector.broadcast %cst_31 : f32 to vector<2x8x8x256xf32>
    %71 = arith.select %18, %69, %70 : vector<2x8x8x256xi1>, vector<2x8x8x256xf32>
    %cst_32 = arith.constant dense<0.000000e+00> : vector<2x8x8xf32>
    %72 = vector.multi_reduction <add>, %71, %cst_32 [3] : vector<2x8x8x256xf32> to vector<2x8x8xf32>
    %73 = arith.addf %65, %72 : vector<2x8x8xf32>
    %cst_33 = arith.constant dense<0xFF800000> : vector<2x8xf32>
    %74 = vector.multi_reduction <maximumf>, %73, %cst_33 [2] : vector<2x8x8xf32> to vector<2x8xf32>
    %75 = vector.shape_cast %74 : vector<2x8xf32> to vector<2x8x1xf32>
    %76 = vector.broadcast %75 : vector<2x8x1xf32> to vector<2x8x8xf32>
    %77 = arith.subf %73, %76 : vector<2x8x8xf32>
    %78 = math.exp %77 : vector<2x8x8xf32>
    %cst_34 = arith.constant dense<0.000000e+00> : vector<2x8xf32>
    %79 = vector.multi_reduction <add>, %78, %cst_34 [2] : vector<2x8x8xf32> to vector<2x8xf32>
    %80 = vector.shape_cast %79 : vector<2x8xf32> to vector<2x8x1xf32>
    %81 = tpu.reciprocal %80 {approx = true} : vector<2x8x1xf32> -> vector<2x8x1xf32>
    %82 = vector.broadcast %81 : vector<2x8x1xf32> to vector<2x8x8xf32>
    %83 = arith.mulf %78, %82 : vector<2x8x8xf32>
    "tpu.trace_start"() <{level = 10 : i32, message = "bqk,bkd->bqd"}> : () -> ()
    %cst_35 = arith.constant dense<0.000000e+00> : vector<2x8x8xf32>
    %84 = tpu.matmul %83, %64, %cst_35 {dimension_numbers = #tpu.dot_dimension_numbers<[2], [1], [1], [2], [0, 0, 0, 1, 1, 2], [0], [0]>} : vector<2x8x8xf32>, vector<2x8x8xf32>, vector<2x8x8xf32> -> vector<2x8x8xf32>
    "tpu.trace_stop"() : () -> ()
    %85 = vector.extract_strided_slice %46 {offsets = [0, 8], sizes = [16, 8], strides = [1, 1]} : vector<16x32xf32> to vector<16x8xf32>
    %86 = vector.shape_cast %85 : vector<16x8xf32> to vector<2x8x8xf32>
    %87 = vector.extract_strided_slice %51 {offsets = [0, 8], sizes = [16, 8], strides = [1, 1]} : vector<16x32xf32> to vector<16x8xf32>
    %88 = vector.shape_cast %87 : vector<16x8xf32> to vector<2x8x8xf32>
    %89 = vector.extract_strided_slice %56 {offsets = [0, 8], sizes = [16, 8], strides = [1, 1]} : vector<16x32xf32> to vector<16x8xf32>
    %90 = vector.shape_cast %89 : vector<16x8xf32> to vector<2x8x8xf32>
    "tpu.trace_start"() <{level = 10 : i32, message = "bqd,bkd->bqk"}> : () -> ()
    %cst_36 = arith.constant dense<0.000000e+00> : vector<2x8x8xf32>
    %91 = tpu.matmul %86, %88, %cst_36 {dimension_numbers = #tpu.dot_dimension_numbers<[2], [2], [1], [1], [0, 0, 0, 1, 1, 1], [0], [0]>} : vector<2x8x8xf32>, vector<2x8x8xf32>, vector<2x8x8xf32> -> vector<2x8x8xf32>
    "tpu.trace_stop"() : () -> ()
    %92 = vector.extract_strided_slice %58 {offsets = [1, 0], sizes = [1, 256], strides = [1, 1]} : vector<4x256xf32> to vector<1x256xf32>
    %93 = vector.shape_cast %92 : vector<1x256xf32> to vector<1x1x1x256xf32>
    %cst_37 = arith.constant 0.000000e+00 : f32
    %94 = vector.shape_cast %93 : vector<1x1x1x256xf32> to vector<1x1x1x256xf32>
    %95 = vector.broadcast %94 : vector<1x1x1x256xf32> to vector<2x8x8x256xf32>
    %96 = vector.broadcast %cst_37 : f32 to vector<2x8x8x256xf32>
    %97 = arith.select %18, %95, %96 : vector<2x8x8x256xi1>, vector<2x8x8x256xf32>
    %cst_38 = arith.constant dense<0.000000e+00> : vector<2x8x8xf32>
    %98 = vector.multi_reduction <add>, %97, %cst_38 [3] : vector<2x8x8x256xf32> to vector<2x8x8xf32>
    %99 = arith.addf %91, %98 : vector<2x8x8xf32>
    %cst_39 = arith.constant dense<0xFF800000> : vector<2x8xf32>
    %100 = vector.multi_reduction <maximumf>, %99, %cst_39 [2] : vector<2x8x8xf32> to vector<2x8xf32>
    %101 = vector.shape_cast %100 : vector<2x8xf32> to vector<2x8x1xf32>
    %102 = vector.broadcast %101 : vector<2x8x1xf32> to vector<2x8x8xf32>
    %103 = arith.subf %99, %102 : vector<2x8x8xf32>
    %104 = math.exp %103 : vector<2x8x8xf32>
    %cst_40 = arith.constant dense<0.000000e+00> : vector<2x8xf32>
    %105 = vector.multi_reduction <add>, %104, %cst_40 [2] : vector<2x8x8xf32> to vector<2x8xf32>
    %106 = vector.shape_cast %105 : vector<2x8xf32> to vector<2x8x1xf32>
    %107 = tpu.reciprocal %106 {approx = true} : vector<2x8x1xf32> -> vector<2x8x1xf32>
    %108 = vector.broadcast %107 : vector<2x8x1xf32> to vector<2x8x8xf32>
    %109 = arith.mulf %104, %108 : vector<2x8x8xf32>
    "tpu.trace_start"() <{level = 10 : i32, message = "bqk,bkd->bqd"}> : () -> ()
    %cst_41 = arith.constant dense<0.000000e+00> : vector<2x8x8xf32>
    %110 = tpu.matmul %109, %90, %cst_41 {dimension_numbers = #tpu.dot_dimension_numbers<[2], [1], [1], [2], [0, 0, 0, 1, 1, 2], [0], [0]>} : vector<2x8x8xf32>, vector<2x8x8xf32>, vector<2x8x8xf32> -> vector<2x8x8xf32>
    "tpu.trace_stop"() : () -> ()
    %111 = vector.extract_strided_slice %46 {offsets = [0, 16], sizes = [16, 8], strides = [1, 1]} : vector<16x32xf32> to vector<16x8xf32>
    %112 = vector.shape_cast %111 : vector<16x8xf32> to vector<2x8x8xf32>
    %113 = vector.extract_strided_slice %51 {offsets = [0, 16], sizes = [16, 8], strides = [1, 1]} : vector<16x32xf32> to vector<16x8xf32>
    %114 = vector.shape_cast %113 : vector<16x8xf32> to vector<2x8x8xf32>
    %115 = vector.extract_strided_slice %56 {offsets = [0, 16], sizes = [16, 8], strides = [1, 1]} : vector<16x32xf32> to vector<16x8xf32>
    %116 = vector.shape_cast %115 : vector<16x8xf32> to vector<2x8x8xf32>
    "tpu.trace_start"() <{level = 10 : i32, message = "bqd,bkd->bqk"}> : () -> ()
    %cst_42 = arith.constant dense<0.000000e+00> : vector<2x8x8xf32>
    %117 = tpu.matmul %112, %114, %cst_42 {dimension_numbers = #tpu.dot_dimension_numbers<[2], [2], [1], [1], [0, 0, 0, 1, 1, 1], [0], [0]>} : vector<2x8x8xf32>, vector<2x8x8xf32>, vector<2x8x8xf32> -> vector<2x8x8xf32>
    "tpu.trace_stop"() : () -> ()
    %118 = vector.extract_strided_slice %58 {offsets = [2, 0], sizes = [1, 256], strides = [1, 1]} : vector<4x256xf32> to vector<1x256xf32>
    %119 = vector.shape_cast %118 : vector<1x256xf32> to vector<1x1x1x256xf32>
    %cst_43 = arith.constant 0.000000e+00 : f32
    %120 = vector.shape_cast %119 : vector<1x1x1x256xf32> to vector<1x1x1x256xf32>
    %121 = vector.broadcast %120 : vector<1x1x1x256xf32> to vector<2x8x8x256xf32>
    %122 = vector.broadcast %cst_43 : f32 to vector<2x8x8x256xf32>
    %123 = arith.select %18, %121, %122 : vector<2x8x8x256xi1>, vector<2x8x8x256xf32>
    %cst_44 = arith.constant dense<0.000000e+00> : vector<2x8x8xf32>
    %124 = vector.multi_reduction <add>, %123, %cst_44 [3] : vector<2x8x8x256xf32> to vector<2x8x8xf32>
    %125 = arith.addf %117, %124 : vector<2x8x8xf32>
    %cst_45 = arith.constant dense<0xFF800000> : vector<2x8xf32>
    %126 = vector.multi_reduction <maximumf>, %125, %cst_45 [2] : vector<2x8x8xf32> to vector<2x8xf32>
    %127 = vector.shape_cast %126 : vector<2x8xf32> to vector<2x8x1xf32>
    %128 = vector.broadcast %127 : vector<2x8x1xf32> to vector<2x8x8xf32>
    %129 = arith.subf %125, %128 : vector<2x8x8xf32>
    %130 = math.exp %129 : vector<2x8x8xf32>
    %cst_46 = arith.constant dense<0.000000e+00> : vector<2x8xf32>
    %131 = vector.multi_reduction <add>, %130, %cst_46 [2] : vector<2x8x8xf32> to vector<2x8xf32>
    %132 = vector.shape_cast %131 : vector<2x8xf32> to vector<2x8x1xf32>
    %133 = tpu.reciprocal %132 {approx = true} : vector<2x8x1xf32> -> vector<2x8x1xf32>
    %134 = vector.broadcast %133 : vector<2x8x1xf32> to vector<2x8x8xf32>
    %135 = arith.mulf %130, %134 : vector<2x8x8xf32>
    "tpu.trace_start"() <{level = 10 : i32, message = "bqk,bkd->bqd"}> : () -> ()
    %cst_47 = arith.constant dense<0.000000e+00> : vector<2x8x8xf32>
    %136 = tpu.matmul %135, %116, %cst_47 {dimension_numbers = #tpu.dot_dimension_numbers<[2], [1], [1], [2], [0, 0, 0, 1, 1, 2], [0], [0]>} : vector<2x8x8xf32>, vector<2x8x8xf32>, vector<2x8x8xf32> -> vector<2x8x8xf32>
    "tpu.trace_stop"() : () -> ()
    %137 = vector.extract_strided_slice %46 {offsets = [0, 24], sizes = [16, 8], strides = [1, 1]} : vector<16x32xf32> to vector<16x8xf32>
    %138 = vector.shape_cast %137 : vector<16x8xf32> to vector<2x8x8xf32>
    %139 = vector.extract_strided_slice %51 {offsets = [0, 24], sizes = [16, 8], strides = [1, 1]} : vector<16x32xf32> to vector<16x8xf32>
    %140 = vector.shape_cast %139 : vector<16x8xf32> to vector<2x8x8xf32>
    %141 = vector.extract_strided_slice %56 {offsets = [0, 24], sizes = [16, 8], strides = [1, 1]} : vector<16x32xf32> to vector<16x8xf32>
    %142 = vector.shape_cast %141 : vector<16x8xf32> to vector<2x8x8xf32>
    "tpu.trace_start"() <{level = 10 : i32, message = "bqd,bkd->bqk"}> : () -> ()
    %cst_48 = arith.constant dense<0.000000e+00> : vector<2x8x8xf32>
    %143 = tpu.matmul %138, %140, %cst_48 {dimension_numbers = #tpu.dot_dimension_numbers<[2], [2], [1], [1], [0, 0, 0, 1, 1, 1], [0], [0]>} : vector<2x8x8xf32>, vector<2x8x8xf32>, vector<2x8x8xf32> -> vector<2x8x8xf32>
    "tpu.trace_stop"() : () -> ()
    %144 = vector.extract_strided_slice %58 {offsets = [3, 0], sizes = [1, 256], strides = [1, 1]} : vector<4x256xf32> to vector<1x256xf32>
    %145 = vector.shape_cast %144 : vector<1x256xf32> to vector<1x1x1x256xf32>
    %cst_49 = arith.constant 0.000000e+00 : f32
    %146 = vector.shape_cast %145 : vector<1x1x1x256xf32> to vector<1x1x1x256xf32>
    %147 = vector.broadcast %146 : vector<1x1x1x256xf32> to vector<2x8x8x256xf32>
    %148 = vector.broadcast %cst_49 : f32 to vector<2x8x8x256xf32>
    %149 = arith.select %18, %147, %148 : vector<2x8x8x256xi1>, vector<2x8x8x256xf32>
    %cst_50 = arith.constant dense<0.000000e+00> : vector<2x8x8xf32>
    %150 = vector.multi_reduction <add>, %149, %cst_50 [3] : vector<2x8x8x256xf32> to vector<2x8x8xf32>
    %151 = arith.addf %143, %150 : vector<2x8x8xf32>
    %cst_51 = arith.constant dense<0xFF800000> : vector<2x8xf32>
    %152 = vector.multi_reduction <maximumf>, %151, %cst_51 [2] : vector<2x8x8xf32> to vector<2x8xf32>
    %153 = vector.shape_cast %152 : vector<2x8xf32> to vector<2x8x1xf32>
    %154 = vector.broadcast %153 : vector<2x8x1xf32> to vector<2x8x8xf32>
    %155 = arith.subf %151, %154 : vector<2x8x8xf32>
    %156 = math.exp %155 : vector<2x8x8xf32>
    %cst_52 = arith.constant dense<0.000000e+00> : vector<2x8xf32>
    %157 = vector.multi_reduction <add>, %156, %cst_52 [2] : vector<2x8x8xf32> to vector<2x8xf32>
    %158 = vector.shape_cast %157 : vector<2x8xf32> to vector<2x8x1xf32>
    %159 = tpu.reciprocal %158 {approx = true} : vector<2x8x1xf32> -> vector<2x8x1xf32>
    %160 = vector.broadcast %159 : vector<2x8x1xf32> to vector<2x8x8xf32>
    %161 = arith.mulf %156, %160 : vector<2x8x8xf32>
    "tpu.trace_start"() <{level = 10 : i32, message = "bqk,bkd->bqd"}> : () -> ()
    %cst_53 = arith.constant dense<0.000000e+00> : vector<2x8x8xf32>
    %162 = tpu.matmul %161, %142, %cst_53 {dimension_numbers = #tpu.dot_dimension_numbers<[2], [1], [1], [2], [0, 0, 0, 1, 1, 2], [0], [0]>} : vector<2x8x8xf32>, vector<2x8x8xf32>, vector<2x8x8xf32> -> vector<2x8x8xf32>
    "tpu.trace_stop"() : () -> ()
    %163 = tpu.concatenate %84, %110, %136, %162 in 2 : vector<2x8x8xf32>, vector<2x8x8xf32>, vector<2x8x8xf32>, vector<2x8x8xf32> -> vector<2x8x32xf32>
    %164 = vector.shape_cast %163 : vector<2x8x32xf32> to vector<16x32xf32>
    %165 = arith.truncf %164 : vector<16x32xf32> to vector<16x32xbf16>
    %c0_54 = arith.constant 0 : index
    %c3 = arith.constant 3 : index
    %c0_55 = arith.constant 0 : index
    %c0_56 = arith.constant 0 : index
    %166 = vector.load %arg10[%c0_54, %c3, %c0_55, %c0_56] : memref<1x4x32x32xbf16, #tpu.memory_space<vmem>>, vector<1x1x32x32xbf16>
    %167 = vector.shape_cast %166 : vector<1x1x32x32xbf16> to vector<32x32xbf16>
    %cst_57 = arith.constant dense<0.000000e+00> : vector<16x32xf32>
    %168 = tpu.matmul %165, %167, %cst_57 {dimension_numbers = #tpu.dot_dimension_numbers<[1], [0], [0], [1], [0, 0, 1, 1], [], []>} : vector<16x32xbf16>, vector<32x32xbf16>, vector<16x32xf32> -> vector<16x32xf32>
    %169 = arith.addf %3, %168 : vector<16x32xf32>
    %170 = vector.broadcast %11 : vector<1x32xf32> to vector<16x32xf32>
    %171 = arith.addf %169, %170 : vector<16x32xf32>
    %cst_58 = arith.constant dense<0.000000e+00> : vector<16xf32>
    %172 = vector.multi_reduction <add>, %171, %cst_58 [1] : vector<16x32xf32> to vector<16xf32>
    %173 = vector.shape_cast %172 : vector<16xf32> to vector<16x1xf32>
    %cst_59 = arith.constant 3.200000e+01 : f32
    %174 = vector.broadcast %cst_59 : f32 to vector<16x1xf32>
    %175 = arith.divf %173, %174 : vector<16x1xf32>
    %176 = vector.broadcast %175 : vector<16x1xf32> to vector<16x32xf32>
    %177 = arith.subf %171, %176 : vector<16x32xf32>
    %178 = arith.mulf %177, %177 : vector<16x32xf32>
    %cst_60 = arith.constant dense<0.000000e+00> : vector<16xf32>
    %179 = vector.multi_reduction <add>, %178, %cst_60 [1] : vector<16x32xf32> to vector<16xf32>
    %180 = vector.shape_cast %179 : vector<16xf32> to vector<16x1xf32>
    %cst_61 = arith.constant 3.200000e+01 : f32
    %181 = vector.broadcast %cst_61 : f32 to vector<16x1xf32>
    %182 = arith.divf %180, %181 : vector<16x1xf32>
    %cst_62 = arith.constant 9.99999974E-6 : f32
    %183 = vector.broadcast %cst_62 : f32 to vector<16x1xf32>
    %184 = arith.addf %182, %183 : vector<16x1xf32>
    %185 = math.rsqrt %184 : vector<16x1xf32>
    %186 = vector.broadcast %185 : vector<16x1xf32> to vector<16x32xf32>
    %187 = arith.mulf %177, %186 : vector<16x32xf32>
    %188 = vector.broadcast %12 : vector<1x32xf32> to vector<16x32xf32>
    %189 = arith.mulf %187, %188 : vector<16x32xf32>
    %190 = vector.broadcast %13 : vector<1x32xf32> to vector<16x32xf32>
    %191 = arith.addf %189, %190 : vector<16x32xf32>
    %192 = arith.truncf %191 : vector<16x32xf32> to vector<16x32xbf16>
    %c0_63 = arith.constant 0 : index
    %c0_64 = arith.constant 0 : index
    %c0_65 = arith.constant 0 : index
    %193 = vector.load %arg11[%c0_63, %c0_64, %c0_65] : memref<1x32x64xbf16, #tpu.memory_space<vmem>>, vector<1x32x64xbf16>
    %194 = vector.shape_cast %193 : vector<1x32x64xbf16> to vector<32x64xbf16>
    %cst_66 = arith.constant dense<0.000000e+00> : vector<16x64xf32>
    %195 = tpu.matmul %192, %194, %cst_66 {dimension_numbers = #tpu.dot_dimension_numbers<[1], [0], [0], [1], [0, 0, 1, 1], [], []>} : vector<16x32xbf16>, vector<32x64xbf16>, vector<16x64xf32> -> vector<16x64xf32>
    %c0_67 = arith.constant 0 : index
    %c0_68 = arith.constant 0 : index
    %c0_69 = arith.constant 0 : index
    %196 = vector.load %arg12[%c0_67, %c0_68, %c0_69] : memref<1x1x64xf32, #tpu.memory_space<vmem>>, vector<1x1x64xf32>
    %197 = vector.shape_cast %196 : vector<1x1x64xf32> to vector<1x64xf32>
    %198 = vector.broadcast %197 : vector<1x64xf32> to vector<16x64xf32>
    %199 = arith.addf %195, %198 : vector<16x64xf32>
    %cst_70 = arith.constant 5.000000e-01 : f32
    %200 = vector.broadcast %cst_70 : f32 to vector<16x64xf32>
    %201 = arith.mulf %200, %199 : vector<16x64xf32>
    %cst_71 = arith.constant 0.707106769 : f32
    %202 = vector.broadcast %cst_71 : f32 to vector<16x64xf32>
    %203 = arith.mulf %199, %202 : vector<16x64xf32>
    %cst_72 = arith.constant 0.000000e+00 : f32
    %204 = vector.broadcast %cst_72 : f32 to vector<16x64xf32>
    %205 = arith.cmpf oge, %203, %204 : vector<16x64xf32>
    %cst_73 = arith.constant 1.000000e+00 : f32
    %cst_74 = arith.constant -1.000000e+00 : f32
    %206 = vector.broadcast %cst_73 : f32 to vector<16x64xf32>
    %207 = vector.broadcast %cst_74 : f32 to vector<16x64xf32>
    %208 = arith.select %205, %206, %207 : vector<16x64xi1>, vector<16x64xf32>
    %209 = math.absf %203 : vector<16x64xf32>
    %cst_75 = arith.constant 0.327591091 : f32
    %210 = vector.broadcast %cst_75 : f32 to vector<16x64xf32>
    %211 = arith.mulf %210, %209 : vector<16x64xf32>
    %cst_76 = arith.constant 1.000000e+00 : f32
    %212 = vector.broadcast %cst_76 : f32 to vector<16x64xf32>
    %213 = arith.addf %212, %211 : vector<16x64xf32>
    %cst_77 = arith.constant 1.000000e+00 : f32
    %214 = vector.broadcast %cst_77 : f32 to vector<16x64xf32>
    %215 = arith.divf %214, %213 : vector<16x64xf32>
    %cst_78 = arith.constant 1.06140542 : f32
    %216 = vector.broadcast %cst_78 : f32 to vector<16x64xf32>
    %217 = arith.mulf %216, %215 : vector<16x64xf32>
    %cst_79 = arith.constant -1.45315206 : f32
    %218 = vector.broadcast %cst_79 : f32 to vector<16x64xf32>
    %219 = arith.addf %217, %218 : vector<16x64xf32>
    %220 = arith.mulf %219, %215 : vector<16x64xf32>
    %cst_80 = arith.constant 1.42141378 : f32
    %221 = vector.broadcast %cst_80 : f32 to vector<16x64xf32>
    %222 = arith.addf %220, %221 : vector<16x64xf32>
    %223 = arith.mulf %222, %215 : vector<16x64xf32>
    %cst_81 = arith.constant -0.284496725 : f32
    %224 = vector.broadcast %cst_81 : f32 to vector<16x64xf32>
    %225 = arith.addf %223, %224 : vector<16x64xf32>
    %226 = arith.mulf %225, %215 : vector<16x64xf32>
    %cst_82 = arith.constant 0.254829586 : f32
    %227 = vector.broadcast %cst_82 : f32 to vector<16x64xf32>
    %228 = arith.addf %226, %227 : vector<16x64xf32>
    %229 = arith.mulf %228, %215 : vector<16x64xf32>
    %cst_83 = arith.constant 0.000000e+00 : f32
    %230 = vector.broadcast %cst_83 : f32 to vector<16x64xf32>
    %231 = arith.subf %230, %209 : vector<16x64xf32>
    %232 = arith.mulf %231, %209 : vector<16x64xf32>
    %233 = math.exp %232 : vector<16x64xf32>
    %234 = arith.mulf %229, %233 : vector<16x64xf32>
    %cst_84 = arith.constant 1.000000e+00 : f32
    %235 = vector.broadcast %cst_84 : f32 to vector<16x64xf32>
    %236 = arith.subf %235, %234 : vector<16x64xf32>
    %237 = arith.mulf %208, %236 : vector<16x64xf32>
    %cst_85 = arith.constant 1.000000e+00 : f32
    %238 = vector.broadcast %cst_85 : f32 to vector<16x64xf32>
    %239 = arith.addf %238, %237 : vector<16x64xf32>
    %240 = arith.mulf %201, %239 : vector<16x64xf32>
    %241 = arith.truncf %240 : vector<16x64xf32> to vector<16x64xbf16>
    %c0_86 = arith.constant 0 : index
    %c0_87 = arith.constant 0 : index
    %c0_88 = arith.constant 0 : index
    %242 = vector.load %arg13[%c0_86, %c0_87, %c0_88] : memref<1x64x32xbf16, #tpu.memory_space<vmem>>, vector<1x64x32xbf16>
    %243 = vector.shape_cast %242 : vector<1x64x32xbf16> to vector<64x32xbf16>
    %cst_89 = arith.constant dense<0.000000e+00> : vector<16x32xf32>
    %244 = tpu.matmul %241, %243, %cst_89 {dimension_numbers = #tpu.dot_dimension_numbers<[1], [0], [0], [1], [0, 0, 1, 1], [], []>} : vector<16x64xbf16>, vector<64x32xbf16>, vector<16x32xf32> -> vector<16x32xf32>
    %245 = arith.addf %171, %244 : vector<16x32xf32>
    %246 = vector.broadcast %14 : vector<1x32xf32> to vector<16x32xf32>
    %247 = arith.addf %245, %246 : vector<16x32xf32>
    %c0_90 = arith.constant 0 : index
    %c0_91 = arith.constant 0 : index
    %248 = vector.load %arg18[%c0_90, %c0_91] : memref<16x32xf32, #tpu.memory_space<vmem>>, vector<16x32xf32>
    tpu.vector_store %arg18[%c0_90, %c0_91], %247 {strides = array<i32>} : memref<16x32xf32, #tpu.memory_space<vmem>>, vector<16x32xf32>,
    %c1_i32 = arith.constant 1 : i32
    %249 = arith.cmpi eq, %arg1, %c1_i32 : i32
    %250 = arith.extui %249 : i1 to i32
    %c0_i32_92 = arith.constant 0 : i32
    %251 = arith.cmpi ne, %250, %c0_i32_92 : i32
    scf.if %251 {
      %252 = vector.shape_cast %247 : vector<16x32xf32> to vector<2x8x32xf32>
      %253 = vector.extract_strided_slice %252 {offsets = [0, 0, 0], sizes = [2, 1, 32], strides = [1, 1, 1]} : vector<2x8x32xf32> to vector<2x1x32xf32>
      %254 = vector.shape_cast %253 : vector<2x1x32xf32> to vector<2x32xf32>
      %c0_93 = arith.constant 0 : index
      %c0_94 = arith.constant 0 : index
      %255 = vector.load %arg14[%c0_93, %c0_94] : memref<2x32xf32, #tpu.memory_space<vmem>>, vector<1x32xf32>
      %c1_95 = arith.constant 1 : index
      %c0_96 = arith.constant 0 : index
      %256 = vector.load %arg14[%c1_95, %c0_96] : memref<2x32xf32, #tpu.memory_space<vmem>>, vector<1x32xf32>
      %cst_97 = arith.constant dense<0.000000e+00> : vector<2xf32>
      %257 = vector.multi_reduction <add>, %254, %cst_97 [1] : vector<2x32xf32> to vector<2xf32>
      %258 = vector.shape_cast %257 : vector<2xf32> to vector<2x1xf32>
      %cst_98 = arith.constant 3.200000e+01 : f32
      %259 = vector.broadcast %cst_98 : f32 to vector<2x1xf32>
      %260 = arith.divf %258, %259 : vector<2x1xf32>
      %261 = vector.broadcast %260 : vector<2x1xf32> to vector<2x32xf32>
      %262 = arith.subf %254, %261 : vector<2x32xf32>
      %263 = arith.mulf %262, %262 : vector<2x32xf32>
      %cst_99 = arith.constant dense<0.000000e+00> : vector<2xf32>
      %264 = vector.multi_reduction <add>, %263, %cst_99 [1] : vector<2x32xf32> to vector<2xf32>
      %265 = vector.shape_cast %264 : vector<2xf32> to vector<2x1xf32>
      %cst_100 = arith.constant 3.200000e+01 : f32
      %266 = vector.broadcast %cst_100 : f32 to vector<2x1xf32>
      %267 = arith.divf %265, %266 : vector<2x1xf32>
      %cst_101 = arith.constant 9.99999974E-6 : f32
      %268 = vector.broadcast %cst_101 : f32 to vector<2x1xf32>
      %269 = arith.addf %267, %268 : vector<2x1xf32>
      %270 = math.rsqrt %269 : vector<2x1xf32>
      %271 = vector.broadcast %270 : vector<2x1xf32> to vector<2x32xf32>
      %272 = arith.mulf %262, %271 : vector<2x32xf32>
      %273 = vector.broadcast %255 : vector<1x32xf32> to vector<2x32xf32>
      %274 = arith.mulf %272, %273 : vector<2x32xf32>
      %275 = vector.broadcast %256 : vector<1x32xf32> to vector<2x32xf32>
      %276 = arith.addf %274, %275 : vector<2x32xf32>
      %c0_102 = arith.constant 0 : index
      %c0_103 = arith.constant 0 : index
      %277 = vector.load %arg15[%c0_102, %c0_103] : memref<32x8xf32, #tpu.memory_space<vmem>>, vector<32x8xf32>
      %cst_104 = arith.constant dense<0.000000e+00> : vector<2x8xf32>
      %278 = tpu.matmul %276, %277, %cst_104 {dimension_numbers = #tpu.dot_dimension_numbers<[1], [0], [0], [1], [0, 0, 1, 1], [], []>} : vector<2x32xf32>, vector<32x8xf32>, vector<2x8xf32> -> vector<2x8xf32>
      %c0_105 = arith.constant 0 : index
      %c0_106 = arith.constant 0 : index
      %279 = vector.load %arg16[%c0_105, %c0_106] : memref<1x8xf32, #tpu.memory_space<vmem>>, vector<1x8xf32>
      %280 = vector.broadcast %279 : vector<1x8xf32> to vector<2x8xf32>
      %281 = arith.addf %278, %280 : vector<2x8xf32>
      %282 = vector.shape_cast %281 : vector<2x8xf32> to vector<2x1x8xf32>
      %c0_107 = arith.constant 0 : index
      %c0_108 = arith.constant 0 : index
      %c0_109 = arith.constant 0 : index
      %283 = vector.load %arg17[%c0_107, %c0_108, %c0_109] : memref<2x1x8xf32, #tpu.memory_space<vmem>>, vector<2x1x8xf32>
      tpu.vector_store %arg17[%c0_107, %c0_108, %c0_109], %282 {strides = array<i32>} : memref<2x1x8xf32, #tpu.memory_space<vmem>>, vector<2x1x8xf32>,
    } else {
    }
    return
  }
  func.func @transform_0(%arg0: i32, %arg1: i32) -> (i32, i32, i32) {
    %c0_i32 = arith.constant 0 : i32
    %c0_i32_0 = arith.constant 0 : i32
    %c0_i32_1 = arith.constant 0 : i32
    return %arg0, %c0_i32, %c0_i32_0 : i32, i32, i32
  }
  func.func @transform_1(%arg0: i32, %arg1: i32) -> (i32, i32) {
    %c0_i32 = arith.constant 0 : i32
    %c0_i32_0 = arith.constant 0 : i32
    return %arg0, %c0_i32 : i32, i32
  }
  func.func @transform_2(%arg0: i32, %arg1: i32) -> (i32, i32, i32, i32) {
    %c0_i32 = arith.constant 0 : i32
    %c0_i32_0 = arith.constant 0 : i32
    %c0_i32_1 = arith.constant 0 : i32
    %c0_i32_2 = arith.constant 0 : i32
    return %arg0, %c0_i32, %c0_i32_0, %c0_i32_1 : i32, i32, i32, i32
  }
  func.func @transform_3(%arg0: i32, %arg1: i32) -> (i32, i32) {
    %c0_i32 = arith.constant 0 : i32
    %c0_i32_0 = arith.constant 0 : i32
    %c0_i32_1 = arith.constant 0 : i32
    return %c0_i32, %c0_i32_0 : i32, i32
  }
  func.func @transform_4(%arg0: i32, %arg1: i32) -> (i32, i32) {
    %c0_i32 = arith.constant 0 : i32
    %c0_i32_0 = arith.constant 0 : i32
    %c0_i32_1 = arith.constant 0 : i32
    return %c0_i32, %c0_i32_0 : i32, i32
  }
  func.func @transform_5(%arg0: i32, %arg1: i32) -> (i32, i32) {
    %c0_i32 = arith.constant 0 : i32
    %c0_i32_0 = arith.constant 0 : i32
    %c0_i32_1 = arith.constant 0 : i32
    return %c0_i32, %c0_i32_0 : i32, i32
  }
  func.func @transform_6(%arg0: i32, %arg1: i32) -> (i32, i32, i32) {
    %c0_i32 = arith.constant 0 : i32
    %c0_i32_0 = arith.constant 0 : i32
    %c0_i32_1 = arith.constant 0 : i32
    return %arg1, %c0_i32, %c0_i32_0 : i32, i32, i32
  }
  func.func @transform_7(%arg0: i32, %arg1: i32) -> (i32, i32, i32) {
    %c0_i32 = arith.constant 0 : i32
    %c0_i32_0 = arith.constant 0 : i32
    %c0_i32_1 = arith.constant 0 : i32
    return %arg1, %c0_i32, %c0_i32_0 : i32, i32, i32
  }
  func.func @transform_8(%arg0: i32, %arg1: i32) -> (i32, i32, i32, i32) {
    %c0_i32 = arith.constant 0 : i32
    %c0_i32_0 = arith.constant 0 : i32
    %c0_i32_1 = arith.constant 0 : i32
    %c0_i32_2 = arith.constant 0 : i32
    return %arg1, %c0_i32, %c0_i32_0, %c0_i32_1 : i32, i32, i32, i32
  }
  func.func @transform_9(%arg0: i32, %arg1: i32) -> (i32, i32, i32) {
    %c0_i32 = arith.constant 0 : i32
    %c0_i32_0 = arith.constant 0 : i32
    %c0_i32_1 = arith.constant 0 : i32
    return %arg1, %c0_i32, %c0_i32_0 : i32, i32, i32
  }
  func.func @transform_10(%arg0: i32, %arg1: i32) -> (i32, i32, i32) {
    %c0_i32 = arith.constant 0 : i32
    %c0_i32_0 = arith.constant 0 : i32
    %c0_i32_1 = arith.constant 0 : i32
    return %arg1, %c0_i32, %c0_i32_0 : i32, i32, i32
  }
  func.func @transform_11(%arg0: i32, %arg1: i32) -> (i32, i32, i32) {
    %c0_i32 = arith.constant 0 : i32
    %c0_i32_0 = arith.constant 0 : i32
    %c0_i32_1 = arith.constant 0 : i32
    return %arg1, %c0_i32, %c0_i32_0 : i32, i32, i32
  }
  func.func @transform_12(%arg0: i32, %arg1: i32) -> (i32, i32) {
    %c0_i32 = arith.constant 0 : i32
    %c0_i32_0 = arith.constant 0 : i32
    %c0_i32_1 = arith.constant 0 : i32
    return %c0_i32, %c0_i32_0 : i32, i32
  }
  func.func @transform_13(%arg0: i32, %arg1: i32) -> (i32, i32) {
    %c0_i32 = arith.constant 0 : i32
    %c0_i32_0 = arith.constant 0 : i32
    %c0_i32_1 = arith.constant 0 : i32
    return %c0_i32, %c0_i32_0 : i32, i32
  }
  func.func @transform_14(%arg0: i32, %arg1: i32) -> (i32, i32) {
    %c0_i32 = arith.constant 0 : i32
    %c0_i32_0 = arith.constant 0 : i32
    %c0_i32_1 = arith.constant 0 : i32
    return %c0_i32, %c0_i32_0 : i32, i32
  }
  func.func @transform_15(%arg0: i32, %arg1: i32) -> (i32, i32, i32) {
    %c0_i32 = arith.constant 0 : i32
    %c0_i32_0 = arith.constant 0 : i32
    %c0_i32_1 = arith.constant 0 : i32
    return %arg0, %c0_i32, %c0_i32_0 : i32, i32, i32
  }
}

</mosaic_0001>

<llo_original>
// kernel: gt_forward.1
$region0: #{gt_forward.1}
  #allocation0 [shape = 'u32[]', space=smem, size = 0x4, offset = 0x4, fixed_abs, tag = 'smem constant byte address 0x4 - core index']
  #allocation1 [shape = 'u32[144,128]{1,0:T(1,128)}', space=vmem, size = 0x12000, scoped, tag = 'internal scratch']
  #allocation2 [shape = 'f32[16,32]{1,0:T(8,128)}', space=vmem, size = 0x2000, scoped, tag = 'scratch operand']
  %s0 = inlined_call_operand.vmem [shape: f32[4,8,16], index: 0, kind: input, shape index: {}]
  %s1 = inlined_call_operand.vmem [shape: s32[32,1], index: 1, kind: input, shape index: {}]
  %s2 = inlined_call_operand.vmem [shape: s32[4,8,8,1], index: 2, kind: input, shape index: {}]
  %s3 = inlined_call_operand.vmem [shape: f32[16,32], index: 3, kind: input, shape index: {}]
  %s4 = inlined_call_operand.vmem [shape: f32[1,32], index: 4, kind: input, shape index: {}]
  %s5 = inlined_call_operand.vmem [shape: f32[2,32], index: 5, kind: input, shape index: {}]
  %s6 = inlined_call_operand.vmem [shape: f32[2,4,256], index: 6, kind: input, shape index: {}]
  %s7 = inlined_call_operand.vmem [shape: f32[2,9,32], index: 7, kind: input, shape index: {}]
  %s8 = inlined_call_operand.vmem [shape: bf16[2,4,32,32], index: 8, kind: input, shape index: {}]
  %s9 = inlined_call_operand.vmem [shape: bf16[2,32,64], index: 9, kind: input, shape index: {}]
  %s10 = inlined_call_operand.vmem [shape: f32[2,1,64], index: 10, kind: input, shape index: {}]
  %s11 = inlined_call_operand.vmem [shape: bf16[2,64,32], index: 11, kind: input, shape index: {}]
  %s12 = inlined_call_operand.vmem [shape: f32[2,32], index: 12, kind: input, shape index: {}]
  %s13 = inlined_call_operand.vmem [shape: f32[32,8], index: 13, kind: input, shape index: {}]
  %s14 = inlined_call_operand.vmem [shape: f32[1,8], index: 14, kind: input, shape index: {}]
  %s15 = inlined_call_operand.hbm [shape: f32[4,1,8], index: 15, kind: output, shape index: {}]
  %s16 = sld [smem:[#allocation0]]
  $region101: #{gt_forward.1} parent=0
    _
  %s18 = ssub.s32 1, %s16
  %s19 = scalar_select 0, %s18, %s16
  $region1: #{gt_forward.1} parent=0
    #allocation3 [shape = 'u8[2048]{0}', space=vmem, size = 0x800, scoped, tag = 'output window, operand 0']
    #allocation4 [shape = 's32[2]{0}', space=sflag, size = 0x8, scoped, tag = 'scoped memory for gt_forward.1']
    %20 = vsyncpa [#allocation4], 0
    %s21 = scalar_lea.sflag [#allocation4], 1
    %22 = vsyncpa %s21, 0
    loop: start=0, step=1, limit=6
    $region2: #{gt_forward.1} parent=1 // loop_pre_header
      _
    $region3: #{gt_forward.1} parent=1 // loop_header
      %s24 = sphi 0, %s28
      %p25 = scmp.ge.s32.totalorder %s24, 6
      %s31 = sphi 0, %s43
      %s32 = sphi 0, %s39
      %s33 = sphi 0, %s31
      %s34 = sphi 0, %s32
      %s35 = sphi 0, %s33
      %s36 = sphi 0, %s34
      %s46 = sphi 0, %s48
      %s49 = sphi 0, %s46
      %s50 = sphi 0, %s49
      %s66 = sphi 0, %s50
      %s72 = sphi 0, %s74
      %s75 = sphi 0, %s72
      %s76 = sphi 0, %s75
      %s92 = sphi 0, %s76
      %s98 = sphi 0, %s100
      %s101 = sphi 0, %s98
      %s102 = sphi 0, %s101
      %s118 = sphi 0, %s102
      %s122 = sphi 0, %s122
      %s124 = sphi 0, %s122
      %s125 = sphi 0, %s124
      %s139 = sphi 0, %s125
      %s143 = sphi 0, %s143
      %s145 = sphi 0, %s143
      %s146 = sphi 0, %s145
      %s160 = sphi 0, %s146
      %s164 = sphi 0, %s164
      %s166 = sphi 0, %s164
      %s167 = sphi 0, %s166
      %s181 = sphi 0, %s167
      %s187 = sphi 0, %s189
      %s190 = sphi 0, %s187
      %s191 = sphi 0, %s190
      %s207 = sphi 0, %s191
      %s213 = sphi 0, %s215
      %s216 = sphi 0, %s213
      %s217 = sphi 0, %s216
      %s233 = sphi 0, %s217
      %s239 = sphi 0, %s241
      %s242 = sphi 0, %s239
      %s243 = sphi 0, %s242
      %s259 = sphi 0, %s243
      %s265 = sphi 0, %s267
      %s268 = sphi 0, %s265
      %s269 = sphi 0, %s268
      %s285 = sphi 0, %s269
      %s291 = sphi 0, %s293
      %s294 = sphi 0, %s291
      %s295 = sphi 0, %s294
      %s311 = sphi 0, %s295
      %s317 = sphi 0, %s319
      %s320 = sphi 0, %s317
      %s321 = sphi 0, %s320
      %s337 = sphi 0, %s321
      %s341 = sphi 0, %s341
      %s343 = sphi 0, %s341
      %s344 = sphi 0, %s343
      %s358 = sphi 0, %s344
      %s362 = sphi 0, %s362
      %s364 = sphi 0, %s362
      %s365 = sphi 0, %s364
      %s379 = sphi 0, %s365
      %s383 = sphi 0, %s383
      %s385 = sphi 0, %s383
      %s386 = sphi 0, %s385
      %s400 = sphi 0, %s386
      %s406 = sphi 0, %s408
      %s409 = sphi 0, %s406
      %s410 = sphi 0, %s409
      %s426 = sphi 0, %s410
    $region4: #{gt_forward.1} parent=1 // loop_header_branch
      %27 = sbr.rel (%p25) target = $region8
    $region5: #{gt_forward.1} parent=1 // loop_body
      %s29 = ssub.s32 %s24, 1
      %s30 = ssub.s32 %s24, 2
      %s37 = sadd.s32 1, %s32
      %p38 = scmp.ge.s32.totalorder %s37, 2
      %s39 = scalar_select %p38, 0, %s37
      %s40 = sadd.s32 1, %s31
      %s41 = scalar_select %p38, %s40, %s31
      %p42 = scmp.ge.s32.totalorder %s41, 2
      %s43 = scalar_select %p42, 0, %s41
      %s44 = ssub.s32 %s31, %s43
      %p45 = scmp.eq.s32.totalorder %s44, 0
      %s47 = sadd.s32 %s46, 1
      %s48 = scalar_select %p45, %s46, %s47
      %p51 = pneg %p45
      %p52 = scmp.eq.s32.totalorder %s24, 3
      %p53 = por %p51, %p52
      %p54 = scmp.ne.s32.totalorder %s46, %s49
      %p55 = scmp.eq.s32.totalorder %s24, 0
      %p56 = por %p54, %p55
      %p57 = scmp.ne.s32.totalorder %s46, %s49
      %p58 = scmp.eq.s32.totalorder %s29, 3
      %p59 = por %p57, %p58
      %p60 = scmp.ne.s32.totalorder %s49, %s50
      %p61 = scmp.eq.s32.totalorder %s29, 0
      %p62 = por %p60, %p61
      %p63 = scmp.ne.s32.totalorder %s49, %s50
      %p64 = scmp.eq.s32.totalorder %s30, 3
      %p65 = por %p63, %p64
      %p67 = scmp.ne.s32.totalorder %s50, %s66
      %p68 = scmp.eq.s32.totalorder %s30, 0
      %p69 = por %p67, %p68
      %s70 = ssub.s32 %s31, %s43
      %p71 = scmp.eq.s32.totalorder %s70, 0
      %s73 = sadd.s32 %s72, 1
      %s74 = scalar_select %p71, %s72, %s73
      %p77 = pneg %p71
      %p78 = scmp.eq.s32.totalorder %s24, 3
      %p79 = por %p77, %p78
      %p80 = scmp.ne.s32.totalorder %s72, %s75
      %p81 = scmp.eq.s32.totalorder %s24, 0
      %p82 = por %p80, %p81
      %p83 = scmp.ne.s32.totalorder %s72, %s75
      %p84 = scmp.eq.s32.totalorder %s29, 3
      %p85 = por %p83, %p84
      %p86 = scmp.ne.s32.totalorder %s75, %s76
      %p87 = scmp.eq.s32.totalorder %s29, 0
      %p88 = por %p86, %p87
      %p89 = scmp.ne.s32.totalorder %s75, %s76
      %p90 = scmp.eq.s32.totalorder %s30, 3
      %p91 = por %p89, %p90
      %p93 = scmp.ne.s32.totalorder %s76, %s92
      %p94 = scmp.eq.s32.totalorder %s30, 0
      %p95 = por %p93, %p94
      %s96 = ssub.s32 %s31, %s43
      %p97 = scmp.eq.s32.totalorder %s96, 0
      %s99 = sadd.s32 %s98, 1
      %s100 = scalar_select %p97, %s98, %s99
      %p103 = pneg %p97
      %p104 = scmp.eq.s32.totalorder %s24, 3
      %p105 = por %p103, %p104
      %p106 = scmp.ne.s32.totalorder %s98, %s101
      %p107 = scmp.eq.s32.totalorder %s24, 0
      %p108 = por %p106, %p107
      %p109 = scmp.ne.s32.totalorder %s98, %s101
      %p110 = scmp.eq.s32.totalorder %s29, 3
      %p111 = por %p109, %p110
      %p112 = scmp.ne.s32.totalorder %s101, %s102
      %p113 = scmp.eq.s32.totalorder %s29, 0
      %p114 = por %p112, %p113
      %p115 = scmp.ne.s32.totalorder %s101, %s102
      %p116 = scmp.eq.s32.totalorder %s30, 3
      %p117 = por %p115, %p116
      %p119 = scmp.ne.s32.totalorder %s102, %s118
      %p120 = scmp.eq.s32.totalorder %s30, 0
      %p121 = por %p119, %p120
      %s123 = sadd.s32 %s122, 1
      %p126 = scmp.eq.s32.totalorder %s24, 3
      %p127 = scmp.ne.s32.totalorder %s122, %s124
      %p128 = scmp.eq.s32.totalorder %s24, 0
      %p129 = por %p127, %p128
      %p130 = scmp.ne.s32.totalorder %s122, %s124
      %p131 = scmp.eq.s32.totalorder %s29, 3
      %p132 = por %p130, %p131
      %p133 = scmp.ne.s32.totalorder %s124, %s125
      %p134 = scmp.eq.s32.totalorder %s29, 0
      %p135 = por %p133, %p134
      %p136 = scmp.ne.s32.totalorder %s124, %s125
      %p137 = scmp.eq.s32.totalorder %s30, 3
      %p138 = por %p136, %p137
      %p140 = scmp.ne.s32.totalorder %s125, %s139
      %p141 = scmp.eq.s32.totalorder %s30, 0
      %p142 = por %p140, %p141
      %s144 = sadd.s32 %s143, 1
      %p147 = scmp.eq.s32.totalorder %s24, 3
      %p148 = scmp.ne.s32.totalorder %s143, %s145
      %p149 = scmp.eq.s32.totalorder %s24, 0
      %p150 = por %p148, %p149
      %p151 = scmp.ne.s32.totalorder %s143, %s145
      %p152 = scmp.eq.s32.totalorder %s29, 3
      %p153 = por %p151, %p152
      %p154 = scmp.ne.s32.totalorder %s145, %s146
      %p155 = scmp.eq.s32.totalorder %s29, 0
      %p156 = por %p154, %p155
      %p157 = scmp.ne.s32.totalorder %s145, %s146
      %p158 = scmp.eq.s32.totalorder %s30, 3
      %p159 = por %p157, %p158
      %p161 = scmp.ne.s32.totalorder %s146, %s160
      %p162 = scmp.eq.s32.totalorder %s30, 0
      %p163 = por %p161, %p162
      %s165 = sadd.s32 %s164, 1
      %p168 = scmp.eq.s32.totalorder %s24, 3
      %p169 = scmp.ne.s32.totalorder %s164, %s166
      %p170 = scmp.eq.s32.totalorder %s24, 0
      %p171 = por %p169, %p170
      %p172 = scmp.ne.s32.totalorder %s164, %s166
      %p173 = scmp.eq.s32.totalorder %s29, 3
      %p174 = por %p172, %p173
      %p175 = scmp.ne.s32.totalorder %s166, %s167
      %p176 = scmp.eq.s32.totalorder %s29, 0
      %p177 = por %p175, %p176
      %p178 = scmp.ne.s32.totalorder %s166, %s167
      %p179 = scmp.eq.s32.totalorder %s30, 3
      %p180 = por %p178, %p179
      %p182 = scmp.ne.s32.totalorder %s167, %s181
      %p183 = scmp.eq.s32.totalorder %s30, 0
      %p184 = por %p182, %p183
      %s185 = ssub.s32 %s32, %s39
      %p186 = scmp.eq.s32.totalorder %s185, 0
      %s188 = sadd.s32 %s187, 1
      %s189 = scalar_select %p186, %s187, %s188
      %p192 = pneg %p186
      %p193 = scmp.eq.s32.totalorder %s24, 3
      %p194 = por %p192, %p193
      %p195 = scmp.ne.s32.totalorder %s187, %s190
      %p196 = scmp.eq.s32.totalorder %s24, 0
      %p197 = por %p195, %p196
      %p198 = scmp.ne.s32.totalorder %s187, %s190
      %p199 = scmp.eq.s32.totalorder %s29, 3
      %p200 = por %p198, %p199
      %p201 = scmp.ne.s32.totalorder %s190, %s191
      %p202 = scmp.eq.s32.totalorder %s29, 0
      %p203 = por %p201, %p202
      %p204 = scmp.ne.s32.totalorder %s190, %s191
      %p205 = scmp.eq.s32.totalorder %s30, 3
      %p206 = por %p204, %p205
      %p208 = scmp.ne.s32.totalorder %s191, %s207
      %p209 = scmp.eq.s32.totalorder %s30, 0
      %p210 = por %p208, %p209
      %s211 = ssub.s32 %s32, %s39
      %p212 = scmp.eq.s32.totalorder %s211, 0
      %s214 = sadd.s32 %s213, 1
      %s215 = scalar_select %p212, %s213, %s214
      %p218 = pneg %p212
      %p219 = scmp.eq.s32.totalorder %s24, 3
      %p220 = por %p218, %p219
      %p221 = scmp.ne.s32.totalorder %s213, %s216
      %p222 = scmp.eq.s32.totalorder %s24, 0
      %p223 = por %p221, %p222
      %p224 = scmp.ne.s32.totalorder %s213, %s216
      %p225 = scmp.eq.s32.totalorder %s29, 3
      %p226 = por %p224, %p225
      %p227 = scmp.ne.s32.totalorder %s216, %s217
      %p228 = scmp.eq.s32.totalorder %s29, 0
      %p229 = por %p227, %p228
      %p230 = scmp.ne.s32.totalorder %s216, %s217
      %p231 = scmp.eq.s32.totalorder %s30, 3
      %p232 = por %p230, %p231
      %p234 = scmp.ne.s32.totalorder %s217, %s233
      %p235 = scmp.eq.s32.totalorder %s30, 0
      %p236 = por %p234, %p235
      %s237 = ssub.s32 %s32, %s39
      %p238 = scmp.eq.s32.totalorder %s237, 0
      %s240 = sadd.s32 %s239, 1
      %s241 = scalar_select %p238, %s239, %s240
      %p244 = pneg %p238
      %p245 = scmp.eq.s32.totalorder %s24, 3
      %p246 = por %p244, %p245
      %p247 = scmp.ne.s32.totalorder %s239, %s242
      %p248 = scmp.eq.s32.totalorder %s24, 0
      %p249 = por %p247, %p248
      %p250 = scmp.ne.s32.totalorder %s239, %s242
      %p251 = scmp.eq.s32.totalorder %s29, 3
      %p252 = por %p250, %p251
      %p253 = scmp.ne.s32.totalorder %s242, %s243
      %p254 = scmp.eq.s32.totalorder %s29, 0
      %p255 = por %p253, %p254
      %p256 = scmp.ne.s32.totalorder %s242, %s243
      %p257 = scmp.eq.s32.totalorder %s30, 3
      %p258 = por %p256, %p257
      %p260 = scmp.ne.s32.totalorder %s243, %s259
      %p261 = scmp.eq.s32.totalorder %s30, 0
      %p262 = por %p260, %p261
      %s263 = ssub.s32 %s32, %s39
      %p264 = scmp.eq.s32.totalorder %s263, 0
      %s266 = sadd.s32 %s265, 1
      %s267 = scalar_select %p264, %s265, %s266
      %p270 = pneg %p264
      %p271 = scmp.eq.s32.totalorder %s24, 3
      %p272 = por %p270, %p271
      %p273 = scmp.ne.s32.totalorder %s265, %s268
      %p274 = scmp.eq.s32.totalorder %s24, 0
      %p275 = por %p273, %p274
      %p276 = scmp.ne.s32.totalorder %s265, %s268
      %p277 = scmp.eq.s32.totalorder %s29, 3
      %p278 = por %p276, %p277
      %p279 = scmp.ne.s32.totalorder %s268, %s269
      %p280 = scmp.eq.s32.totalorder %s29, 0
      %p281 = por %p279, %p280
      %p282 = scmp.ne.s32.totalorder %s268, %s269
      %p283 = scmp.eq.s32.totalorder %s30, 3
      %p284 = por %p282, %p283
      %p286 = scmp.ne.s32.totalorder %s269, %s285
      %p287 = scmp.eq.s32.totalorder %s30, 0
      %p288 = por %p286, %p287
      %s289 = ssub.s32 %s32, %s39
      %p290 = scmp.eq.s32.totalorder %s289, 0
      %s292 = sadd.s32 %s291, 1
      %s293 = scalar_select %p290, %s291, %s292
      %p296 = pneg %p290
      %p297 = scmp.eq.s32.totalorder %s24, 3
      %p298 = por %p296, %p297
      %p299 = scmp.ne.s32.totalorder %s291, %s294
      %p300 = scmp.eq.s32.totalorder %s24, 0
      %p301 = por %p299, %p300
      %p302 = scmp.ne.s32.totalorder %s291, %s294
      %p303 = scmp.eq.s32.totalorder %s29, 3
      %p304 = por %p302, %p303
      %p305 = scmp.ne.s32.totalorder %s294, %s295
      %p306 = scmp.eq.s32.totalorder %s29, 0
      %p307 = por %p305, %p306
      %p308 = scmp.ne.s32.totalorder %s294, %s295
      %p309 = scmp.eq.s32.totalorder %s30, 3
      %p310 = por %p308, %p309
      %p312 = scmp.ne.s32.totalorder %s295, %s311
      %p313 = scmp.eq.s32.totalorder %s30, 0
      %p314 = por %p312, %p313
      %s315 = ssub.s32 %s32, %s39
      %p316 = scmp.eq.s32.totalorder %s315, 0
      %s318 = sadd.s32 %s317, 1
      %s319 = scalar_select %p316, %s317, %s318
      %p322 = pneg %p316
      %p323 = scmp.eq.s32.totalorder %s24, 3
      %p324 = por %p322, %p323
      %p325 = scmp.ne.s32.totalorder %s317, %s320
      %p326 = scmp.eq.s32.totalorder %s24, 0
      %p327 = por %p325, %p326
      %p328 = scmp.ne.s32.totalorder %s317, %s320
      %p329 = scmp.eq.s32.totalorder %s29, 3
      %p330 = por %p328, %p329
      %p331 = scmp.ne.s32.totalorder %s320, %s321
      %p332 = scmp.eq.s32.totalorder %s29, 0
      %p333 = por %p331, %p332
      %p334 = scmp.ne.s32.totalorder %s320, %s321
      %p335 = scmp.eq.s32.totalorder %s30, 3
      %p336 = por %p334, %p335
      %p338 = scmp.ne.s32.totalorder %s321, %s337
      %p339 = scmp.eq.s32.totalorder %s30, 0
      %p340 = por %p338, %p339
      %s342 = sadd.s32 %s341, 1
      %p345 = scmp.eq.s32.totalorder %s24, 3
      %p346 = scmp.ne.s32.totalorder %s341, %s343
      %p347 = scmp.eq.s32.totalorder %s24, 0
      %p348 = por %p346, %p347
      %p349 = scmp.ne.s32.totalorder %s341, %s343
      %p350 = scmp.eq.s32.totalorder %s29, 3
      %p351 = por %p349, %p350
      %p352 = scmp.ne.s32.totalorder %s343, %s344
      %p353 = scmp.eq.s32.totalorder %s29, 0
      %p354 = por %p352, %p353
      %p355 = scmp.ne.s32.totalorder %s343, %s344
      %p356 = scmp.eq.s32.totalorder %s30, 3
      %p357 = por %p355, %p356
      %p359 = scmp.ne.s32.totalorder %s344, %s358
      %p360 = scmp.eq.s32.totalorder %s30, 0
      %p361 = por %p359, %p360
      %s363 = sadd.s32 %s362, 1
      %p366 = scmp.eq.s32.totalorder %s24, 3
      %p367 = scmp.ne.s32.totalorder %s362, %s364
      %p368 = scmp.eq.s32.totalorder %s24, 0
      %p369 = por %p367, %p368
      %p370 = scmp.ne.s32.totalorder %s362, %s364
      %p371 = scmp.eq.s32.totalorder %s29, 3
      %p372 = por %p370, %p371
      %p373 = scmp.ne.s32.totalorder %s364, %s365
      %p374 = scmp.eq.s32.totalorder %s29, 0
      %p375 = por %p373, %p374
      %p376 = scmp.ne.s32.totalorder %s364, %s365
      %p377 = scmp.eq.s32.totalorder %s30, 3
      %p378 = por %p376, %p377
      %p380 = scmp.ne.s32.totalorder %s365, %s379
      %p381 = scmp.eq.s32.totalorder %s30, 0
      %p382 = por %p380, %p381
      %s384 = sadd.s32 %s383, 1
      %p387 = scmp.eq.s32.totalorder %s24, 3
      %p388 = scmp.ne.s32.totalorder %s383, %s385
      %p389 = scmp.eq.s32.totalorder %s24, 0
      %p390 = por %p388, %p389
      %p391 = scmp.ne.s32.totalorder %s383, %s385
      %p392 = scmp.eq.s32.totalorder %s29, 3
      %p393 = por %p391, %p392
      %p394 = scmp.ne.s32.totalorder %s385, %s386
      %p395 = scmp.eq.s32.totalorder %s29, 0
      %p396 = por %p394, %p395
      %p397 = scmp.ne.s32.totalorder %s385, %s386
      %p398 = scmp.eq.s32.totalorder %s30, 3
      %p399 = por %p397, %p398
      %p401 = scmp.ne.s32.totalorder %s386, %s400
      %p402 = scmp.eq.s32.totalorder %s30, 0
      %p403 = por %p401, %p402
      %s404 = ssub.s32 %s31, %s43
      %p405 = scmp.eq.s32.totalorder %s404, 0
      %s407 = sadd.s32 %s406, 1
      %s408 = scalar_select %p405, %s406, %s407
      %p411 = pneg %p405
      %p412 = scmp.eq.s32.totalorder %s24, 3
      %p413 = por %p411, %p412
      %p414 = scmp.ne.s32.totalorder %s406, %s409
      %p415 = scmp.eq.s32.totalorder %s24, 0
      %p416 = por %p414, %p415
      %p417 = scmp.ne.s32.totalorder %s406, %s409
      %p418 = scmp.eq.s32.totalorder %s29, 3
      %p419 = por %p417, %p418
      %p420 = scmp.ne.s32.totalorder %s409, %s410
      %p421 = scmp.eq.s32.totalorder %s29, 0
      %p422 = por %p420, %p421
      %p423 = scmp.ne.s32.totalorder %s409, %s410
      %p424 = scmp.eq.s32.totalorder %s30, 3
      %p425 = por %p423, %p424
      %p427 = scmp.ne.s32.totalorder %s410, %s426
      %p428 = scmp.eq.s32.totalorder %s30, 0
      %p429 = por %p427, %p428
      %p430 = scmp.le.s32.totalorder 1, %s24
      %p431 = scmp.lt.s32.totalorder %s24, 5
      %p432 = pnand %p430, %p431
      %p433 = pneg %p432
      // Predicated region
      $region9: #{gt_forward.1} parent=5 // pred_check
        _
      $region10: #{gt_forward.1} parent=5 // pred_check_branch
        %435 = sbr.rel (%p432) target = $region12
      $region11: #{gt_forward.1} parent=5 // pred_region
        %s436 = ssub.s32 %s24, 1
        // Predicated region
        $region13: #{gt_forward.1} parent=11 // pred_check
          %p437 = pneg %p135
        $region14: #{gt_forward.1} parent=11 // pred_check_branch
          %439 = sbr.rel (%p437) target = $region16
        $region15: #{gt_forward.1} parent=11 // pred_region
          _
        $region16: #{gt_forward.1} parent=11 // pred_fallthru
          _
        // Predicated region
        $region17: #{gt_forward.1} parent=11 // pred_check
          %p440 = pneg %p156
        $region18: #{gt_forward.1} parent=11 // pred_check_branch
          %442 = sbr.rel (%p440) target = $region20
        $region19: #{gt_forward.1} parent=11 // pred_region
          _
        $region20: #{gt_forward.1} parent=11 // pred_fallthru
          _
        // Predicated region
        $region21: #{gt_forward.1} parent=11 // pred_check
          %p443 = pneg %p177
        $region22: #{gt_forward.1} parent=11 // pred_check_branch
          %445 = sbr.rel (%p443) target = $region24
        $region23: #{gt_forward.1} parent=11 // pred_region
          _
        $region24: #{gt_forward.1} parent=11 // pred_fallthru
          _
        // Predicated region
        $region25: #{gt_forward.1} parent=11 // pred_check
          %p446 = pneg %p354
        $region26: #{gt_forward.1} parent=11 // pred_check_branch
          %448 = sbr.rel (%p446) target = $region28
        $region27: #{gt_forward.1} parent=11 // pred_region
          _
        $region28: #{gt_forward.1} parent=11 // pred_fallthru
          _
        // Predicated region
        $region29: #{gt_forward.1} parent=11 // pred_check
          %p449 = pneg %p375
        $region30: #{gt_forward.1} parent=11 // pred_check_branch
          %451 = sbr.rel (%p449) target = $region32
        $region31: #{gt_forward.1} parent=11 // pred_region
          _
        $region32: #{gt_forward.1} parent=11 // pred_fallthru
          _
        // Predicated region
        $region33: #{gt_forward.1} parent=11 // pred_check
          %p452 = pneg %p396
        $region34: #{gt_forward.1} parent=11 // pred_check_branch
          %454 = sbr.rel (%p452) target = $region36
        $region35: #{gt_forward.1} parent=11 // pred_region
          _
        $region36: #{gt_forward.1} parent=11 // pred_fallthru
          _
      $region12: #{gt_forward.1} parent=5 // pred_fallthru
        _
      %p455 = scmp.lt.s32.totalorder %s24, 4
      // Predicated region
      $region37: #{gt_forward.1} parent=5 // pred_check
        %p456 = pneg %p455
      $region38: #{gt_forward.1} parent=5 // pred_check_branch
        %458 = sbr.rel (%p456) target = $region40
      $region39: #{gt_forward.1} parent=5 // pred_region
        // Predicated region
        $region41: #{gt_forward.1} parent=39 // pred_check
          %p459 = pneg %p56
        $region42: #{gt_forward.1} parent=39 // pred_check_branch
          %461 = sbr.rel (%p459) target = $region44
        $region43: #{gt_forward.1} parent=39 // pred_region
          %s462 = smul.u32 2, %s31
          %p463 = scmp.lt.s32.totalorder %s462, 3
          %s464 = scalar_select %p463, %s462, 3
          %s465 = smul.addr %s464, 8
          %s466 = scalar_lea.vmem %s0, %s465
          %s467 = smul.u32 2, %s31
        $region44: #{gt_forward.1} parent=39 // pred_fallthru
          _
        // Predicated region
        $region45: #{gt_forward.1} parent=39 // pred_check
          %p468 = pneg %p82
        $region46: #{gt_forward.1} parent=39 // pred_check_branch
          %470 = sbr.rel (%p468) target = $region48
        $region47: #{gt_forward.1} parent=39 // pred_region
          %s471 = smul.u32 2, %s31
          %p472 = scmp.lt.s32.totalorder %s471, 3
          %s473 = scalar_select %p472, %s471, 3
          %s474 = smul.addr %s473, 8
          %s475 = scalar_lea.vmem %s1, %s474
          %s476 = smul.u32 2, %s31
        $region48: #{gt_forward.1} parent=39 // pred_fallthru
          _
        // Predicated region
        $region49: #{gt_forward.1} parent=39 // pred_check
          %p477 = pneg %p108
        $region50: #{gt_forward.1} parent=39 // pred_check_branch
          %479 = sbr.rel (%p477) target = $region52
        $region51: #{gt_forward.1} parent=39 // pred_region
          %s480 = smul.u32 2, %s31
          %p481 = scmp.lt.s32.totalorder %s480, 3
          %s482 = scalar_select %p481, %s480, 3
          %s483 = smul.addr %s482, 8
          %s484 = smul.addr %s483, 8
          %s485 = scalar_lea.vmem %s2, %s484
          %s486 = smul.u32 2, %s31
        $region52: #{gt_forward.1} parent=39 // pred_fallthru
          _
        // Predicated region
        $region53: #{gt_forward.1} parent=39 // pred_check
          %p487 = pneg %p197
        $region54: #{gt_forward.1} parent=39 // pred_check_branch
          %489 = sbr.rel (%p487) target = $region56
        $region55: #{gt_forward.1} parent=39 // pred_region
          %p490 = scmp.lt.s32.totalorder %s32, 1
          %s491 = scalar_select %p490, %s32, 1
          %s492 = smul.addr %s491, 2
          %s493 = smul.addr %s492, 4
          %s494 = scalar_lea.vmem %s6, %s493
        $region56: #{gt_forward.1} parent=39 // pred_fallthru
          _
        // Predicated region
        $region57: #{gt_forward.1} parent=39 // pred_check
          %p495 = pneg %p223
        $region58: #{gt_forward.1} parent=39 // pred_check_branch
          %497 = sbr.rel (%p495) target = $region60
        $region59: #{gt_forward.1} parent=39 // pred_region
          %p498 = scmp.lt.s32.totalorder %s32, 1
          %s499 = scalar_select %p498, %s32, 1
          %s500 = smul.addr %s499, 2
          %s501 = smul.addr %s500, 8
          %s502 = scalar_lea.vmem %s7, %s501
        $region60: #{gt_forward.1} parent=39 // pred_fallthru
          _
        // Predicated region
        $region61: #{gt_forward.1} parent=39 // pred_check
          %p503 = pneg %p249
        $region62: #{gt_forward.1} parent=39 // pred_check_branch
          %505 = sbr.rel (%p503) target = $region64
        $region63: #{gt_forward.1} parent=39 // pred_region
          %p506 = scmp.lt.s32.totalorder %s32, 1
          %s507 = scalar_select %p506, %s32, 1
          %s508 = smul.addr %s507, 16
          %s509 = smul.addr %s508, 4
          %s510 = scalar_lea.vmem %s8, %s509
        $region64: #{gt_forward.1} parent=39 // pred_fallthru
          _
        // Predicated region
        $region65: #{gt_forward.1} parent=39 // pred_check
          %p511 = pneg %p275
        $region66: #{gt_forward.1} parent=39 // pred_check_branch
          %513 = sbr.rel (%p511) target = $region68
        $region67: #{gt_forward.1} parent=39 // pred_region
          %p514 = scmp.lt.s32.totalorder %s32, 1
          %s515 = scalar_select %p514, %s32, 1
          %s516 = smul.addr %s515, 4
          %s517 = smul.addr %s516, 4
          %s518 = scalar_lea.vmem %s9, %s517
        $region68: #{gt_forward.1} parent=39 // pred_fallthru
          _
        // Predicated region
        $region69: #{gt_forward.1} parent=39 // pred_check
          %p519 = pneg %p301
        $region70: #{gt_forward.1} parent=39 // pred_check_branch
          %521 = sbr.rel (%p519) target = $region72
        $region71: #{gt_forward.1} parent=39 // pred_region
          %p522 = scmp.lt.s32.totalorder %s32, 1
          %s523 = scalar_select %p522, %s32, 1
          %s524 = scalar_lea.vmem %s10, %s523
        $region72: #{gt_forward.1} parent=39 // pred_fallthru
          _
        // Predicated region
        $region73: #{gt_forward.1} parent=39 // pred_check
          %p525 = pneg %p327
        $region74: #{gt_forward.1} parent=39 // pred_check_branch
          %527 = sbr.rel (%p525) target = $region76
        $region75: #{gt_forward.1} parent=39 // pred_region
          %p528 = scmp.lt.s32.totalorder %s32, 1
          %s529 = scalar_select %p528, %s32, 1
          %s530 = smul.addr %s529, 8
          %s531 = smul.addr %s530, 4
          %s532 = scalar_lea.vmem %s11, %s531
        $region76: #{gt_forward.1} parent=39 // pred_fallthru
          _
      $region40: #{gt_forward.1} parent=5 // pred_fallthru
        _
      %p533 = scmp.le.s32.totalorder 1, %s24
      %p534 = scmp.lt.s32.totalorder %s24, 5
      %p535 = pnand %p533, %p534
      %p536 = pneg %p535
      // Predicated region
      $region77: #{gt_forward.1} parent=5 // pred_check
        _
      $region78: #{gt_forward.1} parent=5 // pred_check_branch
        %538 = sbr.rel (%p535) target = $region80
      $region79: #{gt_forward.1} parent=5 // pred_region
        %s539 = ssub.s32 %s24, 1
        %s540 = smul.u32 2, %s33
        %p541 = scmp.lt.s32.totalorder %s540, 3
        %s542 = scalar_select %p541, %s540, 3
        %s543 = smul.addr %s542, 8
        %s544 = scalar_lea.vmem %s0, %s543
        %p545 = pneg %p62
        %p546 = pneg %p59
        %s547 = smul.u32 2, %s33
        %p548 = scmp.lt.s32.totalorder %s547, 3
        %s549 = scalar_select %p548, %s547, 3
        %s550 = smul.addr %s549, 8
        %s551 = scalar_lea.vmem %s1, %s550
        %p552 = pneg %p88
        %p553 = pneg %p85
        %s554 = smul.u32 2, %s33
        %p555 = scmp.lt.s32.totalorder %s554, 3
        %s556 = scalar_select %p555, %s554, 3
        %s557 = smul.addr %s556, 8
        %s558 = smul.addr %s557, 8
        %s559 = scalar_lea.vmem %s2, %s558
        %p560 = pneg %p114
        %p561 = pneg %p111
        %p562 = pneg %p135
        %p563 = pneg %p132
        %p564 = pneg %p156
        %p565 = pneg %p153
        %p566 = pneg %p177
        %p567 = pneg %p174
        %p568 = scmp.lt.s32.totalorder %s34, 1
        %s569 = scalar_select %p568, %s34, 1
        %s570 = smul.addr %s569, 2
        %s571 = smul.addr %s570, 4
        %s572 = scalar_lea.vmem %s6, %s571
        %p573 = pneg %p203
        %p574 = pneg %p200
        %p575 = scmp.lt.s32.totalorder %s34, 1
        %s576 = scalar_select %p575, %s34, 1
        %s577 = smul.addr %s576, 2
        %s578 = smul.addr %s577, 8
        %s579 = scalar_lea.vmem %s7, %s578
        %p580 = pneg %p229
        %p581 = pneg %p226
        %p582 = scmp.lt.s32.totalorder %s34, 1
        %s583 = scalar_select %p582, %s34, 1
        %s584 = smul.addr %s583, 16
        %s585 = smul.addr %s584, 4
        %s586 = scalar_lea.vmem %s8, %s585
        %p587 = pneg %p255
        %p588 = pneg %p252
        %p589 = scmp.lt.s32.totalorder %s34, 1
        %s590 = scalar_select %p589, %s34, 1
        %s591 = smul.addr %s590, 4
        %s592 = smul.addr %s591, 4
        %s593 = scalar_lea.vmem %s9, %s592
        %p594 = pneg %p281
        %p595 = pneg %p278
        %p596 = scmp.lt.s32.totalorder %s34, 1
        %s597 = scalar_select %p596, %s34, 1
        %s598 = scalar_lea.vmem %s10, %s597
        %p599 = pneg %p307
        %p600 = pneg %p304
        %p601 = scmp.lt.s32.totalorder %s34, 1
        %s602 = scalar_select %p601, %s34, 1
        %s603 = smul.addr %s602, 8
        %s604 = smul.addr %s603, 4
        %s605 = scalar_lea.vmem %s11, %s604
        %p606 = pneg %p333
        %p607 = pneg %p330
        %p608 = pneg %p354
        %p609 = pneg %p351
        %p610 = pneg %p375
        %p611 = pneg %p372
        %p612 = pneg %p396
        %p613 = pneg %p393
        %p614 = pneg %p422
        %p615 = pneg %p419
        %s616 = sand.u32 %s409, 1
        %s617 = scalar_lea.sflag [#allocation4], %s616
        %s618 = sand.u32 %s409, 1
        %s619 = smul.addr %s618, 2
        %s620 = scalar_lea.vmem [#allocation3], %s619
        %s621 = smul.u32 2, %s33
        %p622 = scmp.lt.s32.totalorder %s621, 3
        %s623 = scalar_select %p622, %s621, 3
        %s624 = smul.addr %s623, 8
        %s625 = scalar_lea.vmem %s0, %s624
        %s626 = smul.u32 2, %s33
        %s627 = smul.u32 2, %s33
        %p628 = scmp.lt.s32.totalorder %s627, 3
        %s629 = scalar_select %p628, %s627, 3
        %s630 = smul.addr %s629, 8
        %s631 = scalar_lea.vmem %s1, %s630
        %s632 = smul.u32 2, %s33
        %s633 = smul.u32 2, %s33
        %p634 = scmp.lt.s32.totalorder %s633, 3
        %s635 = scalar_select %p634, %s633, 3
        %s636 = smul.addr %s635, 8
        %s637 = smul.addr %s636, 8
        %s638 = scalar_lea.vmem %s2, %s637
        %s639 = smul.u32 2, %s33
        %p640 = scmp.lt.s32.totalorder %s34, 1
        %s641 = scalar_select %p640, %s34, 1
        %s642 = smul.addr %s641, 2
        %s643 = smul.addr %s642, 4
        %s644 = scalar_lea.vmem %s6, %s643
        %p645 = scmp.lt.s32.totalorder %s34, 1
        %s646 = scalar_select %p645, %s34, 1
        %s647 = smul.addr %s646, 2
        %s648 = smul.addr %s647, 8
        %s649 = scalar_lea.vmem %s7, %s648
        %p650 = scmp.lt.s32.totalorder %s34, 1
        %s651 = scalar_select %p650, %s34, 1
        %s652 = smul.addr %s651, 16
        %s653 = smul.addr %s652, 4
        %s654 = scalar_lea.vmem %s8, %s653
        %p655 = scmp.lt.s32.totalorder %s34, 1
        %s656 = scalar_select %p655, %s34, 1
        %s657 = smul.addr %s656, 4
        %s658 = smul.addr %s657, 4
        %s659 = scalar_lea.vmem %s9, %s658
        %p660 = scmp.lt.s32.totalorder %s34, 1
        %s661 = scalar_select %p660, %s34, 1
        %s662 = scalar_lea.vmem %s10, %s661
        %p663 = scmp.lt.s32.totalorder %s34, 1
        %s664 = scalar_select %p663, %s34, 1
        %s665 = smul.addr %s664, 8
        %s666 = smul.addr %s665, 4
        %s667 = scalar_lea.vmem %s11, %s666
        %s668 = smul.u32 2, %s33
        %p670 = scmp.eq.s32.totalorder %s34, 0
        // Predicated region
        $region81: #{gt_forward.1} parent=79 // pred_check
          %p671 = pneg %p670
        $region82: #{gt_forward.1} parent=79 // pred_check_branch
          %673 = sbr.rel (%p671) target = $region84
        $region83: #{gt_forward.1} parent=79 // pred_region
          %v674 = vld [vmem:[%s625] sm:$0xff]
          %v675 = vld [vmem:[%s625 + $0x8] sm:$0xff]
          %v676 = vld [vmem:[%s3] sm:$0xff]
          %v677 = vld [vmem:[%s3 + $0x8] sm:$0xff]
          %v678 = vld [vmem:[%s4] sm:$0x1]
          %v680 = vlaneseq
          %v681 = vshrl.u32 %v680, 7
          %v682 = vsub.s32 0, %v681
          %v683 = vrot.slane %v678, %v682
          %vm685 = vcmask 130048
          %v687 = vsel %vm685, %v674, 0
          %v690 = vsel %vm685, %v675, 0
          %692 = vmatprep.subr.mxu0 0.0
          %693 = vmatpush1.msra.mxu0 0.0
          %694 = vmatprep.subr.mxu0 0.0
          %695 = vmatpush1.msra.mxu0 0.0
          %696 = vmatprep.subr.mxu0 0.0
          %697 = vmatpush1.msra.mxu0 0.0
          %698 = vmatprep.subr.mxu0 0.0
          %699 = vmatpush1.msra.mxu0 0.0
          %700 = vmatprep.subr.mxu0 0.0
          %701 = vmatpush1.msra.mxu0 0.0
          %702 = vmatprep.subr.mxu0 0.0
          %703 = vmatpush1.msra.mxu0 0.0
          %704 = vmatprep.subr.mxu0 0.0
          %705 = vmatpush1.msra.mxu0 0.0
          %706 = vmatprep.subr.mxu0 0.0
          %707 = vmatpush1.msra.mxu0 0.0
          %708 = vmatprep.subr.mxu0 0.0
          %709 = vmatpush1.msra.mxu0 0.0
          %710 = vmatprep.subr.mxu0 0.0
          %711 = vmatpush1.msra.mxu0 0.0
          %712 = vmatprep.subr.mxu0 0.0
          %713 = vmatpush1.msra.mxu0 0.0
          %714 = vmatprep.subr.mxu0 0.0
          %715 = vmatpush1.msra.mxu0 0.0
          %716 = vmatprep.subr.mxu0 0.0
          %717 = vmatpush1.msra.mxu0 0.0
          %718 = vmatprep.subr.mxu0 0.0
          %719 = vmatpush1.msra.mxu0 0.0
          %720 = vmatprep.subr.mxu0 0.0
          %721 = vmatpush1.msra.mxu0 %v677
          %722 = vmatprep.subr.mxu0 0.0
          %723 = vmatpush1.msra.mxu0 %v676
          %724 = vmatprep.subr.mxu0 0.0
          %725 = vmatpush2.msra.mxu0 0.0
          %726 = vmatprep.subr.mxu0 0.0
          %727 = vmatpush2.msra.mxu0 0.0
          %728 = vmatprep.subr.mxu0 0.0
          %729 = vmatpush2.msra.mxu0 0.0
          %730 = vmatprep.subr.mxu0 0.0
          %731 = vmatpush2.msra.mxu0 0.0
          %732 = vmatprep.subr.mxu0 0.0
          %733 = vmatpush2.msra.mxu0 0.0
          %734 = vmatprep.subr.mxu0 0.0
          %735 = vmatpush2.msra.mxu0 0.0
          %736 = vmatprep.subr.mxu0 0.0
          %737 = vmatpush2.msra.mxu0 0.0
          %738 = vmatprep.subr.mxu0 0.0
          %739 = vmatpush2.msra.mxu0 0.0
          %740 = vmatprep.subr.mxu0 0.0
          %741 = vmatpush2.msra.mxu0 0.0
          %742 = vmatprep.subr.mxu0 0.0
          %743 = vmatpush2.msra.mxu0 0.0
          %744 = vmatprep.subr.mxu0 0.0
          %745 = vmatpush2.msra.mxu0 0.0
          %746 = vmatprep.subr.mxu0 0.0
          %747 = vmatpush2.msra.mxu0 0.0
          %748 = vmatprep.subr.mxu0 0.0
          %749 = vmatpush2.msra.mxu0 0.0
          %750 = vmatprep.subr.mxu0 0.0
          %751 = vmatpush2.msra.mxu0 0.0
          %752 = vmatprep.subr.mxu0 0.0
          %753 = vmatpush2.msra.mxu0 0.0
          %754 = vmatprep.subr.mxu0 0.0
          %755 = vmatpush2.msra.mxu0 0.0
          %756 = vmatprep.mubr.f32.mxu0 0.0
          %757 = vmatmul.mubr.f32.gmra.mxu0 %v687
          %v758 = vpop.f32.mrf.mxu0
          %v759 = vadd.f32 %v683, %v758
          %v760 = vpop.f32.mrf.mxu0
          %761 = vmatprep.mubr.f32.mxu0 0.0
          %762 = vmatmul.mubr.f32.gmra.mxu0 %v690
          %v763 = vpop.f32.mrf.mxu0
          %v764 = vadd.f32 %v683, %v763
          %v765 = vpop.f32.mrf.mxu0
          %766 = vdwg.mxu0
          %v767 = vld [vmem:[%s631] sm:$0xff]
          %v768 = vld [vmem:[%s631 + $0x8] sm:$0xff]
          %vm769 = vcmp.eq.s32.totalorder %v767, 6
          %vm770 = vcmp.eq.s32.totalorder %v768, 6
          %v771 = vld [vmem:[%s5] sm:$0x1]
          %v772 = vsel %vm769, 1, 0
          %v773 = vsel %vm770, 1, 0
          %774 = vset.pattern.permute.xlu0 0
          %775 = vperm.xlu0 %774, %v772
          %v776 = vpop.permute.xlu0 %775
          %777 = vset.pattern.permute.xlu0 0
          %778 = vperm.xlu0 %777, %v773
          %v779 = vpop.permute.xlu0 %778
          %vm780 = vcmp.eq.s32.totalorder %v776, 1
          %vm781 = vcmp.eq.s32.totalorder %v779, 1
          %v782 = vlaneseq
          %v783 = vshrl.u32 %v782, 7
          %v784 = vsub.s32 0, %v783
          %v785 = vrot.slane %v771, %v784
          %v786 = vsel %vm780, %v785, 0.0
          %v787 = vsel %vm781, %v785, 0.0
          %v788 = vadd.f32 %v759, %v786
          %v789 = vadd.f32 %v764, %v787
          %vm790 = vcmp.eq.s32.totalorder %v767, 7
          %vm791 = vcmp.eq.s32.totalorder %v768, 7
          %v792 = vld [vmem:[%s5 + $0x1] sm:$0x1]
          %v793 = vsel %vm790, 1, 0
          %v794 = vsel %vm791, 1, 0
          %795 = vset.pattern.permute.xlu0 0
          %796 = vperm.xlu0 %795, %v793
          %v797 = vpop.permute.xlu0 %796
          %798 = vset.pattern.permute.xlu0 0
          %799 = vperm.xlu0 %798, %v794
          %v800 = vpop.permute.xlu0 %799
          %vm801 = vcmp.eq.s32.totalorder %v797, 1
          %vm802 = vcmp.eq.s32.totalorder %v800, 1
          %v803 = vlaneseq
          %v804 = vshrl.u32 %v803, 7
          %v805 = vsub.s32 0, %v804
          %v806 = vrot.slane %v792, %v805
          %v807 = vsel %vm801, %v806, 0.0
          %v808 = vsel %vm802, %v806, 0.0
          %v809 = vadd.f32 %v788, %v807
          %v810 = vadd.f32 %v789, %v808
          %vm811 = vcmask 261120
          %812 = vst.msk [vmem:[#allocation2] sm:$0xff] %vm811, %v809
          %813 = vst.msk [vmem:[#allocation2 + $0x8] sm:$0xff] %vm811, %v810
        $region84: #{gt_forward.1} parent=79 // pred_fallthru
          _
        %v814 = vld [vmem:[#allocation2] sm:$0xff]
        %v815 = vld [vmem:[#allocation2 + $0x8] sm:$0xff]
        %v816 = vld [vmem:[%s649] sm:$0xff]
        %v817 = vld [vmem:[%s649 + $0x8] sm:$0x1]
        %v818 = vld [vmem:[%s638] sm:$0xff]
        %v819 = vld [vmem:[%s638 + $0x8] sm:$0xff]
        %v820 = vld [vmem:[%s638 + $0x10] sm:$0xff]
        %v821 = vld [vmem:[%s638 + $0x18] sm:$0xff]
        %v822 = vld [vmem:[%s638 + $0x20] sm:$0xff]
        %v823 = vld [vmem:[%s638 + $0x28] sm:$0xff]
        %v824 = vld [vmem:[%s638 + $0x30] sm:$0xff]
        %v825 = vld [vmem:[%s638 + $0x38] sm:$0xff]
        %v826 = vld [vmem:[%s638 + $0x40] sm:$0xff]
        %v827 = vld [vmem:[%s638 + $0x48] sm:$0xff]
        %v828 = vld [vmem:[%s638 + $0x50] sm:$0xff]
        %v829 = vld [vmem:[%s638 + $0x58] sm:$0xff]
        %v830 = vld [vmem:[%s638 + $0x60] sm:$0xff]
        %v831 = vld [vmem:[%s638 + $0x68] sm:$0xff]
        %v832 = vld [vmem:[%s638 + $0x70] sm:$0xff]
        %v833 = vld [vmem:[%s638 + $0x78] sm:$0xff]
        %v834 = vlaneseq
        %v835 = vand.u32 %v834, 127
        %v836 = vadd.s32 %v835, 128
        %837 = vset.pattern.permute.xlu0 0
        %838 = vperm.xlu0 %837, %v818
        %v839 = vpop.permute.xlu0 %838
        %840 = vset.pattern.permute.xlu0 0
        %841 = vperm.xlu0 %840, %v819
        %v842 = vpop.permute.xlu0 %841
        %843 = vset.pattern.permute.xlu0 0
        %844 = vperm.xlu0 %843, %v820
        %v845 = vpop.permute.xlu0 %844
        %846 = vset.pattern.permute.xlu0 0
        %847 = vperm.xlu0 %846, %v821
        %v848 = vpop.permute.xlu0 %847
        %849 = vset.pattern.permute.xlu0 0
        %850 = vperm.xlu0 %849, %v822
        %v851 = vpop.permute.xlu0 %850
        %852 = vset.pattern.permute.xlu0 0
        %853 = vperm.xlu0 %852, %v823
        %v854 = vpop.permute.xlu0 %853
        %855 = vset.pattern.permute.xlu0 0
        %856 = vperm.xlu0 %855, %v824
        %v857 = vpop.permute.xlu0 %856
        %858 = vset.pattern.permute.xlu0 0
        %859 = vperm.xlu0 %858, %v825
        %v860 = vpop.permute.xlu0 %859
        %861 = vset.pattern.permute.xlu0 0
        %862 = vperm.xlu0 %861, %v826
        %v863 = vpop.permute.xlu0 %862
        %864 = vset.pattern.permute.xlu0 0
        %865 = vperm.xlu0 %864, %v827
        %v866 = vpop.permute.xlu0 %865
        %867 = vset.pattern.permute.xlu0 0
        %868 = vperm.xlu0 %867, %v828
        %v869 = vpop.permute.xlu0 %868
        %870 = vset.pattern.permute.xlu0 0
        %871 = vperm.xlu0 %870, %v829
        %v872 = vpop.permute.xlu0 %871
        %873 = vset.pattern.permute.xlu0 0
        %874 = vperm.xlu0 %873, %v830
        %v875 = vpop.permute.xlu0 %874
        %876 = vset.pattern.permute.xlu0 0
        %877 = vperm.xlu0 %876, %v831
        %v878 = vpop.permute.xlu0 %877
        %879 = vset.pattern.permute.xlu0 0
        %880 = vperm.xlu0 %879, %v832
        %v881 = vpop.permute.xlu0 %880
        %882 = vset.pattern.permute.xlu0 0
        %883 = vperm.xlu0 %882, %v833
        %v884 = vpop.permute.xlu0 %883
        %vm885 = vcmp.eq.s32.totalorder %v839, %v835
        %vm886 = vcmp.eq.s32.totalorder %v839, %v836
        %vm887 = vcmp.eq.s32.totalorder %v842, %v835
        %vm888 = vcmp.eq.s32.totalorder %v842, %v836
        %vm889 = vcmp.eq.s32.totalorder %v845, %v835
        %vm890 = vcmp.eq.s32.totalorder %v845, %v836
        %vm891 = vcmp.eq.s32.totalorder %v848, %v835
        %vm892 = vcmp.eq.s32.totalorder %v848, %v836
        %vm893 = vcmp.eq.s32.totalorder %v851, %v835
        %vm894 = vcmp.eq.s32.totalorder %v851, %v836
        %vm895 = vcmp.eq.s32.totalorder %v854, %v835
        %vm896 = vcmp.eq.s32.totalorder %v854, %v836
        %vm897 = vcmp.eq.s32.totalorder %v857, %v835
        %vm898 = vcmp.eq.s32.totalorder %v857, %v836
        %vm899 = vcmp.eq.s32.totalorder %v860, %v835
        %vm900 = vcmp.eq.s32.totalorder %v860, %v836
        %vm901 = vcmp.eq.s32.totalorder %v863, %v835
        %vm902 = vcmp.eq.s32.totalorder %v863, %v836
        %vm903 = vcmp.eq.s32.totalorder %v866, %v835
        %vm904 = vcmp.eq.s32.totalorder %v866, %v836
        %vm905 = vcmp.eq.s32.totalorder %v869, %v835
        %vm906 = vcmp.eq.s32.totalorder %v869, %v836
        %vm907 = vcmp.eq.s32.totalorder %v872, %v835
        %vm908 = vcmp.eq.s32.totalorder %v872, %v836
        %vm909 = vcmp.eq.s32.totalorder %v875, %v835
        %vm910 = vcmp.eq.s32.totalorder %v875, %v836
        %vm911 = vcmp.eq.s32.totalorder %v878, %v835
        %vm912 = vcmp.eq.s32.totalorder %v878, %v836
        %vm913 = vcmp.eq.s32.totalorder %v881, %v835
        %vm914 = vcmp.eq.s32.totalorder %v881, %v836
        %vm915 = vcmp.eq.s32.totalorder %v884, %v835
        %vm916 = vcmp.eq.s32.totalorder %v884, %v836
        %vm917 = vcmask 261120
        %v918 = vsel %vm917, %v814, 0.0
        %919 = vadd.xlane.f32.xlu0 %v918
        %v920 = vpop.xlane.xlu0 %919
        %v921 = vsel %vm917, %v815, 0.0
        %922 = vadd.xlane.f32.xlu0 %v921
        %v923 = vpop.xlane.xlu0 %922
        %v924 = vrcp.pop 32.0
        %v925 = vmul.f32 %v920, %v924
        %v926 = vmul.f32 %v923, %v924
        %v927 = vsub.f32 %v814, %v925
        %v928 = vsub.f32 %v815, %v926
        %v929 = vmul.f32 %v927, %v927
        %v930 = vmul.f32 %v928, %v928
        %v931 = vsel %vm917, %v929, 0.0
        %932 = vadd.xlane.f32.xlu0 %v931
        %v933 = vpop.xlane.xlu0 %932
        %v934 = vsel %vm917, %v930, 0.0
        %935 = vadd.xlane.f32.xlu0 %v934
        %v936 = vpop.xlane.xlu0 %935
        %v937 = vmul.f32 %v933, %v924
        %v938 = vmul.f32 %v936, %v924
        %v939 = vadd.f32 %v937, 1e-05
        %v940 = vadd.f32 %v938, 1e-05
        %v941 = vrsqrt.pop %v939
        %v942 = vrsqrt.pop %v940
        %v943 = vmul.f32 %v927, %v941
        %v944 = vmul.f32 %v928, %v942
        %v945 = vlaneseq
        %v946 = vshrl.u32 %v945, 7
        %v947 = vsub.s32 0, %v946
        %v948 = vrot.slane %v816, %v947
        %v949 = vmul.f32 %v943, %v948
        %v950 = vmul.f32 %v944, %v948
        %v951 = vlaneseq
        %v952 = vshrl.u32 %v951, 7
        %v953 = vsub.s32 1, %v952
        %v954 = vrot.slane %v816, %v953
        %v955 = vadd.f32 %v949, %v954
        %v956 = vadd.f32 %v950, %v954
        %v957 = vpack.c.bf16 %v956, %v955
        %v958 = vld [vmem:[%s654] sm:$0xf]
        %v959 = vld [vmem:[%s654 + $0x4] sm:$0xf]
        %v960 = vld [vmem:[%s654 + $0x8] sm:$0xf]
        %v961 = vld [vmem:[%s654 + $0xc] sm:$0xf]
        %v962 = vlaneseq
        %v963 = vshrl.u32 %v962, 7
        %v964 = vsub.s32 2, %v963
        %v965 = vrot.slane %v816, %v964
        %v970 = vunpack.c.l.b16 %v958
        %v971 = vunpack.c.l.b16 %v959
        %v972 = vunpack.c.l.b16 %v960
        %v973 = vunpack.c.l.b16 %v961
        %v974 = vpack.c.b16 %v971, %v970
        %v975 = vpack.c.b16 %v973, %v972
        %v979 = vsel %vm917, %v957, 0
        %981 = vmatprep.subr.bf16.mxu0 0
        %982 = vmatpush1.bf16.msra.mxu0 0
        %983 = vmatprep.subr.bf16.mxu0 0
        %984 = vmatpush1.bf16.msra.mxu0 0
        %985 = vmatprep.subr.bf16.mxu0 0
        %986 = vmatpush1.bf16.msra.mxu0 0
        %987 = vmatprep.subr.bf16.mxu0 0
        %988 = vmatpush1.bf16.msra.mxu0 0
        %989 = vmatprep.subr.bf16.mxu0 0
        %990 = vmatpush1.bf16.msra.mxu0 0
        %991 = vmatprep.subr.bf16.mxu0 0
        %992 = vmatpush1.bf16.msra.mxu0 0
        %993 = vmatprep.subr.bf16.mxu0 0
        %994 = vmatpush1.bf16.msra.mxu0 %v975
        %995 = vmatprep.subr.bf16.mxu0 0
        %996 = vmatpush1.bf16.msra.mxu0 %v974
        %997 = vmatprep.subr.bf16.mxu0 0
        %998 = vmatpush2.bf16.msra.mxu0 0
        %999 = vmatprep.subr.bf16.mxu0 0
        %1000 = vmatpush2.bf16.msra.mxu0 0
        %1001 = vmatprep.subr.bf16.mxu0 0
        %1002 = vmatpush2.bf16.msra.mxu0 0
        %1003 = vmatprep.subr.bf16.mxu0 0
        %1004 = vmatpush2.bf16.msra.mxu0 0
        %1005 = vmatprep.subr.bf16.mxu0 0
        %1006 = vmatpush2.bf16.msra.mxu0 0
        %1007 = vmatprep.subr.bf16.mxu0 0
        %1008 = vmatpush2.bf16.msra.mxu0 0
        %1009 = vmatprep.subr.bf16.mxu0 0
        %1010 = vmatpush2.bf16.msra.mxu0 0
        %1011 = vmatprep.subr.bf16.mxu0 0
        %1012 = vmatpush2.bf16.msra.mxu0 0
        %1013 = vmatprep.mubr.bf16.mxu0 0
        %1014 = vmatmul.mubr.bf16.gmra.mxu0 %v979
        %v1015 = vpop.f32.mrf.mxu0
        %v1016 = vadd.f32 %v965, %v1015
        %v1017 = vpop.f32.mrf.mxu0
        %v1018 = vpop.f32.mrf.mxu0
        %v1019 = vadd.f32 %v965, %v1018
        %v1020 = vpop.f32.mrf.mxu0
        %1021 = vdwg.mxu0
        %v1022 = vmul.f32 %v1016, 0.35355338
        %v1023 = vmul.f32 %v1019, 0.35355338
        %s1024 = scalar_lea.vmem %s654, 16
        %v1025 = vld [vmem:[%s1024] sm:$0xf]
        %v1026 = vld [vmem:[%s1024 + $0x4] sm:$0xf]
        %v1027 = vld [vmem:[%s1024 + $0x8] sm:$0xf]
        %v1028 = vld [vmem:[%s1024 + $0xc] sm:$0xf]
        %v1029 = vlaneseq
        %v1030 = vshrl.u32 %v1029, 7
        %v1031 = vsub.s32 3, %v1030
        %v1032 = vrot.slane %v816, %v1031
        %v1037 = vunpack.c.l.b16 %v1025
        %v1038 = vunpack.c.l.b16 %v1026
        %v1039 = vunpack.c.l.b16 %v1027
        %v1040 = vunpack.c.l.b16 %v1028
        %v1041 = vpack.c.b16 %v1038, %v1037
        %v1042 = vpack.c.b16 %v1040, %v1039
        %1045 = vmatprep.subr.bf16.mxu0 0
        %1046 = vmatpush1.bf16.msra.mxu0 0
        %1047 = vmatprep.subr.bf16.mxu0 0
        %1048 = vmatpush1.bf16.msra.mxu0 0
        %1049 = vmatprep.subr.bf16.mxu0 0
        %1050 = vmatpush1.bf16.msra.mxu0 0
        %1051 = vmatprep.subr.bf16.mxu0 0
        %1052 = vmatpush1.bf16.msra.mxu0 0
        %1053 = vmatprep.subr.bf16.mxu0 0
        %1054 = vmatpush1.bf16.msra.mxu0 0
        %1055 = vmatprep.subr.bf16.mxu0 0
        %1056 = vmatpush1.bf16.msra.mxu0 0
        %1057 = vmatprep.subr.bf16.mxu0 0
        %1058 = vmatpush1.bf16.msra.mxu0 %v1042
        %1059 = vmatprep.subr.bf16.mxu0 0
        %1060 = vmatpush1.bf16.msra.mxu0 %v1041
        %1061 = vmatprep.subr.bf16.mxu0 0
        %1062 = vmatpush2.bf16.msra.mxu0 0
        %1063 = vmatprep.subr.bf16.mxu0 0
        %1064 = vmatpush2.bf16.msra.mxu0 0
        %1065 = vmatprep.subr.bf16.mxu0 0
        %1066 = vmatpush2.bf16.msra.mxu0 0
        %1067 = vmatprep.subr.bf16.mxu0 0
        %1068 = vmatpush2.bf16.msra.mxu0 0
        %1069 = vmatprep.subr.bf16.mxu0 0
        %1070 = vmatpush2.bf16.msra.mxu0 0
        %1071 = vmatprep.subr.bf16.mxu0 0
        %1072 = vmatpush2.bf16.msra.mxu0 0
        %1073 = vmatprep.subr.bf16.mxu0 0
        %1074 = vmatpush2.bf16.msra.mxu0 0
        %1075 = vmatprep.subr.bf16.mxu0 0
        %1076 = vmatpush2.bf16.msra.mxu0 0
        %1077 = vmatprep.mubr.bf16.mxu0 0
        %1078 = vmatmul.mubr.bf16.gmra.mxu0 %v979
        %v1079 = vpop.f32.mrf.mxu0
        %v1080 = vadd.f32 %v1032, %v1079
        %v1081 = vpop.f32.mrf.mxu0
        %v1082 = vpop.f32.mrf.mxu0
        %v1083 = vadd.f32 %v1032, %v1082
        %v1084 = vpop.f32.mrf.mxu0
        %1085 = vdwg.mxu0
        %s1086 = scalar_lea.vmem %s654, 32
        %v1087 = vld [vmem:[%s1086] sm:$0xf]
        %v1088 = vld [vmem:[%s1086 + $0x4] sm:$0xf]
        %v1089 = vld [vmem:[%s1086 + $0x8] sm:$0xf]
        %v1090 = vld [vmem:[%s1086 + $0xc] sm:$0xf]
        %v1091 = vlaneseq
        %v1092 = vshrl.u32 %v1091, 7
        %v1093 = vsub.s32 4, %v1092
        %v1094 = vrot.slane %v816, %v1093
        %v1099 = vunpack.c.l.b16 %v1087
        %v1100 = vunpack.c.l.b16 %v1088
        %v1101 = vunpack.c.l.b16 %v1089
        %v1102 = vunpack.c.l.b16 %v1090
        %v1103 = vpack.c.b16 %v1100, %v1099
        %v1104 = vpack.c.b16 %v1102, %v1101
        %1107 = vmatprep.subr.bf16.mxu0 0
        %1108 = vmatpush1.bf16.msra.mxu0 0
        %1109 = vmatprep.subr.bf16.mxu0 0
        %1110 = vmatpush1.bf16.msra.mxu0 0
        %1111 = vmatprep.subr.bf16.mxu0 0
        %1112 = vmatpush1.bf16.msra.mxu0 0
        %1113 = vmatprep.subr.bf16.mxu0 0
        %1114 = vmatpush1.bf16.msra.mxu0 0
        %1115 = vmatprep.subr.bf16.mxu0 0
        %1116 = vmatpush1.bf16.msra.mxu0 0
        %1117 = vmatprep.subr.bf16.mxu0 0
        %1118 = vmatpush1.bf16.msra.mxu0 0
        %1119 = vmatprep.subr.bf16.mxu0 0
        %1120 = vmatpush1.bf16.msra.mxu0 %v1104
        %1121 = vmatprep.subr.bf16.mxu0 0
        %1122 = vmatpush1.bf16.msra.mxu0 %v1103
        %1123 = vmatprep.subr.bf16.mxu0 0
        %1124 = vmatpush2.bf16.msra.mxu0 0
        %1125 = vmatprep.subr.bf16.mxu0 0
        %1126 = vmatpush2.bf16.msra.mxu0 0
        %1127 = vmatprep.subr.bf16.mxu0 0
        %1128 = vmatpush2.bf16.msra.mxu0 0
        %1129 = vmatprep.subr.bf16.mxu0 0
        %1130 = vmatpush2.bf16.msra.mxu0 0
        %1131 = vmatprep.subr.bf16.mxu0 0
        %1132 = vmatpush2.bf16.msra.mxu0 0
        %1133 = vmatprep.subr.bf16.mxu0 0
        %1134 = vmatpush2.bf16.msra.mxu0 0
        %1135 = vmatprep.subr.bf16.mxu0 0
        %1136 = vmatpush2.bf16.msra.mxu0 0
        %1137 = vmatprep.subr.bf16.mxu0 0
        %1138 = vmatpush2.bf16.msra.mxu0 0
        %1139 = vmatprep.mubr.bf16.mxu0 0
        %1140 = vmatmul.mubr.bf16.gmra.mxu0 %v979
        %v1141 = vpop.f32.mrf.mxu0
        %v1142 = vadd.f32 %v1094, %v1141
        %v1143 = vpop.f32.mrf.mxu0
        %v1144 = vpop.f32.mrf.mxu0
        %v1145 = vadd.f32 %v1094, %v1144
        %v1146 = vpop.f32.mrf.mxu0
        %1147 = vdwg.mxu0
        %v1148 = vld [vmem:[%s644] sm:$0xff]
        %v1150 = vlaneseq
        %v1151 = vshrl.u32 %v1150, 7
        %v1152 = vsub.s32 0, %v1151
        %v1153 = vrot.slane %v1148, %v1152
        %v1154 = vlaneseq
        %v1155 = vshrl.u32 %v1154, 7
        %v1156 = vsub.s32 4, %v1155
        %v1157 = vrot.slane %v1148, %v1156
        %v1160 = vlaneseq
        %v1161 = vshrl.u32 %v1160, 7
        %v1162 = vsub.s32 0, %v1161
        %v1163 = vrot.slane %v1153, %v1162
        %v1164 = vlaneseq
        %v1165 = vshrl.u32 %v1164, 7
        %v1166 = vsub.s32 0, %v1165
        %v1167 = vrot.slane %v1157, %v1166
        %v1168 = vsel %vm885, %v1163, 0.0
        %v1169 = vsel %vm886, %v1167, 0.0
        %v1170 = vsel %vm887, %v1163, 0.0
        %v1171 = vsel %vm888, %v1167, 0.0
        %v1172 = vsel %vm889, %v1163, 0.0
        %v1173 = vsel %vm890, %v1167, 0.0
        %v1174 = vsel %vm891, %v1163, 0.0
        %v1175 = vsel %vm892, %v1167, 0.0
        %v1176 = vsel %vm893, %v1163, 0.0
        %v1177 = vsel %vm894, %v1167, 0.0
        %v1178 = vsel %vm895, %v1163, 0.0
        %v1179 = vsel %vm896, %v1167, 0.0
        %v1180 = vsel %vm897, %v1163, 0.0
        %v1181 = vsel %vm898, %v1167, 0.0
        %v1182 = vsel %vm899, %v1163, 0.0
        %v1183 = vsel %vm900, %v1167, 0.0
        %v1184 = vsel %vm901, %v1163, 0.0
        %v1185 = vsel %vm902, %v1167, 0.0
        %v1186 = vsel %vm903, %v1163, 0.0
        %v1187 = vsel %vm904, %v1167, 0.0
        %v1188 = vsel %vm905, %v1163, 0.0
        %v1189 = vsel %vm906, %v1167, 0.0
        %v1190 = vsel %vm907, %v1163, 0.0
        %v1191 = vsel %vm908, %v1167, 0.0
        %v1192 = vsel %vm909, %v1163, 0.0
        %v1193 = vsel %vm910, %v1167, 0.0
        %v1194 = vsel %vm911, %v1163, 0.0
        %v1195 = vsel %vm912, %v1167, 0.0
        %v1196 = vsel %vm913, %v1163, 0.0
        %v1197 = vsel %vm914, %v1167, 0.0
        %v1198 = vsel %vm915, %v1163, 0.0
        %v1199 = vsel %vm916, %v1167, 0.0
        %v1200 = vadd.f32 %v1168, %v1169
        %1201 = vadd.xlane.f32.xlu0 %v1200
        %v1202 = vpop.xlane.xlu0 %1201
        %v1203 = vadd.f32 %v1170, %v1171
        %1204 = vadd.xlane.f32.xlu0 %v1203
        %v1205 = vpop.xlane.xlu0 %1204
        %v1206 = vadd.f32 %v1172, %v1173
        %1207 = vadd.xlane.f32.xlu0 %v1206
        %v1208 = vpop.xlane.xlu0 %1207
        %v1209 = vadd.f32 %v1174, %v1175
        %1210 = vadd.xlane.f32.xlu0 %v1209
        %v1211 = vpop.xlane.xlu0 %1210
        %v1212 = vadd.f32 %v1176, %v1177
        %1213 = vadd.xlane.f32.xlu0 %v1212
        %v1214 = vpop.xlane.xlu0 %1213
        %v1215 = vadd.f32 %v1178, %v1179
        %1216 = vadd.xlane.f32.xlu0 %v1215
        %v1217 = vpop.xlane.xlu0 %1216
        %v1218 = vadd.f32 %v1180, %v1181
        %1219 = vadd.xlane.f32.xlu0 %v1218
        %v1220 = vpop.xlane.xlu0 %1219
        %v1221 = vadd.f32 %v1182, %v1183
        %1222 = vadd.xlane.f32.xlu0 %v1221
        %v1223 = vpop.xlane.xlu0 %1222
        %v1224 = vadd.f32 %v1184, %v1185
        %1225 = vadd.xlane.f32.xlu0 %v1224
        %v1226 = vpop.xlane.xlu0 %1225
        %v1227 = vadd.f32 %v1186, %v1187
        %1228 = vadd.xlane.f32.xlu0 %v1227
        %v1229 = vpop.xlane.xlu0 %1228
        %v1230 = vadd.f32 %v1188, %v1189
        %1231 = vadd.xlane.f32.xlu0 %v1230
        %v1232 = vpop.xlane.xlu0 %1231
        %v1233 = vadd.f32 %v1190, %v1191
        %1234 = vadd.xlane.f32.xlu0 %v1233
        %v1235 = vpop.xlane.xlu0 %1234
        %v1236 = vadd.f32 %v1192, %v1193
        %1237 = vadd.xlane.f32.xlu0 %v1236
        %v1238 = vpop.xlane.xlu0 %1237
        %v1239 = vadd.f32 %v1194, %v1195
        %1240 = vadd.xlane.f32.xlu0 %v1239
        %v1241 = vpop.xlane.xlu0 %1240
        %v1242 = vadd.f32 %v1196, %v1197
        %1243 = vadd.xlane.f32.xlu0 %v1242
        %v1244 = vpop.xlane.xlu0 %1243
        %v1245 = vadd.f32 %v1198, %v1199
        %1246 = vadd.xlane.f32.xlu0 %v1245
        %v1247 = vpop.xlane.xlu0 %1246
        %v1256 = vlaneseq
        %v1257 = vshrl.u32 %v1256, 7
        %v1258 = vsub.s32 %v835, %v1257
        %v1259 = vrot.slane %v1202, %v1258
        %v1260 = vlaneseq
        %v1261 = vshrl.u32 %v1260, 7
        %v1262 = vsub.s32 %v835, %v1261
        %v1263 = vrot.slane %v1205, %v1262
        %v1264 = vlaneseq
        %v1265 = vshrl.u32 %v1264, 7
        %v1266 = vsub.s32 %v835, %v1265
        %v1267 = vrot.slane %v1208, %v1266
        %v1268 = vlaneseq
        %v1269 = vshrl.u32 %v1268, 7
        %v1270 = vsub.s32 %v835, %v1269
        %v1271 = vrot.slane %v1211, %v1270
        %v1272 = vlaneseq
        %v1273 = vshrl.u32 %v1272, 7
        %v1274 = vsub.s32 %v835, %v1273
        %v1275 = vrot.slane %v1214, %v1274
        %v1276 = vlaneseq
        %v1277 = vshrl.u32 %v1276, 7
        %v1278 = vsub.s32 %v835, %v1277
        %v1279 = vrot.slane %v1217, %v1278
        %v1280 = vlaneseq
        %v1281 = vshrl.u32 %v1280, 7
        %v1282 = vsub.s32 %v835, %v1281
        %v1283 = vrot.slane %v1220, %v1282
        %v1284 = vlaneseq
        %v1285 = vshrl.u32 %v1284, 7
        %v1286 = vsub.s32 %v835, %v1285
        %v1287 = vrot.slane %v1223, %v1286
        %vm1288 = vcmask 1041409
        %v1289 = vsel %vm1288, %v1263, %v1259
        %vm1290 = vcmask 1042434
        %v1291 = vsel %vm1290, %v1267, %v1289
        %vm1292 = vcmask 1043459
        %v1293 = vsel %vm1292, %v1271, %v1291
        %vm1294 = vcmask 1044484
        %v1295 = vsel %vm1294, %v1275, %v1293
        %vm1296 = vcmask 1045509
        %v1297 = vsel %vm1296, %v1279, %v1295
        %vm1298 = vcmask 1046534
        %v1299 = vsel %vm1298, %v1283, %v1297
        %vm1300 = vcmask 1047559
        %v1301 = vsel %vm1300, %v1287, %v1299
        %vm1303 = vcmask 64512
        %v1305 = vsel %vm1303, %v1022, 0
        %v1308 = vsel %vm1303, %v1080, 0
        %1310 = vmatprep.subr.mxu0 0.0
        %1311 = vmatpush1.xpose.msra.mxu0 0.0
        %1312 = vmatprep.subr.mxu0 0.0
        %1313 = vmatpush1.xpose.msra.mxu0 0.0
        %1314 = vmatprep.subr.mxu0 0.0
        %1315 = vmatpush1.xpose.msra.mxu0 0.0
        %1316 = vmatprep.subr.mxu0 0.0
        %1317 = vmatpush1.xpose.msra.mxu0 0.0
        %1318 = vmatprep.subr.mxu0 0.0
        %1319 = vmatpush1.xpose.msra.mxu0 0.0
        %1320 = vmatprep.subr.mxu0 0.0
        %1321 = vmatpush1.xpose.msra.mxu0 0.0
        %1322 = vmatprep.subr.mxu0 0.0
        %1323 = vmatpush1.xpose.msra.mxu0 0.0
        %1324 = vmatprep.subr.mxu0 0.0
        %1325 = vmatpush1.xpose.msra.mxu0 0.0
        %1326 = vmatprep.subr.mxu0 0.0
        %1327 = vmatpush1.xpose.msra.mxu0 0.0
        %1328 = vmatprep.subr.mxu0 0.0
        %1329 = vmatpush1.xpose.msra.mxu0 0.0
        %1330 = vmatprep.subr.mxu0 0.0
        %1331 = vmatpush1.xpose.msra.mxu0 0.0
        %1332 = vmatprep.subr.mxu0 0.0
        %1333 = vmatpush1.xpose.msra.mxu0 0.0
        %1334 = vmatprep.subr.mxu0 0.0
        %1335 = vmatpush1.xpose.msra.mxu0 0.0
        %1336 = vmatprep.subr.mxu0 0.0
        %1337 = vmatpush1.xpose.msra.mxu0 0.0
        %1338 = vmatprep.subr.mxu0 0.0
        %1339 = vmatpush1.xpose.msra.mxu0 0.0
        %1340 = vmatprep.subr.mxu0 0.0
        %1341 = vmatpush1.xpose.msra.mxu0 %v1308
        %1342 = vmatprep.subr.mxu0 0.0
        %1343 = vmatpush2.xpose.msra.mxu0 0.0
        %1344 = vmatprep.subr.mxu0 0.0
        %1345 = vmatpush2.xpose.msra.mxu0 0.0
        %1346 = vmatprep.subr.mxu0 0.0
        %1347 = vmatpush2.xpose.msra.mxu0 0.0
        %1348 = vmatprep.subr.mxu0 0.0
        %1349 = vmatpush2.xpose.msra.mxu0 0.0
        %1350 = vmatprep.subr.mxu0 0.0
        %1351 = vmatpush2.xpose.msra.mxu0 0.0
        %1352 = vmatprep.subr.mxu0 0.0
        %1353 = vmatpush2.xpose.msra.mxu0 0.0
        %1354 = vmatprep.subr.mxu0 0.0
        %1355 = vmatpush2.xpose.msra.mxu0 0.0
        %1356 = vmatprep.subr.mxu0 0.0
        %1357 = vmatpush2.xpose.msra.mxu0 0.0
        %1358 = vmatprep.subr.mxu0 0.0
        %1359 = vmatpush2.xpose.msra.mxu0 0.0
        %1360 = vmatprep.subr.mxu0 0.0
        %1361 = vmatpush2.xpose.msra.mxu0 0.0
        %1362 = vmatprep.subr.mxu0 0.0
        %1363 = vmatpush2.xpose.msra.mxu0 0.0
        %1364 = vmatprep.subr.mxu0 0.0
        %1365 = vmatpush2.xpose.msra.mxu0 0.0
        %1366 = vmatprep.subr.mxu0 0.0
        %1367 = vmatpush2.xpose.msra.mxu0 0.0
        %1368 = vmatprep.subr.mxu0 0.0
        %1369 = vmatpush2.xpose.msra.mxu0 0.0
        %1370 = vmatprep.subr.mxu0 0.0
        %1371 = vmatpush2.xpose.msra.mxu0 0.0
        %1372 = vmatprep.subr.mxu0 0.0
        %1373 = vmatpush2.xpose.msra.mxu0 0.0
        %1374 = vmatprep.mubr.f32.mxu0 0.0
        %1375 = vmatmul.mubr.f32.gmra.mxu0 %v1305
        %v1376 = vpop.f32.mrf.mxu0
        %v1377 = vadd.f32 %v1301, %v1376
        %v1378 = vpop.f32.mrf.mxu0
        %1379 = vdwg.mxu0
        %v1388 = vlaneseq
        %v1389 = vshrl.u32 %v1388, 7
        %v1390 = vsub.s32 %v835, %v1389
        %v1391 = vrot.slane %v1226, %v1390
        %v1392 = vlaneseq
        %v1393 = vshrl.u32 %v1392, 7
        %v1394 = vsub.s32 %v835, %v1393
        %v1395 = vrot.slane %v1229, %v1394
        %v1396 = vlaneseq
        %v1397 = vshrl.u32 %v1396, 7
        %v1398 = vsub.s32 %v835, %v1397
        %v1399 = vrot.slane %v1232, %v1398
        %v1400 = vlaneseq
        %v1401 = vshrl.u32 %v1400, 7
        %v1402 = vsub.s32 %v835, %v1401
        %v1403 = vrot.slane %v1235, %v1402
        %v1404 = vlaneseq
        %v1405 = vshrl.u32 %v1404, 7
        %v1406 = vsub.s32 %v835, %v1405
        %v1407 = vrot.slane %v1238, %v1406
        %v1408 = vlaneseq
        %v1409 = vshrl.u32 %v1408, 7
        %v1410 = vsub.s32 %v835, %v1409
        %v1411 = vrot.slane %v1241, %v1410
        %v1412 = vlaneseq
        %v1413 = vshrl.u32 %v1412, 7
        %v1414 = vsub.s32 %v835, %v1413
        %v1415 = vrot.slane %v1244, %v1414
        %v1416 = vlaneseq
        %v1417 = vshrl.u32 %v1416, 7
        %v1418 = vsub.s32 %v835, %v1417
        %v1419 = vrot.slane %v1247, %v1418
        %v1420 = vsel %vm1288, %v1395, %v1391
        %v1421 = vsel %vm1290, %v1399, %v1420
        %v1422 = vsel %vm1292, %v1403, %v1421
        %v1423 = vsel %vm1294, %v1407, %v1422
        %v1424 = vsel %vm1296, %v1411, %v1423
        %v1425 = vsel %vm1298, %v1415, %v1424
        %v1426 = vsel %vm1300, %v1419, %v1425
        %v1429 = vsel %vm1303, %v1023, 0
        %v1432 = vsel %vm1303, %v1083, 0
        %1434 = vmatprep.subr.mxu0 0.0
        %1435 = vmatpush1.xpose.msra.mxu0 0.0
        %1436 = vmatprep.subr.mxu0 0.0
        %1437 = vmatpush1.xpose.msra.mxu0 0.0
        %1438 = vmatprep.subr.mxu0 0.0
        %1439 = vmatpush1.xpose.msra.mxu0 0.0
        %1440 = vmatprep.subr.mxu0 0.0
        %1441 = vmatpush1.xpose.msra.mxu0 0.0
        %1442 = vmatprep.subr.mxu0 0.0
        %1443 = vmatpush1.xpose.msra.mxu0 0.0
        %1444 = vmatprep.subr.mxu0 0.0
        %1445 = vmatpush1.xpose.msra.mxu0 0.0
        %1446 = vmatprep.subr.mxu0 0.0
        %1447 = vmatpush1.xpose.msra.mxu0 0.0
        %1448 = vmatprep.subr.mxu0 0.0
        %1449 = vmatpush1.xpose.msra.mxu0 0.0
        %1450 = vmatprep.subr.mxu0 0.0
        %1451 = vmatpush1.xpose.msra.mxu0 0.0
        %1452 = vmatprep.subr.mxu0 0.0
        %1453 = vmatpush1.xpose.msra.mxu0 0.0
        %1454 = vmatprep.subr.mxu0 0.0
        %1455 = vmatpush1.xpose.msra.mxu0 0.0
        %1456 = vmatprep.subr.mxu0 0.0
        %1457 = vmatpush1.xpose.msra.mxu0 0.0
        %1458 = vmatprep.subr.mxu0 0.0
        %1459 = vmatpush1.xpose.msra.mxu0 0.0
        %1460 = vmatprep.subr.mxu0 0.0
        %1461 = vmatpush1.xpose.msra.mxu0 0.0
        %1462 = vmatprep.subr.mxu0 0.0
        %1463 = vmatpush1.xpose.msra.mxu0 0.0
        %1464 = vmatprep.subr.mxu0 0.0
        %1465 = vmatpush1.xpose.msra.mxu0 %v1432
        %1466 = vmatprep.subr.mxu0 0.0
        %1467 = vmatpush2.xpose.msra.mxu0 0.0
        %1468 = vmatprep.subr.mxu0 0.0
        %1469 = vmatpush2.xpose.msra.mxu0 0.0
        %1470 = vmatprep.subr.mxu0 0.0
        %1471 = vmatpush2.xpose.msra.mxu0 0.0
        %1472 = vmatprep.subr.mxu0 0.0
        %1473 = vmatpush2.xpose.msra.mxu0 0.0
        %1474 = vmatprep.subr.mxu0 0.0
        %1475 = vmatpush2.xpose.msra.mxu0 0.0
        %1476 = vmatprep.subr.mxu0 0.0
        %1477 = vmatpush2.xpose.msra.mxu0 0.0
        %1478 = vmatprep.subr.mxu0 0.0
        %1479 = vmatpush2.xpose.msra.mxu0 0.0
        %1480 = vmatprep.subr.mxu0 0.0
        %1481 = vmatpush2.xpose.msra.mxu0 0.0
        %1482 = vmatprep.subr.mxu0 0.0
        %1483 = vmatpush2.xpose.msra.mxu0 0.0
        %1484 = vmatprep.subr.mxu0 0.0
        %1485 = vmatpush2.xpose.msra.mxu0 0.0
        %1486 = vmatprep.subr.mxu0 0.0
        %1487 = vmatpush2.xpose.msra.mxu0 0.0
        %1488 = vmatprep.subr.mxu0 0.0
        %1489 = vmatpush2.xpose.msra.mxu0 0.0
        %1490 = vmatprep.subr.mxu0 0.0
        %1491 = vmatpush2.xpose.msra.mxu0 0.0
        %1492 = vmatprep.subr.mxu0 0.0
        %1493 = vmatpush2.xpose.msra.mxu0 0.0
        %1494 = vmatprep.subr.mxu0 0.0
        %1495 = vmatpush2.xpose.msra.mxu0 0.0
        %1496 = vmatprep.subr.mxu0 0.0
        %1497 = vmatpush2.xpose.msra.mxu0 0.0
        %1498 = vmatprep.mubr.f32.mxu0 0.0
        %1499 = vmatmul.mubr.f32.gmra.mxu0 %v1429
        %v1500 = vpop.f32.mrf.mxu0
        %v1501 = vadd.f32 %v1426, %v1500
        %v1502 = vpop.f32.mrf.mxu0
        %1503 = vdwg.mxu0
        %v1504 = vsel %vm1303, %v1377, -inf
        %1505 = vmax.xlane.f32.xlu0 %v1504
        %v1506 = vpop.xlane.xlu0 %1505
        %v1507 = vsel %vm1303, %v1501, -inf
        %1508 = vmax.xlane.f32.xlu0 %v1507
        %v1509 = vpop.xlane.xlu0 %1508
        %v1510 = vsub.f32 %v1377, %v1506
        %v1511 = vsub.f32 %v1501, %v1509
        %v1512 = vmul.f32 %v1510, 1.442695
        %v1513 = vpow.pop %v1512
        %v1514 = vmul.f32 %v1511, 1.442695
        %v1515 = vpow.pop %v1514
        %v1516 = vsel %vm1303, %v1513, 0.0
        %1517 = vadd.xlane.f32.xlu0 %v1516
        %v1518 = vpop.xlane.xlu0 %1517
        %v1519 = vsel %vm1303, %v1515, 0.0
        %1520 = vadd.xlane.f32.xlu0 %v1519
        %v1521 = vpop.xlane.xlu0 %1520
        %v1522 = vrcp.pop %v1518
        %v1523 = vrcp.pop %v1521
        %v1524 = vmul.f32 %v1513, %v1522
        %v1525 = vmul.f32 %v1515, %v1523
        %v1527 = vsel %vm1303, %v1524, 0
        %1529 = vmatprep.subr.mxu0 0.0
        %1530 = vmatpush1.msra.mxu0 0.0
        %1531 = vmatprep.subr.mxu0 0.0
        %1532 = vmatpush1.msra.mxu0 0.0
        %1533 = vmatprep.subr.mxu0 0.0
        %1534 = vmatpush1.msra.mxu0 0.0
        %1535 = vmatprep.subr.mxu0 0.0
        %1536 = vmatpush1.msra.mxu0 0.0
        %1537 = vmatprep.subr.mxu0 0.0
        %1538 = vmatpush1.msra.mxu0 0.0
        %1539 = vmatprep.subr.mxu0 0.0
        %1540 = vmatpush1.msra.mxu0 0.0
        %1541 = vmatprep.subr.mxu0 0.0
        %1542 = vmatpush1.msra.mxu0 0.0
        %1543 = vmatprep.subr.mxu0 0.0
        %1544 = vmatpush1.msra.mxu0 0.0
        %1545 = vmatprep.subr.mxu0 0.0
        %1546 = vmatpush1.msra.mxu0 0.0
        %1547 = vmatprep.subr.mxu0 0.0
        %1548 = vmatpush1.msra.mxu0 0.0
        %1549 = vmatprep.subr.mxu0 0.0
        %1550 = vmatpush1.msra.mxu0 0.0
        %1551 = vmatprep.subr.mxu0 0.0
        %1552 = vmatpush1.msra.mxu0 0.0
        %1553 = vmatprep.subr.mxu0 0.0
        %1554 = vmatpush1.msra.mxu0 0.0
        %1555 = vmatprep.subr.mxu0 0.0
        %1556 = vmatpush1.msra.mxu0 0.0
        %1557 = vmatprep.subr.mxu0 0.0
        %1558 = vmatpush1.msra.mxu0 0.0
        %1559 = vmatprep.subr.mxu0 0.0
        %1560 = vmatpush1.msra.mxu0 %v1142
        %1561 = vmatprep.subr.mxu0 0.0
        %1562 = vmatpush2.msra.mxu0 0.0
        %1563 = vmatprep.subr.mxu0 0.0
        %1564 = vmatpush2.msra.mxu0 0.0
        %1565 = vmatprep.subr.mxu0 0.0
        %1566 = vmatpush2.msra.mxu0 0.0
        %1567 = vmatprep.subr.mxu0 0.0
        %1568 = vmatpush2.msra.mxu0 0.0
        %1569 = vmatprep.subr.mxu0 0.0
        %1570 = vmatpush2.msra.mxu0 0.0
        %1571 = vmatprep.subr.mxu0 0.0
        %1572 = vmatpush2.msra.mxu0 0.0
        %1573 = vmatprep.subr.mxu0 0.0
        %1574 = vmatpush2.msra.mxu0 0.0
        %1575 = vmatprep.subr.mxu0 0.0
        %1576 = vmatpush2.msra.mxu0 0.0
        %1577 = vmatprep.subr.mxu0 0.0
        %1578 = vmatpush2.msra.mxu0 0.0
        %1579 = vmatprep.subr.mxu0 0.0
        %1580 = vmatpush2.msra.mxu0 0.0
        %1581 = vmatprep.subr.mxu0 0.0
        %1582 = vmatpush2.msra.mxu0 0.0
        %1583 = vmatprep.subr.mxu0 0.0
        %1584 = vmatpush2.msra.mxu0 0.0
        %1585 = vmatprep.subr.mxu0 0.0
        %1586 = vmatpush2.msra.mxu0 0.0
        %1587 = vmatprep.subr.mxu0 0.0
        %1588 = vmatpush2.msra.mxu0 0.0
        %1589 = vmatprep.subr.mxu0 0.0
        %1590 = vmatpush2.msra.mxu0 0.0
        %1591 = vmatprep.subr.mxu0 0.0
        %1592 = vmatpush2.msra.mxu0 0.0
        %1593 = vmatprep.mubr.f32.mxu0 0.0
        %1594 = vmatmul.mubr.f32.gmra.mxu0 %v1527
        %v1595 = vpop.f32.mrf.mxu0
        %v1596 = vadd.f32 0.0, %v1595
        %v1597 = vpop.f32.mrf.mxu0
        %1598 = vdwg.mxu0
        %v1600 = vsel %vm1303, %v1525, 0
        %1602 = vmatprep.subr.mxu0 0.0
        %1603 = vmatpush1.msra.mxu0 0.0
        %1604 = vmatprep.subr.mxu0 0.0
        %1605 = vmatpush1.msra.mxu0 0.0
        %1606 = vmatprep.subr.mxu0 0.0
        %1607 = vmatpush1.msra.mxu0 0.0
        %1608 = vmatprep.subr.mxu0 0.0
        %1609 = vmatpush1.msra.mxu0 0.0
        %1610 = vmatprep.subr.mxu0 0.0
        %1611 = vmatpush1.msra.mxu0 0.0
        %1612 = vmatprep.subr.mxu0 0.0
        %1613 = vmatpush1.msra.mxu0 0.0
        %1614 = vmatprep.subr.mxu0 0.0
        %1615 = vmatpush1.msra.mxu0 0.0
        %1616 = vmatprep.subr.mxu0 0.0
        %1617 = vmatpush1.msra.mxu0 0.0
        %1618 = vmatprep.subr.mxu0 0.0
        %1619 = vmatpush1.msra.mxu0 0.0
        %1620 = vmatprep.subr.mxu0 0.0
        %1621 = vmatpush1.msra.mxu0 0.0
        %1622 = vmatprep.subr.mxu0 0.0
        %1623 = vmatpush1.msra.mxu0 0.0
        %1624 = vmatprep.subr.mxu0 0.0
        %1625 = vmatpush1.msra.mxu0 0.0
        %1626 = vmatprep.subr.mxu0 0.0
        %1627 = vmatpush1.msra.mxu0 0.0
        %1628 = vmatprep.subr.mxu0 0.0
        %1629 = vmatpush1.msra.mxu0 0.0
        %1630 = vmatprep.subr.mxu0 0.0
        %1631 = vmatpush1.msra.mxu0 0.0
        %1632 = vmatprep.subr.mxu0 0.0
        %1633 = vmatpush1.msra.mxu0 %v1145
        %1634 = vmatprep.subr.mxu0 0.0
        %1635 = vmatpush2.msra.mxu0 0.0
        %1636 = vmatprep.subr.mxu0 0.0
        %1637 = vmatpush2.msra.mxu0 0.0
        %1638 = vmatprep.subr.mxu0 0.0
        %1639 = vmatpush2.msra.mxu0 0.0
        %1640 = vmatprep.subr.mxu0 0.0
        %1641 = vmatpush2.msra.mxu0 0.0
        %1642 = vmatprep.subr.mxu0 0.0
        %1643 = vmatpush2.msra.mxu0 0.0
        %1644 = vmatprep.subr.mxu0 0.0
        %1645 = vmatpush2.msra.mxu0 0.0
        %1646 = vmatprep.subr.mxu0 0.0
        %1647 = vmatpush2.msra.mxu0 0.0
        %1648 = vmatprep.subr.mxu0 0.0
        %1649 = vmatpush2.msra.mxu0 0.0
        %1650 = vmatprep.subr.mxu0 0.0
        %1651 = vmatpush2.msra.mxu0 0.0
        %1652 = vmatprep.subr.mxu0 0.0
        %1653 = vmatpush2.msra.mxu0 0.0
        %1654 = vmatprep.subr.mxu0 0.0
        %1655 = vmatpush2.msra.mxu0 0.0
        %1656 = vmatprep.subr.mxu0 0.0
        %1657 = vmatpush2.msra.mxu0 0.0
        %1658 = vmatprep.subr.mxu0 0.0
        %1659 = vmatpush2.msra.mxu0 0.0
        %1660 = vmatprep.subr.mxu0 0.0
        %1661 = vmatpush2.msra.mxu0 0.0
        %1662 = vmatprep.subr.mxu0 0.0
        %1663 = vmatpush2.msra.mxu0 0.0
        %1664 = vmatprep.subr.mxu0 0.0
        %1665 = vmatpush2.msra.mxu0 0.0
        %1666 = vmatprep.mubr.f32.mxu0 0.0
        %1667 = vmatmul.mubr.f32.gmra.mxu0 %v1600
        %v1668 = vpop.f32.mrf.mxu0
        %v1669 = vadd.f32 0.0, %v1668
        %v1670 = vpop.f32.mrf.mxu0
        %1671 = vdwg.mxu0
        %v1672 = vlaneseq
        %v1673 = vshrl.u32 %v1672, 7
        %v1674 = vsub.s32 1, %v1673
        %v1675 = vrot.slane %v1148, %v1674
        %v1676 = vlaneseq
        %v1677 = vshrl.u32 %v1676, 7
        %v1678 = vsub.s32 5, %v1677
        %v1679 = vrot.slane %v1148, %v1678
        %v1682 = vlaneseq
        %v1683 = vshrl.u32 %v1682, 7
        %v1684 = vsub.s32 1, %v1683
        %v1685 = vrot.slane %v1675, %v1684
        %v1686 = vlaneseq
        %v1687 = vshrl.u32 %v1686, 7
        %v1688 = vsub.s32 1, %v1687
        %v1689 = vrot.slane %v1679, %v1688
        %v1690 = vsel %vm885, %v1685, 0.0
        %v1691 = vsel %vm886, %v1689, 0.0
        %v1692 = vsel %vm887, %v1685, 0.0
        %v1693 = vsel %vm888, %v1689, 0.0
        %v1694 = vsel %vm889, %v1685, 0.0
        %v1695 = vsel %vm890, %v1689, 0.0
        %v1696 = vsel %vm891, %v1685, 0.0
        %v1697 = vsel %vm892, %v1689, 0.0
        %v1698 = vsel %vm893, %v1685, 0.0
        %v1699 = vsel %vm894, %v1689, 0.0
        %v1700 = vsel %vm895, %v1685, 0.0
        %v1701 = vsel %vm896, %v1689, 0.0
        %v1702 = vsel %vm897, %v1685, 0.0
        %v1703 = vsel %vm898, %v1689, 0.0
        %v1704 = vsel %vm899, %v1685, 0.0
        %v1705 = vsel %vm900, %v1689, 0.0
        %v1706 = vsel %vm901, %v1685, 0.0
        %v1707 = vsel %vm902, %v1689, 0.0
        %v1708 = vsel %vm903, %v1685, 0.0
        %v1709 = vsel %vm904, %v1689, 0.0
        %v1710 = vsel %vm905, %v1685, 0.0
        %v1711 = vsel %vm906, %v1689, 0.0
        %v1712 = vsel %vm907, %v1685, 0.0
        %v1713 = vsel %vm908, %v1689, 0.0
        %v1714 = vsel %vm909, %v1685, 0.0
        %v1715 = vsel %vm910, %v1689, 0.0
        %v1716 = vsel %vm911, %v1685, 0.0
        %v1717 = vsel %vm912, %v1689, 0.0
        %v1718 = vsel %vm913, %v1685, 0.0
        %v1719 = vsel %vm914, %v1689, 0.0
        %v1720 = vsel %vm915, %v1685, 0.0
        %v1721 = vsel %vm916, %v1689, 0.0
        %v1722 = vadd.f32 %v1690, %v1691
        %1723 = vadd.xlane.f32.xlu0 %v1722
        %v1724 = vpop.xlane.xlu0 %1723
        %v1725 = vadd.f32 %v1692, %v1693
        %1726 = vadd.xlane.f32.xlu0 %v1725
        %v1727 = vpop.xlane.xlu0 %1726
        %v1728 = vadd.f32 %v1694, %v1695
        %1729 = vadd.xlane.f32.xlu0 %v1728
        %v1730 = vpop.xlane.xlu0 %1729
        %v1731 = vadd.f32 %v1696, %v1697
        %1732 = vadd.xlane.f32.xlu0 %v1731
        %v1733 = vpop.xlane.xlu0 %1732
        %v1734 = vadd.f32 %v1698, %v1699
        %1735 = vadd.xlane.f32.xlu0 %v1734
        %v1736 = vpop.xlane.xlu0 %1735
        %v1737 = vadd.f32 %v1700, %v1701
        %1738 = vadd.xlane.f32.xlu0 %v1737
        %v1739 = vpop.xlane.xlu0 %1738
        %v1740 = vadd.f32 %v1702, %v1703
        %1741 = vadd.xlane.f32.xlu0 %v1740
        %v1742 = vpop.xlane.xlu0 %1741
        %v1743 = vadd.f32 %v1704, %v1705
        %1744 = vadd.xlane.f32.xlu0 %v1743
        %v1745 = vpop.xlane.xlu0 %1744
        %v1746 = vadd.f32 %v1706, %v1707
        %1747 = vadd.xlane.f32.xlu0 %v1746
        %v1748 = vpop.xlane.xlu0 %1747
        %v1749 = vadd.f32 %v1708, %v1709
        %1750 = vadd.xlane.f32.xlu0 %v1749
        %v1751 = vpop.xlane.xlu0 %1750
        %v1752 = vadd.f32 %v1710, %v1711
        %1753 = vadd.xlane.f32.xlu0 %v1752
        %v1754 = vpop.xlane.xlu0 %1753
        %v1755 = vadd.f32 %v1712, %v1713
        %1756 = vadd.xlane.f32.xlu0 %v1755
        %v1757 = vpop.xlane.xlu0 %1756
        %v1758 = vadd.f32 %v1714, %v1715
        %1759 = vadd.xlane.f32.xlu0 %v1758
        %v1760 = vpop.xlane.xlu0 %1759
        %v1761 = vadd.f32 %v1716, %v1717
        %1762 = vadd.xlane.f32.xlu0 %v1761
        %v1763 = vpop.xlane.xlu0 %1762
        %v1764 = vadd.f32 %v1718, %v1719
        %1765 = vadd.xlane.f32.xlu0 %v1764
        %v1766 = vpop.xlane.xlu0 %1765
        %v1767 = vadd.f32 %v1720, %v1721
        %1768 = vadd.xlane.f32.xlu0 %v1767
        %v1769 = vpop.xlane.xlu0 %1768
        %1770 = vrot.lane.b32.xlu0 %v1022, 120
        %v1771 = vpop.permute.xlu0 %1770
        %1772 = vrot.lane.b32.xlu0 %v1080, 120
        %v1773 = vpop.permute.xlu0 %1772
        %v1782 = vlaneseq
        %v1783 = vshrl.u32 %v1782, 7
        %v1784 = vsub.s32 %v835, %v1783
        %v1785 = vrot.slane %v1724, %v1784
        %v1786 = vlaneseq
        %v1787 = vshrl.u32 %v1786, 7
        %v1788 = vsub.s32 %v835, %v1787
        %v1789 = vrot.slane %v1727, %v1788
        %v1790 = vlaneseq
        %v1791 = vshrl.u32 %v1790, 7
        %v1792 = vsub.s32 %v835, %v1791
        %v1793 = vrot.slane %v1730, %v1792
        %v1794 = vlaneseq
        %v1795 = vshrl.u32 %v1794, 7
        %v1796 = vsub.s32 %v835, %v1795
        %v1797 = vrot.slane %v1733, %v1796
        %v1798 = vlaneseq
        %v1799 = vshrl.u32 %v1798, 7
        %v1800 = vsub.s32 %v835, %v1799
        %v1801 = vrot.slane %v1736, %v1800
        %v1802 = vlaneseq
        %v1803 = vshrl.u32 %v1802, 7
        %v1804 = vsub.s32 %v835, %v1803
        %v1805 = vrot.slane %v1739, %v1804
        %v1806 = vlaneseq
        %v1807 = vshrl.u32 %v1806, 7
        %v1808 = vsub.s32 %v835, %v1807
        %v1809 = vrot.slane %v1742, %v1808
        %v1810 = vlaneseq
        %v1811 = vshrl.u32 %v1810, 7
        %v1812 = vsub.s32 %v835, %v1811
        %v1813 = vrot.slane %v1745, %v1812
        %v1814 = vsel %vm1288, %v1789, %v1785
        %v1815 = vsel %vm1290, %v1793, %v1814
        %v1816 = vsel %vm1292, %v1797, %v1815
        %v1817 = vsel %vm1294, %v1801, %v1816
        %v1818 = vsel %vm1296, %v1805, %v1817
        %v1819 = vsel %vm1298, %v1809, %v1818
        %v1820 = vsel %vm1300, %v1813, %v1819
        %v1822 = vsel %vm1303, %v1771, 0
        %v1824 = vsel %vm1303, %v1773, 0
        %1826 = vmatprep.subr.mxu0 0.0
        %1827 = vmatpush1.xpose.msra.mxu0 0.0
        %1828 = vmatprep.subr.mxu0 0.0
        %1829 = vmatpush1.xpose.msra.mxu0 0.0
        %1830 = vmatprep.subr.mxu0 0.0
        %1831 = vmatpush1.xpose.msra.mxu0 0.0
        %1832 = vmatprep.subr.mxu0 0.0
        %1833 = vmatpush1.xpose.msra.mxu0 0.0
        %1834 = vmatprep.subr.mxu0 0.0
        %1835 = vmatpush1.xpose.msra.mxu0 0.0
        %1836 = vmatprep.subr.mxu0 0.0
        %1837 = vmatpush1.xpose.msra.mxu0 0.0
        %1838 = vmatprep.subr.mxu0 0.0
        %1839 = vmatpush1.xpose.msra.mxu0 0.0
        %1840 = vmatprep.subr.mxu0 0.0
        %1841 = vmatpush1.xpose.msra.mxu0 0.0
        %1842 = vmatprep.subr.mxu0 0.0
        %1843 = vmatpush1.xpose.msra.mxu0 0.0
        %1844 = vmatprep.subr.mxu0 0.0
        %1845 = vmatpush1.xpose.msra.mxu0 0.0
        %1846 = vmatprep.subr.mxu0 0.0
        %1847 = vmatpush1.xpose.msra.mxu0 0.0
        %1848 = vmatprep.subr.mxu0 0.0
        %1849 = vmatpush1.xpose.msra.mxu0 0.0
        %1850 = vmatprep.subr.mxu0 0.0
        %1851 = vmatpush1.xpose.msra.mxu0 0.0
        %1852 = vmatprep.subr.mxu0 0.0
        %1853 = vmatpush1.xpose.msra.mxu0 0.0
        %1854 = vmatprep.subr.mxu0 0.0
        %1855 = vmatpush1.xpose.msra.mxu0 0.0
        %1856 = vmatprep.subr.mxu0 0.0
        %1857 = vmatpush1.xpose.msra.mxu0 %v1824
        %1858 = vmatprep.subr.mxu0 0.0
        %1859 = vmatpush2.xpose.msra.mxu0 0.0
        %1860 = vmatprep.subr.mxu0 0.0
        %1861 = vmatpush2.xpose.msra.mxu0 0.0
        %1862 = vmatprep.subr.mxu0 0.0
        %1863 = vmatpush2.xpose.msra.mxu0 0.0
        %1864 = vmatprep.subr.mxu0 0.0
        %1865 = vmatpush2.xpose.msra.mxu0 0.0
        %1866 = vmatprep.subr.mxu0 0.0
        %1867 = vmatpush2.xpose.msra.mxu0 0.0
        %1868 = vmatprep.subr.mxu0 0.0
        %1869 = vmatpush2.xpose.msra.mxu0 0.0
        %1870 = vmatprep.subr.mxu0 0.0
        %1871 = vmatpush2.xpose.msra.mxu0 0.0
        %1872 = vmatprep.subr.mxu0 0.0
        %1873 = vmatpush2.xpose.msra.mxu0 0.0
        %1874 = vmatprep.subr.mxu0 0.0
        %1875 = vmatpush2.xpose.msra.mxu0 0.0
        %1876 = vmatprep.subr.mxu0 0.0
        %1877 = vmatpush2.xpose.msra.mxu0 0.0
        %1878 = vmatprep.subr.mxu0 0.0
        %1879 = vmatpush2.xpose.msra.mxu0 0.0
        %1880 = vmatprep.subr.mxu0 0.0
        %1881 = vmatpush2.xpose.msra.mxu0 0.0
        %1882 = vmatprep.subr.mxu0 0.0
        %1883 = vmatpush2.xpose.msra.mxu0 0.0
        %1884 = vmatprep.subr.mxu0 0.0
        %1885 = vmatpush2.xpose.msra.mxu0 0.0
        %1886 = vmatprep.subr.mxu0 0.0
        %1887 = vmatpush2.xpose.msra.mxu0 0.0
        %1888 = vmatprep.subr.mxu0 0.0
        %1889 = vmatpush2.xpose.msra.mxu0 0.0
        %1890 = vmatprep.mubr.f32.mxu0 0.0
        %1891 = vmatmul.mubr.f32.gmra.mxu0 %v1822
        %v1892 = vpop.f32.mrf.mxu0
        %v1893 = vadd.f32 %v1820, %v1892
        %v1894 = vpop.f32.mrf.mxu0
        %1895 = vdwg.mxu0
        %1896 = vrot.lane.b32.xlu0 %v1023, 120
        %v1897 = vpop.permute.xlu0 %1896
        %1898 = vrot.lane.b32.xlu0 %v1083, 120
        %v1899 = vpop.permute.xlu0 %1898
        %v1908 = vlaneseq
        %v1909 = vshrl.u32 %v1908, 7
        %v1910 = vsub.s32 %v835, %v1909
        %v1911 = vrot.slane %v1748, %v1910
        %v1912 = vlaneseq
        %v1913 = vshrl.u32 %v1912, 7
        %v1914 = vsub.s32 %v835, %v1913
        %v1915 = vrot.slane %v1751, %v1914
        %v1916 = vlaneseq
        %v1917 = vshrl.u32 %v1916, 7
        %v1918 = vsub.s32 %v835, %v1917
        %v1919 = vrot.slane %v1754, %v1918
        %v1920 = vlaneseq
        %v1921 = vshrl.u32 %v1920, 7
        %v1922 = vsub.s32 %v835, %v1921
        %v1923 = vrot.slane %v1757, %v1922
        %v1924 = vlaneseq
        %v1925 = vshrl.u32 %v1924, 7
        %v1926 = vsub.s32 %v835, %v1925
        %v1927 = vrot.slane %v1760, %v1926
        %v1928 = vlaneseq
        %v1929 = vshrl.u32 %v1928, 7
        %v1930 = vsub.s32 %v835, %v1929
        %v1931 = vrot.slane %v1763, %v1930
        %v1932 = vlaneseq
        %v1933 = vshrl.u32 %v1932, 7
        %v1934 = vsub.s32 %v835, %v1933
        %v1935 = vrot.slane %v1766, %v1934
        %v1936 = vlaneseq
        %v1937 = vshrl.u32 %v1936, 7
        %v1938 = vsub.s32 %v835, %v1937
        %v1939 = vrot.slane %v1769, %v1938
        %v1940 = vsel %vm1288, %v1915, %v1911
        %v1941 = vsel %vm1290, %v1919, %v1940
        %v1942 = vsel %vm1292, %v1923, %v1941
        %v1943 = vsel %vm1294, %v1927, %v1942
        %v1944 = vsel %vm1296, %v1931, %v1943
        %v1945 = vsel %vm1298, %v1935, %v1944
        %v1946 = vsel %vm1300, %v1939, %v1945
        %v1948 = vsel %vm1303, %v1897, 0
        %v1950 = vsel %vm1303, %v1899, 0
        %1952 = vmatprep.subr.mxu0 0.0
        %1953 = vmatpush1.xpose.msra.mxu0 0.0
        %1954 = vmatprep.subr.mxu0 0.0
        %1955 = vmatpush1.xpose.msra.mxu0 0.0
        %1956 = vmatprep.subr.mxu0 0.0
        %1957 = vmatpush1.xpose.msra.mxu0 0.0
        %1958 = vmatprep.subr.mxu0 0.0
        %1959 = vmatpush1.xpose.msra.mxu0 0.0
        %1960 = vmatprep.subr.mxu0 0.0
        %1961 = vmatpush1.xpose.msra.mxu0 0.0
        %1962 = vmatprep.subr.mxu0 0.0
        %1963 = vmatpush1.xpose.msra.mxu0 0.0
        %1964 = vmatprep.subr.mxu0 0.0
        %1965 = vmatpush1.xpose.msra.mxu0 0.0
        %1966 = vmatprep.subr.mxu0 0.0
        %1967 = vmatpush1.xpose.msra.mxu0 0.0
        %1968 = vmatprep.subr.mxu0 0.0
        %1969 = vmatpush1.xpose.msra.mxu0 0.0
        %1970 = vmatprep.subr.mxu0 0.0
        %1971 = vmatpush1.xpose.msra.mxu0 0.0
        %1972 = vmatprep.subr.mxu0 0.0
        %1973 = vmatpush1.xpose.msra.mxu0 0.0
        %1974 = vmatprep.subr.mxu0 0.0
        %1975 = vmatpush1.xpose.msra.mxu0 0.0
        %1976 = vmatprep.subr.mxu0 0.0
        %1977 = vmatpush1.xpose.msra.mxu0 0.0
        %1978 = vmatprep.subr.mxu0 0.0
        %1979 = vmatpush1.xpose.msra.mxu0 0.0
        %1980 = vmatprep.subr.mxu0 0.0
        %1981 = vmatpush1.xpose.msra.mxu0 0.0
        %1982 = vmatprep.subr.mxu0 0.0
        %1983 = vmatpush1.xpose.msra.mxu0 %v1950
        %1984 = vmatprep.subr.mxu0 0.0
        %1985 = vmatpush2.xpose.msra.mxu0 0.0
        %1986 = vmatprep.subr.mxu0 0.0
        %1987 = vmatpush2.xpose.msra.mxu0 0.0
        %1988 = vmatprep.subr.mxu0 0.0
        %1989 = vmatpush2.xpose.msra.mxu0 0.0
        %1990 = vmatprep.subr.mxu0 0.0
        %1991 = vmatpush2.xpose.msra.mxu0 0.0
        %1992 = vmatprep.subr.mxu0 0.0
        %1993 = vmatpush2.xpose.msra.mxu0 0.0
        %1994 = vmatprep.subr.mxu0 0.0
        %1995 = vmatpush2.xpose.msra.mxu0 0.0
        %1996 = vmatprep.subr.mxu0 0.0
        %1997 = vmatpush2.xpose.msra.mxu0 0.0
        %1998 = vmatprep.subr.mxu0 0.0
        %1999 = vmatpush2.xpose.msra.mxu0 0.0
        %2000 = vmatprep.subr.mxu0 0.0
        %2001 = vmatpush2.xpose.msra.mxu0 0.0
        %2002 = vmatprep.subr.mxu0 0.0
        %2003 = vmatpush2.xpose.msra.mxu0 0.0
        %2004 = vmatprep.subr.mxu0 0.0
        %2005 = vmatpush2.xpose.msra.mxu0 0.0
        %2006 = vmatprep.subr.mxu0 0.0
        %2007 = vmatpush2.xpose.msra.mxu0 0.0
        %2008 = vmatprep.subr.mxu0 0.0
        %2009 = vmatpush2.xpose.msra.mxu0 0.0
        %2010 = vmatprep.subr.mxu0 0.0
        %2011 = vmatpush2.xpose.msra.mxu0 0.0
        %2012 = vmatprep.subr.mxu0 0.0
        %2013 = vmatpush2.xpose.msra.mxu0 0.0
        %2014 = vmatprep.subr.mxu0 0.0
        %2015 = vmatpush2.xpose.msra.mxu0 0.0
        %2016 = vmatprep.mubr.f32.mxu0 0.0
        %2017 = vmatmul.mubr.f32.gmra.mxu0 %v1948
        %v2018 = vpop.f32.mrf.mxu0
        %v2019 = vadd.f32 %v1946, %v2018
        %v2020 = vpop.f32.mrf.mxu0
        %2021 = vdwg.mxu0
        %v2022 = vsel %vm1303, %v1893, -inf
        %2023 = vmax.xlane.f32.xlu0 %v2022
        %v2024 = vpop.xlane.xlu0 %2023
        %v2025 = vsel %vm1303, %v2019, -inf
        %2026 = vmax.xlane.f32.xlu0 %v2025
        %v2027 = vpop.xlane.xlu0 %2026
        %v2028 = vsub.f32 %v1893, %v2024
        %v2029 = vsub.f32 %v2019, %v2027
        %v2030 = vmul.f32 %v2028, 1.442695
        %v2031 = vpow.pop %v2030
        %v2032 = vmul.f32 %v2029, 1.442695
        %v2033 = vpow.pop %v2032
        %v2034 = vsel %vm1303, %v2031, 0.0
        %2035 = vadd.xlane.f32.xlu0 %v2034
        %v2036 = vpop.xlane.xlu0 %2035
        %v2037 = vsel %vm1303, %v2033, 0.0
        %2038 = vadd.xlane.f32.xlu0 %v2037
        %v2039 = vpop.xlane.xlu0 %2038
        %v2040 = vrcp.pop %v2036
        %v2041 = vrcp.pop %v2039
        %v2042 = vmul.f32 %v2031, %v2040
        %v2043 = vmul.f32 %v2033, %v2041
        %2045 = vrot.lane.b32.xlu0 %v1142, 120
        %v2046 = vpop.permute.xlu0 %2045
        %v2049 = vsel %vm1303, %v2042, 0
        %2051 = vmatprep.subr.mxu0 0.0
        %2052 = vmatpush1.msra.mxu0 0.0
        %2053 = vmatprep.subr.mxu0 0.0
        %2054 = vmatpush1.msra.mxu0 0.0
        %2055 = vmatprep.subr.mxu0 0.0
        %2056 = vmatpush1.msra.mxu0 0.0
        %2057 = vmatprep.subr.mxu0 0.0
        %2058 = vmatpush1.msra.mxu0 0.0
        %2059 = vmatprep.subr.mxu0 0.0
        %2060 = vmatpush1.msra.mxu0 0.0
        %2061 = vmatprep.subr.mxu0 0.0
        %2062 = vmatpush1.msra.mxu0 0.0
        %2063 = vmatprep.subr.mxu0 0.0
        %2064 = vmatpush1.msra.mxu0 0.0
        %2065 = vmatprep.subr.mxu0 0.0
        %2066 = vmatpush1.msra.mxu0 0.0
        %2067 = vmatprep.subr.mxu0 0.0
        %2068 = vmatpush1.msra.mxu0 0.0
        %2069 = vmatprep.subr.mxu0 0.0
        %2070 = vmatpush1.msra.mxu0 0.0
        %2071 = vmatprep.subr.mxu0 0.0
        %2072 = vmatpush1.msra.mxu0 0.0
        %2073 = vmatprep.subr.mxu0 0.0
        %2074 = vmatpush1.msra.mxu0 0.0
        %2075 = vmatprep.subr.mxu0 0.0
        %2076 = vmatpush1.msra.mxu0 0.0
        %2077 = vmatprep.subr.mxu0 0.0
        %2078 = vmatpush1.msra.mxu0 0.0
        %2079 = vmatprep.subr.mxu0 0.0
        %2080 = vmatpush1.msra.mxu0 0.0
        %2081 = vmatprep.subr.mxu0 0.0
        %2082 = vmatpush1.msra.mxu0 %v2046
        %2083 = vmatprep.subr.mxu0 0.0
        %2084 = vmatpush2.msra.mxu0 0.0
        %2085 = vmatprep.subr.mxu0 0.0
        %2086 = vmatpush2.msra.mxu0 0.0
        %2087 = vmatprep.subr.mxu0 0.0
        %2088 = vmatpush2.msra.mxu0 0.0
        %2089 = vmatprep.subr.mxu0 0.0
        %2090 = vmatpush2.msra.mxu0 0.0
        %2091 = vmatprep.subr.mxu0 0.0
        %2092 = vmatpush2.msra.mxu0 0.0
        %2093 = vmatprep.subr.mxu0 0.0
        %2094 = vmatpush2.msra.mxu0 0.0
        %2095 = vmatprep.subr.mxu0 0.0
        %2096 = vmatpush2.msra.mxu0 0.0
        %2097 = vmatprep.subr.mxu0 0.0
        %2098 = vmatpush2.msra.mxu0 0.0
        %2099 = vmatprep.subr.mxu0 0.0
        %2100 = vmatpush2.msra.mxu0 0.0
        %2101 = vmatprep.subr.mxu0 0.0
        %2102 = vmatpush2.msra.mxu0 0.0
        %2103 = vmatprep.subr.mxu0 0.0
        %2104 = vmatpush2.msra.mxu0 0.0
        %2105 = vmatprep.subr.mxu0 0.0
        %2106 = vmatpush2.msra.mxu0 0.0
        %2107 = vmatprep.subr.mxu0 0.0
        %2108 = vmatpush2.msra.mxu0 0.0
        %2109 = vmatprep.subr.mxu0 0.0
        %2110 = vmatpush2.msra.mxu0 0.0
        %2111 = vmatprep.subr.mxu0 0.0
        %2112 = vmatpush2.msra.mxu0 0.0
        %2113 = vmatprep.subr.mxu0 0.0
        %2114 = vmatpush2.msra.mxu0 0.0
        %2115 = vmatprep.mubr.f32.mxu0 0.0
        %2116 = vmatmul.mubr.f32.gmra.mxu0 %v2049
        %v2117 = vpop.f32.mrf.mxu0
        %v2118 = vadd.f32 0.0, %v2117
        %v2119 = vpop.f32.mrf.mxu0
        %2120 = vdwg.mxu0
        %2122 = vrot.lane.b32.xlu0 %v1145, 120
        %v2123 = vpop.permute.xlu0 %2122
        %v2126 = vsel %vm1303, %v2043, 0
        %2128 = vmatprep.subr.mxu0 0.0
        %2129 = vmatpush1.msra.mxu0 0.0
        %2130 = vmatprep.subr.mxu0 0.0
        %2131 = vmatpush1.msra.mxu0 0.0
        %2132 = vmatprep.subr.mxu0 0.0
        %2133 = vmatpush1.msra.mxu0 0.0
        %2134 = vmatprep.subr.mxu0 0.0
        %2135 = vmatpush1.msra.mxu0 0.0
        %2136 = vmatprep.subr.mxu0 0.0
        %2137 = vmatpush1.msra.mxu0 0.0
        %2138 = vmatprep.subr.mxu0 0.0
        %2139 = vmatpush1.msra.mxu0 0.0
        %2140 = vmatprep.subr.mxu0 0.0
        %2141 = vmatpush1.msra.mxu0 0.0
        %2142 = vmatprep.subr.mxu0 0.0
        %2143 = vmatpush1.msra.mxu0 0.0
        %2144 = vmatprep.subr.mxu0 0.0
        %2145 = vmatpush1.msra.mxu0 0.0
        %2146 = vmatprep.subr.mxu0 0.0
        %2147 = vmatpush1.msra.mxu0 0.0
        %2148 = vmatprep.subr.mxu0 0.0
        %2149 = vmatpush1.msra.mxu0 0.0
        %2150 = vmatprep.subr.mxu0 0.0
        %2151 = vmatpush1.msra.mxu0 0.0
        %2152 = vmatprep.subr.mxu0 0.0
        %2153 = vmatpush1.msra.mxu0 0.0
        %2154 = vmatprep.subr.mxu0 0.0
        %2155 = vmatpush1.msra.mxu0 0.0
        %2156 = vmatprep.subr.mxu0 0.0
        %2157 = vmatpush1.msra.mxu0 0.0
        %2158 = vmatprep.subr.mxu0 0.0
        %2159 = vmatpush1.msra.mxu0 %v2123
        %2160 = vmatprep.subr.mxu0 0.0
        %2161 = vmatpush2.msra.mxu0 0.0
        %2162 = vmatprep.subr.mxu0 0.0
        %2163 = vmatpush2.msra.mxu0 0.0
        %2164 = vmatprep.subr.mxu0 0.0
        %2165 = vmatpush2.msra.mxu0 0.0
        %2166 = vmatprep.subr.mxu0 0.0
        %2167 = vmatpush2.msra.mxu0 0.0
        %2168 = vmatprep.subr.mxu0 0.0
        %2169 = vmatpush2.msra.mxu0 0.0
        %2170 = vmatprep.subr.mxu0 0.0
        %2171 = vmatpush2.msra.mxu0 0.0
        %2172 = vmatprep.subr.mxu0 0.0
        %2173 = vmatpush2.msra.mxu0 0.0
        %2174 = vmatprep.subr.mxu0 0.0
        %2175 = vmatpush2.msra.mxu0 0.0
        %2176 = vmatprep.subr.mxu0 0.0
        %2177 = vmatpush2.msra.mxu0 0.0
        %2178 = vmatprep.subr.mxu0 0.0
        %2179 = vmatpush2.msra.mxu0 0.0
        %2180 = vmatprep.subr.mxu0 0.0
        %2181 = vmatpush2.msra.mxu0 0.0
        %2182 = vmatprep.subr.mxu0 0.0
        %2183 = vmatpush2.msra.mxu0 0.0
        %2184 = vmatprep.subr.mxu0 0.0
        %2185 = vmatpush2.msra.mxu0 0.0
        %2186 = vmatprep.subr.mxu0 0.0
        %2187 = vmatpush2.msra.mxu0 0.0
        %2188 = vmatprep.subr.mxu0 0.0
        %2189 = vmatpush2.msra.mxu0 0.0
        %2190 = vmatprep.subr.mxu0 0.0
        %2191 = vmatpush2.msra.mxu0 0.0
        %2192 = vmatprep.mubr.f32.mxu0 0.0
        %2193 = vmatmul.mubr.f32.gmra.mxu0 %v2126
        %v2194 = vpop.f32.mrf.mxu0
        %v2195 = vadd.f32 0.0, %v2194
        %v2196 = vpop.f32.mrf.mxu0
        %2197 = vdwg.mxu0
        %v2198 = vlaneseq
        %v2199 = vshrl.u32 %v2198, 7
        %v2200 = vsub.s32 2, %v2199
        %v2201 = vrot.slane %v1148, %v2200
        %v2202 = vlaneseq
        %v2203 = vshrl.u32 %v2202, 7
        %v2204 = vsub.s32 6, %v2203
        %v2205 = vrot.slane %v1148, %v2204
        %v2208 = vlaneseq
        %v2209 = vshrl.u32 %v2208, 7
        %v2210 = vsub.s32 2, %v2209
        %v2211 = vrot.slane %v2201, %v2210
        %v2212 = vlaneseq
        %v2213 = vshrl.u32 %v2212, 7
        %v2214 = vsub.s32 2, %v2213
        %v2215 = vrot.slane %v2205, %v2214
        %v2216 = vsel %vm885, %v2211, 0.0
        %v2217 = vsel %vm886, %v2215, 0.0
        %v2218 = vsel %vm887, %v2211, 0.0
        %v2219 = vsel %vm888, %v2215, 0.0
        %v2220 = vsel %vm889, %v2211, 0.0
        %v2221 = vsel %vm890, %v2215, 0.0
        %v2222 = vsel %vm891, %v2211, 0.0
        %v2223 = vsel %vm892, %v2215, 0.0
        %v2224 = vsel %vm893, %v2211, 0.0
        %v2225 = vsel %vm894, %v2215, 0.0
        %v2226 = vsel %vm895, %v2211, 0.0
        %v2227 = vsel %vm896, %v2215, 0.0
        %v2228 = vsel %vm897, %v2211, 0.0
        %v2229 = vsel %vm898, %v2215, 0.0
        %v2230 = vsel %vm899, %v2211, 0.0
        %v2231 = vsel %vm900, %v2215, 0.0
        %v2232 = vsel %vm901, %v2211, 0.0
        %v2233 = vsel %vm902, %v2215, 0.0
        %v2234 = vsel %vm903, %v2211, 0.0
        %v2235 = vsel %vm904, %v2215, 0.0
        %v2236 = vsel %vm905, %v2211, 0.0
        %v2237 = vsel %vm906, %v2215, 0.0
        %v2238 = vsel %vm907, %v2211, 0.0
        %v2239 = vsel %vm908, %v2215, 0.0
        %v2240 = vsel %vm909, %v2211, 0.0
        %v2241 = vsel %vm910, %v2215, 0.0
        %v2242 = vsel %vm911, %v2211, 0.0
        %v2243 = vsel %vm912, %v2215, 0.0
        %v2244 = vsel %vm913, %v2211, 0.0
        %v2245 = vsel %vm914, %v2215, 0.0
        %v2246 = vsel %vm915, %v2211, 0.0
        %v2247 = vsel %vm916, %v2215, 0.0
        %v2248 = vadd.f32 %v2216, %v2217
        %2249 = vadd.xlane.f32.xlu0 %v2248
        %v2250 = vpop.xlane.xlu0 %2249
        %v2251 = vadd.f32 %v2218, %v2219
        %2252 = vadd.xlane.f32.xlu0 %v2251
        %v2253 = vpop.xlane.xlu0 %2252
        %v2254 = vadd.f32 %v2220, %v2221
        %2255 = vadd.xlane.f32.xlu0 %v2254
        %v2256 = vpop.xlane.xlu0 %2255
        %v2257 = vadd.f32 %v2222, %v2223
        %2258 = vadd.xlane.f32.xlu0 %v2257
        %v2259 = vpop.xlane.xlu0 %2258
        %v2260 = vadd.f32 %v2224, %v2225
        %2261 = vadd.xlane.f32.xlu0 %v2260
        %v2262 = vpop.xlane.xlu0 %2261
        %v2263 = vadd.f32 %v2226, %v2227
        %2264 = vadd.xlane.f32.xlu0 %v2263
        %v2265 = vpop.xlane.xlu0 %2264
        %v2266 = vadd.f32 %v2228, %v2229
        %2267 = vadd.xlane.f32.xlu0 %v2266
        %v2268 = vpop.xlane.xlu0 %2267
        %v2269 = vadd.f32 %v2230, %v2231
        %2270 = vadd.xlane.f32.xlu0 %v2269
        %v2271 = vpop.xlane.xlu0 %2270
        %v2272 = vadd.f32 %v2232, %v2233
        %2273 = vadd.xlane.f32.xlu0 %v2272
        %v2274 = vpop.xlane.xlu0 %2273
        %v2275 = vadd.f32 %v2234, %v2235
        %2276 = vadd.xlane.f32.xlu0 %v2275
        %v2277 = vpop.xlane.xlu0 %2276
        %v2278 = vadd.f32 %v2236, %v2237
        %2279 = vadd.xlane.f32.xlu0 %v2278
        %v2280 = vpop.xlane.xlu0 %2279
        %v2281 = vadd.f32 %v2238, %v2239
        %2282 = vadd.xlane.f32.xlu0 %v2281
        %v2283 = vpop.xlane.xlu0 %2282
        %v2284 = vadd.f32 %v2240, %v2241
        %2285 = vadd.xlane.f32.xlu0 %v2284
        %v2286 = vpop.xlane.xlu0 %2285
        %v2287 = vadd.f32 %v2242, %v2243
        %2288 = vadd.xlane.f32.xlu0 %v2287
        %v2289 = vpop.xlane.xlu0 %2288
        %v2290 = vadd.f32 %v2244, %v2245
        %2291 = vadd.xlane.f32.xlu0 %v2290
        %v2292 = vpop.xlane.xlu0 %2291
        %v2293 = vadd.f32 %v2246, %v2247
        %2294 = vadd.xlane.f32.xlu0 %v2293
        %v2295 = vpop.xlane.xlu0 %2294
        %2296 = vrot.lane.b32.xlu0 %v1022, 112
        %v2297 = vpop.permute.xlu0 %2296
        %2298 = vrot.lane.b32.xlu0 %v1080, 112
        %v2299 = vpop.permute.xlu0 %2298
        %v2308 = vlaneseq
        %v2309 = vshrl.u32 %v2308, 7
        %v2310 = vsub.s32 %v835, %v2309
        %v2311 = vrot.slane %v2250, %v2310
        %v2312 = vlaneseq
        %v2313 = vshrl.u32 %v2312, 7
        %v2314 = vsub.s32 %v835, %v2313
        %v2315 = vrot.slane %v2253, %v2314
        %v2316 = vlaneseq
        %v2317 = vshrl.u32 %v2316, 7
        %v2318 = vsub.s32 %v835, %v2317
        %v2319 = vrot.slane %v2256, %v2318
        %v2320 = vlaneseq
        %v2321 = vshrl.u32 %v2320, 7
        %v2322 = vsub.s32 %v835, %v2321
        %v2323 = vrot.slane %v2259, %v2322
        %v2324 = vlaneseq
        %v2325 = vshrl.u32 %v2324, 7
        %v2326 = vsub.s32 %v835, %v2325
        %v2327 = vrot.slane %v2262, %v2326
        %v2328 = vlaneseq
        %v2329 = vshrl.u32 %v2328, 7
        %v2330 = vsub.s32 %v835, %v2329
        %v2331 = vrot.slane %v2265, %v2330
        %v2332 = vlaneseq
        %v2333 = vshrl.u32 %v2332, 7
        %v2334 = vsub.s32 %v835, %v2333
        %v2335 = vrot.slane %v2268, %v2334
        %v2336 = vlaneseq
        %v2337 = vshrl.u32 %v2336, 7
        %v2338 = vsub.s32 %v835, %v2337
        %v2339 = vrot.slane %v2271, %v2338
        %v2340 = vsel %vm1288, %v2315, %v2311
        %v2341 = vsel %vm1290, %v2319, %v2340
        %v2342 = vsel %vm1292, %v2323, %v2341
        %v2343 = vsel %vm1294, %v2327, %v2342
        %v2344 = vsel %vm1296, %v2331, %v2343
        %v2345 = vsel %vm1298, %v2335, %v2344
        %v2346 = vsel %vm1300, %v2339, %v2345
        %v2348 = vsel %vm1303, %v2297, 0
        %v2350 = vsel %vm1303, %v2299, 0
        %2352 = vmatprep.subr.mxu0 0.0
        %2353 = vmatpush1.xpose.msra.mxu0 0.0
        %2354 = vmatprep.subr.mxu0 0.0
        %2355 = vmatpush1.xpose.msra.mxu0 0.0
        %2356 = vmatprep.subr.mxu0 0.0
        %2357 = vmatpush1.xpose.msra.mxu0 0.0
        %2358 = vmatprep.subr.mxu0 0.0
        %2359 = vmatpush1.xpose.msra.mxu0 0.0
        %2360 = vmatprep.subr.mxu0 0.0
        %2361 = vmatpush1.xpose.msra.mxu0 0.0
        %2362 = vmatprep.subr.mxu0 0.0
        %2363 = vmatpush1.xpose.msra.mxu0 0.0
        %2364 = vmatprep.subr.mxu0 0.0
        %2365 = vmatpush1.xpose.msra.mxu0 0.0
        %2366 = vmatprep.subr.mxu0 0.0
        %2367 = vmatpush1.xpose.msra.mxu0 0.0
        %2368 = vmatprep.subr.mxu0 0.0
        %2369 = vmatpush1.xpose.msra.mxu0 0.0
        %2370 = vmatprep.subr.mxu0 0.0
        %2371 = vmatpush1.xpose.msra.mxu0 0.0
        %2372 = vmatprep.subr.mxu0 0.0
        %2373 = vmatpush1.xpose.msra.mxu0 0.0
        %2374 = vmatprep.subr.mxu0 0.0
        %2375 = vmatpush1.xpose.msra.mxu0 0.0
        %2376 = vmatprep.subr.mxu0 0.0
        %2377 = vmatpush1.xpose.msra.mxu0 0.0
        %2378 = vmatprep.subr.mxu0 0.0
        %2379 = vmatpush1.xpose.msra.mxu0 0.0
        %2380 = vmatprep.subr.mxu0 0.0
        %2381 = vmatpush1.xpose.msra.mxu0 0.0
        %2382 = vmatprep.subr.mxu0 0.0
        %2383 = vmatpush1.xpose.msra.mxu0 %v2350
        %2384 = vmatprep.subr.mxu0 0.0
        %2385 = vmatpush2.xpose.msra.mxu0 0.0
        %2386 = vmatprep.subr.mxu0 0.0
        %2387 = vmatpush2.xpose.msra.mxu0 0.0
        %2388 = vmatprep.subr.mxu0 0.0
        %2389 = vmatpush2.xpose.msra.mxu0 0.0
        %2390 = vmatprep.subr.mxu0 0.0
        %2391 = vmatpush2.xpose.msra.mxu0 0.0
        %2392 = vmatprep.subr.mxu0 0.0
        %2393 = vmatpush2.xpose.msra.mxu0 0.0
        %2394 = vmatprep.subr.mxu0 0.0
        %2395 = vmatpush2.xpose.msra.mxu0 0.0
        %2396 = vmatprep.subr.mxu0 0.0
        %2397 = vmatpush2.xpose.msra.mxu0 0.0
        %2398 = vmatprep.subr.mxu0 0.0
        %2399 = vmatpush2.xpose.msra.mxu0 0.0
        %2400 = vmatprep.subr.mxu0 0.0
        %2401 = vmatpush2.xpose.msra.mxu0 0.0
        %2402 = vmatprep.subr.mxu0 0.0
        %2403 = vmatpush2.xpose.msra.mxu0 0.0
        %2404 = vmatprep.subr.mxu0 0.0
        %2405 = vmatpush2.xpose.msra.mxu0 0.0
        %2406 = vmatprep.subr.mxu0 0.0
        %2407 = vmatpush2.xpose.msra.mxu0 0.0
        %2408 = vmatprep.subr.mxu0 0.0
        %2409 = vmatpush2.xpose.msra.mxu0 0.0
        %2410 = vmatprep.subr.mxu0 0.0
        %2411 = vmatpush2.xpose.msra.mxu0 0.0
        %2412 = vmatprep.subr.mxu0 0.0
        %2413 = vmatpush2.xpose.msra.mxu0 0.0
        %2414 = vmatprep.subr.mxu0 0.0
        %2415 = vmatpush2.xpose.msra.mxu0 0.0
        %2416 = vmatprep.mubr.f32.mxu0 0.0
        %2417 = vmatmul.mubr.f32.gmra.mxu0 %v2348
        %v2418 = vpop.f32.mrf.mxu0
        %v2419 = vadd.f32 %v2346, %v2418
        %v2420 = vpop.f32.mrf.mxu0
        %2421 = vdwg.mxu0
        %2422 = vrot.lane.b32.xlu0 %v1023, 112
        %v2423 = vpop.permute.xlu0 %2422
        %2424 = vrot.lane.b32.xlu0 %v1083, 112
        %v2425 = vpop.permute.xlu0 %2424
        %v2434 = vlaneseq
        %v2435 = vshrl.u32 %v2434, 7
        %v2436 = vsub.s32 %v835, %v2435
        %v2437 = vrot.slane %v2274, %v2436
        %v2438 = vlaneseq
        %v2439 = vshrl.u32 %v2438, 7
        %v2440 = vsub.s32 %v835, %v2439
        %v2441 = vrot.slane %v2277, %v2440
        %v2442 = vlaneseq
        %v2443 = vshrl.u32 %v2442, 7
        %v2444 = vsub.s32 %v835, %v2443
        %v2445 = vrot.slane %v2280, %v2444
        %v2446 = vlaneseq
        %v2447 = vshrl.u32 %v2446, 7
        %v2448 = vsub.s32 %v835, %v2447
        %v2449 = vrot.slane %v2283, %v2448
        %v2450 = vlaneseq
        %v2451 = vshrl.u32 %v2450, 7
        %v2452 = vsub.s32 %v835, %v2451
        %v2453 = vrot.slane %v2286, %v2452
        %v2454 = vlaneseq
        %v2455 = vshrl.u32 %v2454, 7
        %v2456 = vsub.s32 %v835, %v2455
        %v2457 = vrot.slane %v2289, %v2456
        %v2458 = vlaneseq
        %v2459 = vshrl.u32 %v2458, 7
        %v2460 = vsub.s32 %v835, %v2459
        %v2461 = vrot.slane %v2292, %v2460
        %v2462 = vlaneseq
        %v2463 = vshrl.u32 %v2462, 7
        %v2464 = vsub.s32 %v835, %v2463
        %v2465 = vrot.slane %v2295, %v2464
        %v2466 = vsel %vm1288, %v2441, %v2437
        %v2467 = vsel %vm1290, %v2445, %v2466
        %v2468 = vsel %vm1292, %v2449, %v2467
        %v2469 = vsel %vm1294, %v2453, %v2468
        %v2470 = vsel %vm1296, %v2457, %v2469
        %v2471 = vsel %vm1298, %v2461, %v2470
        %v2472 = vsel %vm1300, %v2465, %v2471
        %v2474 = vsel %vm1303, %v2423, 0
        %v2476 = vsel %vm1303, %v2425, 0
        %2478 = vmatprep.subr.mxu0 0.0
        %2479 = vmatpush1.xpose.msra.mxu0 0.0
        %2480 = vmatprep.subr.mxu0 0.0
        %2481 = vmatpush1.xpose.msra.mxu0 0.0
        %2482 = vmatprep.subr.mxu0 0.0
        %2483 = vmatpush1.xpose.msra.mxu0 0.0
        %2484 = vmatprep.subr.mxu0 0.0
        %2485 = vmatpush1.xpose.msra.mxu0 0.0
        %2486 = vmatprep.subr.mxu0 0.0
        %2487 = vmatpush1.xpose.msra.mxu0 0.0
        %2488 = vmatprep.subr.mxu0 0.0
        %2489 = vmatpush1.xpose.msra.mxu0 0.0
        %2490 = vmatprep.subr.mxu0 0.0
        %2491 = vmatpush1.xpose.msra.mxu0 0.0
        %2492 = vmatprep.subr.mxu0 0.0
        %2493 = vmatpush1.xpose.msra.mxu0 0.0
        %2494 = vmatprep.subr.mxu0 0.0
        %2495 = vmatpush1.xpose.msra.mxu0 0.0
        %2496 = vmatprep.subr.mxu0 0.0
        %2497 = vmatpush1.xpose.msra.mxu0 0.0
        %2498 = vmatprep.subr.mxu0 0.0
        %2499 = vmatpush1.xpose.msra.mxu0 0.0
        %2500 = vmatprep.subr.mxu0 0.0
        %2501 = vmatpush1.xpose.msra.mxu0 0.0
        %2502 = vmatprep.subr.mxu0 0.0
        %2503 = vmatpush1.xpose.msra.mxu0 0.0
        %2504 = vmatprep.subr.mxu0 0.0
        %2505 = vmatpush1.xpose.msra.mxu0 0.0
        %2506 = vmatprep.subr.mxu0 0.0
        %2507 = vmatpush1.xpose.msra.mxu0 0.0
        %2508 = vmatprep.subr.mxu0 0.0
        %2509 = vmatpush1.xpose.msra.mxu0 %v2476
        %2510 = vmatprep.subr.mxu0 0.0
        %2511 = vmatpush2.xpose.msra.mxu0 0.0
        %2512 = vmatprep.subr.mxu0 0.0
        %2513 = vmatpush2.xpose.msra.mxu0 0.0
        %2514 = vmatprep.subr.mxu0 0.0
        %2515 = vmatpush2.xpose.msra.mxu0 0.0
        %2516 = vmatprep.subr.mxu0 0.0
        %2517 = vmatpush2.xpose.msra.mxu0 0.0
        %2518 = vmatprep.subr.mxu0 0.0
        %2519 = vmatpush2.xpose.msra.mxu0 0.0
        %2520 = vmatprep.subr.mxu0 0.0
        %2521 = vmatpush2.xpose.msra.mxu0 0.0
        %2522 = vmatprep.subr.mxu0 0.0
        %2523 = vmatpush2.xpose.msra.mxu0 0.0
        %2524 = vmatprep.subr.mxu0 0.0
        %2525 = vmatpush2.xpose.msra.mxu0 0.0
        %2526 = vmatprep.subr.mxu0 0.0
        %2527 = vmatpush2.xpose.msra.mxu0 0.0
        %2528 = vmatprep.subr.mxu0 0.0
        %2529 = vmatpush2.xpose.msra.mxu0 0.0
        %2530 = vmatprep.subr.mxu0 0.0
        %2531 = vmatpush2.xpose.msra.mxu0 0.0
        %2532 = vmatprep.subr.mxu0 0.0
        %2533 = vmatpush2.xpose.msra.mxu0 0.0
        %2534 = vmatprep.subr.mxu0 0.0
        %2535 = vmatpush2.xpose.msra.mxu0 0.0
        %2536 = vmatprep.subr.mxu0 0.0
        %2537 = vmatpush2.xpose.msra.mxu0 0.0
        %2538 = vmatprep.subr.mxu0 0.0
        %2539 = vmatpush2.xpose.msra.mxu0 0.0
        %2540 = vmatprep.subr.mxu0 0.0
        %2541 = vmatpush2.xpose.msra.mxu0 0.0
        %2542 = vmatprep.mubr.f32.mxu0 0.0
        %2543 = vmatmul.mubr.f32.gmra.mxu0 %v2474
        %v2544 = vpop.f32.mrf.mxu0
        %v2545 = vadd.f32 %v2472, %v2544
        %v2546 = vpop.f32.mrf.mxu0
        %2547 = vdwg.mxu0
        %v2548 = vsel %vm1303, %v2419, -inf
        %2549 = vmax.xlane.f32.xlu0 %v2548
        %v2550 = vpop.xlane.xlu0 %2549
        %v2551 = vsel %vm1303, %v2545, -inf
        %2552 = vmax.xlane.f32.xlu0 %v2551
        %v2553 = vpop.xlane.xlu0 %2552
        %v2554 = vsub.f32 %v2419, %v2550
        %v2555 = vsub.f32 %v2545, %v2553
        %v2556 = vmul.f32 %v2554, 1.442695
        %v2557 = vpow.pop %v2556
        %v2558 = vmul.f32 %v2555, 1.442695
        %v2559 = vpow.pop %v2558
        %v2560 = vsel %vm1303, %v2557, 0.0
        %2561 = vadd.xlane.f32.xlu0 %v2560
        %v2562 = vpop.xlane.xlu0 %2561
        %v2563 = vsel %vm1303, %v2559, 0.0
        %2564 = vadd.xlane.f32.xlu0 %v2563
        %v2565 = vpop.xlane.xlu0 %2564
        %v2566 = vrcp.pop %v2562
        %v2567 = vrcp.pop %v2565
        %v2568 = vmul.f32 %v2557, %v2566
        %v2569 = vmul.f32 %v2559, %v2567
        %2570 = vrot.lane.b32.xlu0 %v1142, 112
        %v2571 = vpop.permute.xlu0 %2570
        %v2574 = vsel %vm1303, %v2568, 0
        %2576 = vmatprep.subr.mxu0 0.0
        %2577 = vmatpush1.msra.mxu0 0.0
        %2578 = vmatprep.subr.mxu0 0.0
        %2579 = vmatpush1.msra.mxu0 0.0
        %2580 = vmatprep.subr.mxu0 0.0
        %2581 = vmatpush1.msra.mxu0 0.0
        %2582 = vmatprep.subr.mxu0 0.0
        %2583 = vmatpush1.msra.mxu0 0.0
        %2584 = vmatprep.subr.mxu0 0.0
        %2585 = vmatpush1.msra.mxu0 0.0
        %2586 = vmatprep.subr.mxu0 0.0
        %2587 = vmatpush1.msra.mxu0 0.0
        %2588 = vmatprep.subr.mxu0 0.0
        %2589 = vmatpush1.msra.mxu0 0.0
        %2590 = vmatprep.subr.mxu0 0.0
        %2591 = vmatpush1.msra.mxu0 0.0
        %2592 = vmatprep.subr.mxu0 0.0
        %2593 = vmatpush1.msra.mxu0 0.0
        %2594 = vmatprep.subr.mxu0 0.0
        %2595 = vmatpush1.msra.mxu0 0.0
        %2596 = vmatprep.subr.mxu0 0.0
        %2597 = vmatpush1.msra.mxu0 0.0
        %2598 = vmatprep.subr.mxu0 0.0
        %2599 = vmatpush1.msra.mxu0 0.0
        %2600 = vmatprep.subr.mxu0 0.0
        %2601 = vmatpush1.msra.mxu0 0.0
        %2602 = vmatprep.subr.mxu0 0.0
        %2603 = vmatpush1.msra.mxu0 0.0
        %2604 = vmatprep.subr.mxu0 0.0
        %2605 = vmatpush1.msra.mxu0 0.0
        %2606 = vmatprep.subr.mxu0 0.0
        %2607 = vmatpush1.msra.mxu0 %v2571
        %2608 = vmatprep.subr.mxu0 0.0
        %2609 = vmatpush2.msra.mxu0 0.0
        %2610 = vmatprep.subr.mxu0 0.0
        %2611 = vmatpush2.msra.mxu0 0.0
        %2612 = vmatprep.subr.mxu0 0.0
        %2613 = vmatpush2.msra.mxu0 0.0
        %2614 = vmatprep.subr.mxu0 0.0
        %2615 = vmatpush2.msra.mxu0 0.0
        %2616 = vmatprep.subr.mxu0 0.0
        %2617 = vmatpush2.msra.mxu0 0.0
        %2618 = vmatprep.subr.mxu0 0.0
        %2619 = vmatpush2.msra.mxu0 0.0
        %2620 = vmatprep.subr.mxu0 0.0
        %2621 = vmatpush2.msra.mxu0 0.0
        %2622 = vmatprep.subr.mxu0 0.0
        %2623 = vmatpush2.msra.mxu0 0.0
        %2624 = vmatprep.subr.mxu0 0.0
        %2625 = vmatpush2.msra.mxu0 0.0
        %2626 = vmatprep.subr.mxu0 0.0
        %2627 = vmatpush2.msra.mxu0 0.0
        %2628 = vmatprep.subr.mxu0 0.0
        %2629 = vmatpush2.msra.mxu0 0.0
        %2630 = vmatprep.subr.mxu0 0.0
        %2631 = vmatpush2.msra.mxu0 0.0
        %2632 = vmatprep.subr.mxu0 0.0
        %2633 = vmatpush2.msra.mxu0 0.0
        %2634 = vmatprep.subr.mxu0 0.0
        %2635 = vmatpush2.msra.mxu0 0.0
        %2636 = vmatprep.subr.mxu0 0.0
        %2637 = vmatpush2.msra.mxu0 0.0
        %2638 = vmatprep.subr.mxu0 0.0
        %2639 = vmatpush2.msra.mxu0 0.0
        %2640 = vmatprep.mubr.f32.mxu0 0.0
        %2641 = vmatmul.mubr.f32.gmra.mxu0 %v2574
        %v2642 = vpop.f32.mrf.mxu0
        %v2643 = vadd.f32 0.0, %v2642
        %v2644 = vpop.f32.mrf.mxu0
        %2645 = vdwg.mxu0
        %2646 = vrot.lane.b32.xlu0 %v1145, 112
        %v2647 = vpop.permute.xlu0 %2646
        %v2650 = vsel %vm1303, %v2569, 0
        %2652 = vmatprep.subr.mxu0 0.0
        %2653 = vmatpush1.msra.mxu0 0.0
        %2654 = vmatprep.subr.mxu0 0.0
        %2655 = vmatpush1.msra.mxu0 0.0
        %2656 = vmatprep.subr.mxu0 0.0
        %2657 = vmatpush1.msra.mxu0 0.0
        %2658 = vmatprep.subr.mxu0 0.0
        %2659 = vmatpush1.msra.mxu0 0.0
        %2660 = vmatprep.subr.mxu0 0.0
        %2661 = vmatpush1.msra.mxu0 0.0
        %2662 = vmatprep.subr.mxu0 0.0
        %2663 = vmatpush1.msra.mxu0 0.0
        %2664 = vmatprep.subr.mxu0 0.0
        %2665 = vmatpush1.msra.mxu0 0.0
        %2666 = vmatprep.subr.mxu0 0.0
        %2667 = vmatpush1.msra.mxu0 0.0
        %2668 = vmatprep.subr.mxu0 0.0
        %2669 = vmatpush1.msra.mxu0 0.0
        %2670 = vmatprep.subr.mxu0 0.0
        %2671 = vmatpush1.msra.mxu0 0.0
        %2672 = vmatprep.subr.mxu0 0.0
        %2673 = vmatpush1.msra.mxu0 0.0
        %2674 = vmatprep.subr.mxu0 0.0
        %2675 = vmatpush1.msra.mxu0 0.0
        %2676 = vmatprep.subr.mxu0 0.0
        %2677 = vmatpush1.msra.mxu0 0.0
        %2678 = vmatprep.subr.mxu0 0.0
        %2679 = vmatpush1.msra.mxu0 0.0
        %2680 = vmatprep.subr.mxu0 0.0
        %2681 = vmatpush1.msra.mxu0 0.0
        %2682 = vmatprep.subr.mxu0 0.0
        %2683 = vmatpush1.msra.mxu0 %v2647
        %2684 = vmatprep.subr.mxu0 0.0
        %2685 = vmatpush2.msra.mxu0 0.0
        %2686 = vmatprep.subr.mxu0 0.0
        %2687 = vmatpush2.msra.mxu0 0.0
        %2688 = vmatprep.subr.mxu0 0.0
        %2689 = vmatpush2.msra.mxu0 0.0
        %2690 = vmatprep.subr.mxu0 0.0
        %2691 = vmatpush2.msra.mxu0 0.0
        %2692 = vmatprep.subr.mxu0 0.0
        %2693 = vmatpush2.msra.mxu0 0.0
        %2694 = vmatprep.subr.mxu0 0.0
        %2695 = vmatpush2.msra.mxu0 0.0
        %2696 = vmatprep.subr.mxu0 0.0
        %2697 = vmatpush2.msra.mxu0 0.0
        %2698 = vmatprep.subr.mxu0 0.0
        %2699 = vmatpush2.msra.mxu0 0.0
        %2700 = vmatprep.subr.mxu0 0.0
        %2701 = vmatpush2.msra.mxu0 0.0
        %2702 = vmatprep.subr.mxu0 0.0
        %2703 = vmatpush2.msra.mxu0 0.0
        %2704 = vmatprep.subr.mxu0 0.0
        %2705 = vmatpush2.msra.mxu0 0.0
        %2706 = vmatprep.subr.mxu0 0.0
        %2707 = vmatpush2.msra.mxu0 0.0
        %2708 = vmatprep.subr.mxu0 0.0
        %2709 = vmatpush2.msra.mxu0 0.0
        %2710 = vmatprep.subr.mxu0 0.0
        %2711 = vmatpush2.msra.mxu0 0.0
        %2712 = vmatprep.subr.mxu0 0.0
        %2713 = vmatpush2.msra.mxu0 0.0
        %2714 = vmatprep.subr.mxu0 0.0
        %2715 = vmatpush2.msra.mxu0 0.0
        %2716 = vmatprep.mubr.f32.mxu0 0.0
        %2717 = vmatmul.mubr.f32.gmra.mxu0 %v2650
        %v2718 = vpop.f32.mrf.mxu0
        %v2719 = vadd.f32 0.0, %v2718
        %v2720 = vpop.f32.mrf.mxu0
        %2721 = vdwg.mxu0
        %v2722 = vlaneseq
        %v2723 = vshrl.u32 %v2722, 7
        %v2724 = vsub.s32 3, %v2723
        %v2725 = vrot.slane %v1148, %v2724
        %v2726 = vlaneseq
        %v2727 = vshrl.u32 %v2726, 7
        %v2728 = vsub.s32 7, %v2727
        %v2729 = vrot.slane %v1148, %v2728
        %v2732 = vlaneseq
        %v2733 = vshrl.u32 %v2732, 7
        %v2734 = vsub.s32 3, %v2733
        %v2735 = vrot.slane %v2725, %v2734
        %v2736 = vlaneseq
        %v2737 = vshrl.u32 %v2736, 7
        %v2738 = vsub.s32 3, %v2737
        %v2739 = vrot.slane %v2729, %v2738
        %v2740 = vsel %vm885, %v2735, 0.0
        %v2741 = vsel %vm886, %v2739, 0.0
        %v2742 = vsel %vm887, %v2735, 0.0
        %v2743 = vsel %vm888, %v2739, 0.0
        %v2744 = vsel %vm889, %v2735, 0.0
        %v2745 = vsel %vm890, %v2739, 0.0
        %v2746 = vsel %vm891, %v2735, 0.0
        %v2747 = vsel %vm892, %v2739, 0.0
        %v2748 = vsel %vm893, %v2735, 0.0
        %v2749 = vsel %vm894, %v2739, 0.0
        %v2750 = vsel %vm895, %v2735, 0.0
        %v2751 = vsel %vm896, %v2739, 0.0
        %v2752 = vsel %vm897, %v2735, 0.0
        %v2753 = vsel %vm898, %v2739, 0.0
        %v2754 = vsel %vm899, %v2735, 0.0
        %v2755 = vsel %vm900, %v2739, 0.0
        %v2756 = vsel %vm901, %v2735, 0.0
        %v2757 = vsel %vm902, %v2739, 0.0
        %v2758 = vsel %vm903, %v2735, 0.0
        %v2759 = vsel %vm904, %v2739, 0.0
        %v2760 = vsel %vm905, %v2735, 0.0
        %v2761 = vsel %vm906, %v2739, 0.0
        %v2762 = vsel %vm907, %v2735, 0.0
        %v2763 = vsel %vm908, %v2739, 0.0
        %v2764 = vsel %vm909, %v2735, 0.0
        %v2765 = vsel %vm910, %v2739, 0.0
        %v2766 = vsel %vm911, %v2735, 0.0
        %v2767 = vsel %vm912, %v2739, 0.0
        %v2768 = vsel %vm913, %v2735, 0.0
        %v2769 = vsel %vm914, %v2739, 0.0
        %v2770 = vsel %vm915, %v2735, 0.0
        %v2771 = vsel %vm916, %v2739, 0.0
        %v2772 = vadd.f32 %v2740, %v2741
        %2773 = vadd.xlane.f32.xlu0 %v2772
        %v2774 = vpop.xlane.xlu0 %2773
        %v2775 = vadd.f32 %v2742, %v2743
        %2776 = vadd.xlane.f32.xlu0 %v2775
        %v2777 = vpop.xlane.xlu0 %2776
        %v2778 = vadd.f32 %v2744, %v2745
        %2779 = vadd.xlane.f32.xlu0 %v2778
        %v2780 = vpop.xlane.xlu0 %2779
        %v2781 = vadd.f32 %v2746, %v2747
        %2782 = vadd.xlane.f32.xlu0 %v2781
        %v2783 = vpop.xlane.xlu0 %2782
        %v2784 = vadd.f32 %v2748, %v2749
        %2785 = vadd.xlane.f32.xlu0 %v2784
        %v2786 = vpop.xlane.xlu0 %2785
        %v2787 = vadd.f32 %v2750, %v2751
        %2788 = vadd.xlane.f32.xlu0 %v2787
        %v2789 = vpop.xlane.xlu0 %2788
        %v2790 = vadd.f32 %v2752, %v2753
        %2791 = vadd.xlane.f32.xlu0 %v2790
        %v2792 = vpop.xlane.xlu0 %2791
        %v2793 = vadd.f32 %v2754, %v2755
        %2794 = vadd.xlane.f32.xlu0 %v2793
        %v2795 = vpop.xlane.xlu0 %2794
        %v2796 = vadd.f32 %v2756, %v2757
        %2797 = vadd.xlane.f32.xlu0 %v2796
        %v2798 = vpop.xlane.xlu0 %2797
        %v2799 = vadd.f32 %v2758, %v2759
        %2800 = vadd.xlane.f32.xlu0 %v2799
        %v2801 = vpop.xlane.xlu0 %2800
        %v2802 = vadd.f32 %v2760, %v2761
        %2803 = vadd.xlane.f32.xlu0 %v2802
        %v2804 = vpop.xlane.xlu0 %2803
        %v2805 = vadd.f32 %v2762, %v2763
        %2806 = vadd.xlane.f32.xlu0 %v2805
        %v2807 = vpop.xlane.xlu0 %2806
        %v2808 = vadd.f32 %v2764, %v2765
        %2809 = vadd.xlane.f32.xlu0 %v2808
        %v2810 = vpop.xlane.xlu0 %2809
        %v2811 = vadd.f32 %v2766, %v2767
        %2812 = vadd.xlane.f32.xlu0 %v2811
        %v2813 = vpop.xlane.xlu0 %2812
        %v2814 = vadd.f32 %v2768, %v2769
        %2815 = vadd.xlane.f32.xlu0 %v2814
        %v2816 = vpop.xlane.xlu0 %2815
        %v2817 = vadd.f32 %v2770, %v2771
        %2818 = vadd.xlane.f32.xlu0 %v2817
        %v2819 = vpop.xlane.xlu0 %2818
        %2820 = vrot.lane.b32.xlu0 %v1022, 104
        %v2821 = vpop.permute.xlu0 %2820
        %2822 = vrot.lane.b32.xlu0 %v1080, 104
        %v2823 = vpop.permute.xlu0 %2822
        %v2832 = vlaneseq
        %v2833 = vshrl.u32 %v2832, 7
        %v2834 = vsub.s32 %v835, %v2833
        %v2835 = vrot.slane %v2774, %v2834
        %v2836 = vlaneseq
        %v2837 = vshrl.u32 %v2836, 7
        %v2838 = vsub.s32 %v835, %v2837
        %v2839 = vrot.slane %v2777, %v2838
        %v2840 = vlaneseq
        %v2841 = vshrl.u32 %v2840, 7
        %v2842 = vsub.s32 %v835, %v2841
        %v2843 = vrot.slane %v2780, %v2842
        %v2844 = vlaneseq
        %v2845 = vshrl.u32 %v2844, 7
        %v2846 = vsub.s32 %v835, %v2845
        %v2847 = vrot.slane %v2783, %v2846
        %v2848 = vlaneseq
        %v2849 = vshrl.u32 %v2848, 7
        %v2850 = vsub.s32 %v835, %v2849
        %v2851 = vrot.slane %v2786, %v2850
        %v2852 = vlaneseq
        %v2853 = vshrl.u32 %v2852, 7
        %v2854 = vsub.s32 %v835, %v2853
        %v2855 = vrot.slane %v2789, %v2854
        %v2856 = vlaneseq
        %v2857 = vshrl.u32 %v2856, 7
        %v2858 = vsub.s32 %v835, %v2857
        %v2859 = vrot.slane %v2792, %v2858
        %v2860 = vlaneseq
        %v2861 = vshrl.u32 %v2860, 7
        %v2862 = vsub.s32 %v835, %v2861
        %v2863 = vrot.slane %v2795, %v2862
        %v2864 = vsel %vm1288, %v2839, %v2835
        %v2865 = vsel %vm1290, %v2843, %v2864
        %v2866 = vsel %vm1292, %v2847, %v2865
        %v2867 = vsel %vm1294, %v2851, %v2866
        %v2868 = vsel %vm1296, %v2855, %v2867
        %v2869 = vsel %vm1298, %v2859, %v2868
        %v2870 = vsel %vm1300, %v2863, %v2869
        %v2872 = vsel %vm1303, %v2821, 0
        %v2874 = vsel %vm1303, %v2823, 0
        %2876 = vmatprep.subr.mxu0 0.0
        %2877 = vmatpush1.xpose.msra.mxu0 0.0
        %2878 = vmatprep.subr.mxu0 0.0
        %2879 = vmatpush1.xpose.msra.mxu0 0.0
        %2880 = vmatprep.subr.mxu0 0.0
        %2881 = vmatpush1.xpose.msra.mxu0 0.0
        %2882 = vmatprep.subr.mxu0 0.0
        %2883 = vmatpush1.xpose.msra.mxu0 0.0
        %2884 = vmatprep.subr.mxu0 0.0
        %2885 = vmatpush1.xpose.msra.mxu0 0.0
        %2886 = vmatprep.subr.mxu0 0.0
        %2887 = vmatpush1.xpose.msra.mxu0 0.0
        %2888 = vmatprep.subr.mxu0 0.0
        %2889 = vmatpush1.xpose.msra.mxu0 0.0
        %2890 = vmatprep.subr.mxu0 0.0
        %2891 = vmatpush1.xpose.msra.mxu0 0.0
        %2892 = vmatprep.subr.mxu0 0.0
        %2893 = vmatpush1.xpose.msra.mxu0 0.0
        %2894 = vmatprep.subr.mxu0 0.0
        %2895 = vmatpush1.xpose.msra.mxu0 0.0
        %2896 = vmatprep.subr.mxu0 0.0
        %2897 = vmatpush1.xpose.msra.mxu0 0.0
        %2898 = vmatprep.subr.mxu0 0.0
        %2899 = vmatpush1.xpose.msra.mxu0 0.0
        %2900 = vmatprep.subr.mxu0 0.0
        %2901 = vmatpush1.xpose.msra.mxu0 0.0
        %2902 = vmatprep.subr.mxu0 0.0
        %2903 = vmatpush1.xpose.msra.mxu0 0.0
        %2904 = vmatprep.subr.mxu0 0.0
        %2905 = vmatpush1.xpose.msra.mxu0 0.0
        %2906 = vmatprep.subr.mxu0 0.0
        %2907 = vmatpush1.xpose.msra.mxu0 %v2874
        %2908 = vmatprep.subr.mxu0 0.0
        %2909 = vmatpush2.xpose.msra.mxu0 0.0
        %2910 = vmatprep.subr.mxu0 0.0
        %2911 = vmatpush2.xpose.msra.mxu0 0.0
        %2912 = vmatprep.subr.mxu0 0.0
        %2913 = vmatpush2.xpose.msra.mxu0 0.0
        %2914 = vmatprep.subr.mxu0 0.0
        %2915 = vmatpush2.xpose.msra.mxu0 0.0
        %2916 = vmatprep.subr.mxu0 0.0
        %2917 = vmatpush2.xpose.msra.mxu0 0.0
        %2918 = vmatprep.subr.mxu0 0.0
        %2919 = vmatpush2.xpose.msra.mxu0 0.0
        %2920 = vmatprep.subr.mxu0 0.0
        %2921 = vmatpush2.xpose.msra.mxu0 0.0
        %2922 = vmatprep.subr.mxu0 0.0
        %2923 = vmatpush2.xpose.msra.mxu0 0.0
        %2924 = vmatprep.subr.mxu0 0.0
        %2925 = vmatpush2.xpose.msra.mxu0 0.0
        %2926 = vmatprep.subr.mxu0 0.0
        %2927 = vmatpush2.xpose.msra.mxu0 0.0
        %2928 = vmatprep.subr.mxu0 0.0
        %2929 = vmatpush2.xpose.msra.mxu0 0.0
        %2930 = vmatprep.subr.mxu0 0.0
        %2931 = vmatpush2.xpose.msra.mxu0 0.0
        %2932 = vmatprep.subr.mxu0 0.0
        %2933 = vmatpush2.xpose.msra.mxu0 0.0
        %2934 = vmatprep.subr.mxu0 0.0
        %2935 = vmatpush2.xpose.msra.mxu0 0.0
        %2936 = vmatprep.subr.mxu0 0.0
        %2937 = vmatpush2.xpose.msra.mxu0 0.0
        %2938 = vmatprep.subr.mxu0 0.0
        %2939 = vmatpush2.xpose.msra.mxu0 0.0
        %2940 = vmatprep.mubr.f32.mxu0 0.0
        %2941 = vmatmul.mubr.f32.gmra.mxu0 %v2872
        %v2942 = vpop.f32.mrf.mxu0
        %v2943 = vadd.f32 %v2870, %v2942
        %v2944 = vpop.f32.mrf.mxu0
        %2945 = vdwg.mxu0
        %2946 = vrot.lane.b32.xlu0 %v1023, 104
        %v2947 = vpop.permute.xlu0 %2946
        %2948 = vrot.lane.b32.xlu0 %v1083, 104
        %v2949 = vpop.permute.xlu0 %2948
        %v2958 = vlaneseq
        %v2959 = vshrl.u32 %v2958, 7
        %v2960 = vsub.s32 %v835, %v2959
        %v2961 = vrot.slane %v2798, %v2960
        %v2962 = vlaneseq
        %v2963 = vshrl.u32 %v2962, 7
        %v2964 = vsub.s32 %v835, %v2963
        %v2965 = vrot.slane %v2801, %v2964
        %v2966 = vlaneseq
        %v2967 = vshrl.u32 %v2966, 7
        %v2968 = vsub.s32 %v835, %v2967
        %v2969 = vrot.slane %v2804, %v2968
        %v2970 = vlaneseq
        %v2971 = vshrl.u32 %v2970, 7
        %v2972 = vsub.s32 %v835, %v2971
        %v2973 = vrot.slane %v2807, %v2972
        %v2974 = vlaneseq
        %v2975 = vshrl.u32 %v2974, 7
        %v2976 = vsub.s32 %v835, %v2975
        %v2977 = vrot.slane %v2810, %v2976
        %v2978 = vlaneseq
        %v2979 = vshrl.u32 %v2978, 7
        %v2980 = vsub.s32 %v835, %v2979
        %v2981 = vrot.slane %v2813, %v2980
        %v2982 = vlaneseq
        %v2983 = vshrl.u32 %v2982, 7
        %v2984 = vsub.s32 %v835, %v2983
        %v2985 = vrot.slane %v2816, %v2984
        %v2986 = vlaneseq
        %v2987 = vshrl.u32 %v2986, 7
        %v2988 = vsub.s32 %v835, %v2987
        %v2989 = vrot.slane %v2819, %v2988
        %v2990 = vsel %vm1288, %v2965, %v2961
        %v2991 = vsel %vm1290, %v2969, %v2990
        %v2992 = vsel %vm1292, %v2973, %v2991
        %v2993 = vsel %vm1294, %v2977, %v2992
        %v2994 = vsel %vm1296, %v2981, %v2993
        %v2995 = vsel %vm1298, %v2985, %v2994
        %v2996 = vsel %vm1300, %v2989, %v2995
        %v2998 = vsel %vm1303, %v2947, 0
        %v3000 = vsel %vm1303, %v2949, 0
        %3002 = vmatprep.subr.mxu0 0.0
        %3003 = vmatpush1.xpose.msra.mxu0 0.0
        %3004 = vmatprep.subr.mxu0 0.0
        %3005 = vmatpush1.xpose.msra.mxu0 0.0
        %3006 = vmatprep.subr.mxu0 0.0
        %3007 = vmatpush1.xpose.msra.mxu0 0.0
        %3008 = vmatprep.subr.mxu0 0.0
        %3009 = vmatpush1.xpose.msra.mxu0 0.0
        %3010 = vmatprep.subr.mxu0 0.0
        %3011 = vmatpush1.xpose.msra.mxu0 0.0
        %3012 = vmatprep.subr.mxu0 0.0
        %3013 = vmatpush1.xpose.msra.mxu0 0.0
        %3014 = vmatprep.subr.mxu0 0.0
        %3015 = vmatpush1.xpose.msra.mxu0 0.0
        %3016 = vmatprep.subr.mxu0 0.0
        %3017 = vmatpush1.xpose.msra.mxu0 0.0
        %3018 = vmatprep.subr.mxu0 0.0
        %3019 = vmatpush1.xpose.msra.mxu0 0.0
        %3020 = vmatprep.subr.mxu0 0.0
        %3021 = vmatpush1.xpose.msra.mxu0 0.0
        %3022 = vmatprep.subr.mxu0 0.0
        %3023 = vmatpush1.xpose.msra.mxu0 0.0
        %3024 = vmatprep.subr.mxu0 0.0
        %3025 = vmatpush1.xpose.msra.mxu0 0.0
        %3026 = vmatprep.subr.mxu0 0.0
        %3027 = vmatpush1.xpose.msra.mxu0 0.0
        %3028 = vmatprep.subr.mxu0 0.0
        %3029 = vmatpush1.xpose.msra.mxu0 0.0
        %3030 = vmatprep.subr.mxu0 0.0
        %3031 = vmatpush1.xpose.msra.mxu0 0.0
        %3032 = vmatprep.subr.mxu0 0.0
        %3033 = vmatpush1.xpose.msra.mxu0 %v3000
        %3034 = vmatprep.subr.mxu0 0.0
        %3035 = vmatpush2.xpose.msra.mxu0 0.0
        %3036 = vmatprep.subr.mxu0 0.0
        %3037 = vmatpush2.xpose.msra.mxu0 0.0
        %3038 = vmatprep.subr.mxu0 0.0
        %3039 = vmatpush2.xpose.msra.mxu0 0.0
        %3040 = vmatprep.subr.mxu0 0.0
        %3041 = vmatpush2.xpose.msra.mxu0 0.0
        %3042 = vmatprep.subr.mxu0 0.0
        %3043 = vmatpush2.xpose.msra.mxu0 0.0
        %3044 = vmatprep.subr.mxu0 0.0
        %3045 = vmatpush2.xpose.msra.mxu0 0.0
        %3046 = vmatprep.subr.mxu0 0.0
        %3047 = vmatpush2.xpose.msra.mxu0 0.0
        %3048 = vmatprep.subr.mxu0 0.0
        %3049 = vmatpush2.xpose.msra.mxu0 0.0
        %3050 = vmatprep.subr.mxu0 0.0
        %3051 = vmatpush2.xpose.msra.mxu0 0.0
        %3052 = vmatprep.subr.mxu0 0.0
        %3053 = vmatpush2.xpose.msra.mxu0 0.0
        %3054 = vmatprep.subr.mxu0 0.0
        %3055 = vmatpush2.xpose.msra.mxu0 0.0
        %3056 = vmatprep.subr.mxu0 0.0
        %3057 = vmatpush2.xpose.msra.mxu0 0.0
        %3058 = vmatprep.subr.mxu0 0.0
        %3059 = vmatpush2.xpose.msra.mxu0 0.0
        %3060 = vmatprep.subr.mxu0 0.0
        %3061 = vmatpush2.xpose.msra.mxu0 0.0
        %3062 = vmatprep.subr.mxu0 0.0
        %3063 = vmatpush2.xpose.msra.mxu0 0.0
        %3064 = vmatprep.subr.mxu0 0.0
        %3065 = vmatpush2.xpose.msra.mxu0 0.0
        %3066 = vmatprep.mubr.f32.mxu0 0.0
        %3067 = vmatmul.mubr.f32.gmra.mxu0 %v2998
        %v3068 = vpop.f32.mrf.mxu0
        %v3069 = vadd.f32 %v2996, %v3068
        %v3070 = vpop.f32.mrf.mxu0
        %3071 = vdwg.mxu0
        %v3072 = vsel %vm1303, %v2943, -inf
        %3073 = vmax.xlane.f32.xlu0 %v3072
        %v3074 = vpop.xlane.xlu0 %3073
        %v3075 = vsel %vm1303, %v3069, -inf
        %3076 = vmax.xlane.f32.xlu0 %v3075
        %v3077 = vpop.xlane.xlu0 %3076
        %v3078 = vsub.f32 %v2943, %v3074
        %v3079 = vsub.f32 %v3069, %v3077
        %v3080 = vmul.f32 %v3078, 1.442695
        %v3081 = vpow.pop %v3080
        %v3082 = vmul.f32 %v3079, 1.442695
        %v3083 = vpow.pop %v3082
        %v3084 = vsel %vm1303, %v3081, 0.0
        %3085 = vadd.xlane.f32.xlu0 %v3084
        %v3086 = vpop.xlane.xlu0 %3085
        %v3087 = vsel %vm1303, %v3083, 0.0
        %3088 = vadd.xlane.f32.xlu0 %v3087
        %v3089 = vpop.xlane.xlu0 %3088
        %v3090 = vrcp.pop %v3086
        %v3091 = vrcp.pop %v3089
        %v3092 = vmul.f32 %v3081, %v3090
        %v3093 = vmul.f32 %v3083, %v3091
        %3094 = vrot.lane.b32.xlu0 %v1142, 104
        %v3095 = vpop.permute.xlu0 %3094
        %v3098 = vsel %vm1303, %v3092, 0
        %3100 = vmatprep.subr.mxu0 0.0
        %3101 = vmatpush1.msra.mxu0 0.0
        %3102 = vmatprep.subr.mxu0 0.0
        %3103 = vmatpush1.msra.mxu0 0.0
        %3104 = vmatprep.subr.mxu0 0.0
        %3105 = vmatpush1.msra.mxu0 0.0
        %3106 = vmatprep.subr.mxu0 0.0
        %3107 = vmatpush1.msra.mxu0 0.0
        %3108 = vmatprep.subr.mxu0 0.0
        %3109 = vmatpush1.msra.mxu0 0.0
        %3110 = vmatprep.subr.mxu0 0.0
        %3111 = vmatpush1.msra.mxu0 0.0
        %3112 = vmatprep.subr.mxu0 0.0
        %3113 = vmatpush1.msra.mxu0 0.0
        %3114 = vmatprep.subr.mxu0 0.0
        %3115 = vmatpush1.msra.mxu0 0.0
        %3116 = vmatprep.subr.mxu0 0.0
        %3117 = vmatpush1.msra.mxu0 0.0
        %3118 = vmatprep.subr.mxu0 0.0
        %3119 = vmatpush1.msra.mxu0 0.0
        %3120 = vmatprep.subr.mxu0 0.0
        %3121 = vmatpush1.msra.mxu0 0.0
        %3122 = vmatprep.subr.mxu0 0.0
        %3123 = vmatpush1.msra.mxu0 0.0
        %3124 = vmatprep.subr.mxu0 0.0
        %3125 = vmatpush1.msra.mxu0 0.0
        %3126 = vmatprep.subr.mxu0 0.0
        %3127 = vmatpush1.msra.mxu0 0.0
        %3128 = vmatprep.subr.mxu0 0.0
        %3129 = vmatpush1.msra.mxu0 0.0
        %3130 = vmatprep.subr.mxu0 0.0
        %3131 = vmatpush1.msra.mxu0 %v3095
        %3132 = vmatprep.subr.mxu0 0.0
        %3133 = vmatpush2.msra.mxu0 0.0
        %3134 = vmatprep.subr.mxu0 0.0
        %3135 = vmatpush2.msra.mxu0 0.0
        %3136 = vmatprep.subr.mxu0 0.0
        %3137 = vmatpush2.msra.mxu0 0.0
        %3138 = vmatprep.subr.mxu0 0.0
        %3139 = vmatpush2.msra.mxu0 0.0
        %3140 = vmatprep.subr.mxu0 0.0
        %3141 = vmatpush2.msra.mxu0 0.0
        %3142 = vmatprep.subr.mxu0 0.0
        %3143 = vmatpush2.msra.mxu0 0.0
        %3144 = vmatprep.subr.mxu0 0.0
        %3145 = vmatpush2.msra.mxu0 0.0
        %3146 = vmatprep.subr.mxu0 0.0
        %3147 = vmatpush2.msra.mxu0 0.0
        %3148 = vmatprep.subr.mxu0 0.0
        %3149 = vmatpush2.msra.mxu0 0.0
        %3150 = vmatprep.subr.mxu0 0.0
        %3151 = vmatpush2.msra.mxu0 0.0
        %3152 = vmatprep.subr.mxu0 0.0
        %3153 = vmatpush2.msra.mxu0 0.0
        %3154 = vmatprep.subr.mxu0 0.0
        %3155 = vmatpush2.msra.mxu0 0.0
        %3156 = vmatprep.subr.mxu0 0.0
        %3157 = vmatpush2.msra.mxu0 0.0
        %3158 = vmatprep.subr.mxu0 0.0
        %3159 = vmatpush2.msra.mxu0 0.0
        %3160 = vmatprep.subr.mxu0 0.0
        %3161 = vmatpush2.msra.mxu0 0.0
        %3162 = vmatprep.subr.mxu0 0.0
        %3163 = vmatpush2.msra.mxu0 0.0
        %3164 = vmatprep.mubr.f32.mxu0 0.0
        %3165 = vmatmul.mubr.f32.gmra.mxu0 %v3098
        %v3166 = vpop.f32.mrf.mxu0
        %v3167 = vadd.f32 0.0, %v3166
        %v3168 = vpop.f32.mrf.mxu0
        %3169 = vdwg.mxu0
        %3170 = vrot.lane.b32.xlu0 %v1145, 104
        %v3171 = vpop.permute.xlu0 %3170
        %v3174 = vsel %vm1303, %v3093, 0
        %3176 = vmatprep.subr.mxu0 0.0
        %3177 = vmatpush1.msra.mxu0 0.0
        %3178 = vmatprep.subr.mxu0 0.0
        %3179 = vmatpush1.msra.mxu0 0.0
        %3180 = vmatprep.subr.mxu0 0.0
        %3181 = vmatpush1.msra.mxu0 0.0
        %3182 = vmatprep.subr.mxu0 0.0
        %3183 = vmatpush1.msra.mxu0 0.0
        %3184 = vmatprep.subr.mxu0 0.0
        %3185 = vmatpush1.msra.mxu0 0.0
        %3186 = vmatprep.subr.mxu0 0.0
        %3187 = vmatpush1.msra.mxu0 0.0
        %3188 = vmatprep.subr.mxu0 0.0
        %3189 = vmatpush1.msra.mxu0 0.0
        %3190 = vmatprep.subr.mxu0 0.0
        %3191 = vmatpush1.msra.mxu0 0.0
        %3192 = vmatprep.subr.mxu0 0.0
        %3193 = vmatpush1.msra.mxu0 0.0
        %3194 = vmatprep.subr.mxu0 0.0
        %3195 = vmatpush1.msra.mxu0 0.0
        %3196 = vmatprep.subr.mxu0 0.0
        %3197 = vmatpush1.msra.mxu0 0.0
        %3198 = vmatprep.subr.mxu0 0.0
        %3199 = vmatpush1.msra.mxu0 0.0
        %3200 = vmatprep.subr.mxu0 0.0
        %3201 = vmatpush1.msra.mxu0 0.0
        %3202 = vmatprep.subr.mxu0 0.0
        %3203 = vmatpush1.msra.mxu0 0.0
        %3204 = vmatprep.subr.mxu0 0.0
        %3205 = vmatpush1.msra.mxu0 0.0
        %3206 = vmatprep.subr.mxu0 0.0
        %3207 = vmatpush1.msra.mxu0 %v3171
        %3208 = vmatprep.subr.mxu0 0.0
        %3209 = vmatpush2.msra.mxu0 0.0
        %3210 = vmatprep.subr.mxu0 0.0
        %3211 = vmatpush2.msra.mxu0 0.0
        %3212 = vmatprep.subr.mxu0 0.0
        %3213 = vmatpush2.msra.mxu0 0.0
        %3214 = vmatprep.subr.mxu0 0.0
        %3215 = vmatpush2.msra.mxu0 0.0
        %3216 = vmatprep.subr.mxu0 0.0
        %3217 = vmatpush2.msra.mxu0 0.0
        %3218 = vmatprep.subr.mxu0 0.0
        %3219 = vmatpush2.msra.mxu0 0.0
        %3220 = vmatprep.subr.mxu0 0.0
        %3221 = vmatpush2.msra.mxu0 0.0
        %3222 = vmatprep.subr.mxu0 0.0
        %3223 = vmatpush2.msra.mxu0 0.0
        %3224 = vmatprep.subr.mxu0 0.0
        %3225 = vmatpush2.msra.mxu0 0.0
        %3226 = vmatprep.subr.mxu0 0.0
        %3227 = vmatpush2.msra.mxu0 0.0
        %3228 = vmatprep.subr.mxu0 0.0
        %3229 = vmatpush2.msra.mxu0 0.0
        %3230 = vmatprep.subr.mxu0 0.0
        %3231 = vmatpush2.msra.mxu0 0.0
        %3232 = vmatprep.subr.mxu0 0.0
        %3233 = vmatpush2.msra.mxu0 0.0
        %3234 = vmatprep.subr.mxu0 0.0
        %3235 = vmatpush2.msra.mxu0 0.0
        %3236 = vmatprep.subr.mxu0 0.0
        %3237 = vmatpush2.msra.mxu0 0.0
        %3238 = vmatprep.subr.mxu0 0.0
        %3239 = vmatpush2.msra.mxu0 0.0
        %3240 = vmatprep.mubr.f32.mxu0 0.0
        %3241 = vmatmul.mubr.f32.gmra.mxu0 %v3174
        %v3242 = vpop.f32.mrf.mxu0
        %v3243 = vadd.f32 0.0, %v3242
        %v3244 = vpop.f32.mrf.mxu0
        %3245 = vdwg.mxu0
        %3248 = vrot.lane.b32.xlu0 %v2118, 8
        %v3249 = vpop.permute.xlu0 %3248
        %3250 = vrot.lane.b32.xlu0 %v2195, 8
        %v3251 = vpop.permute.xlu0 %3250
        %3256 = vrot.lane.b32.xlu0 %v2643, 16
        %v3257 = vpop.permute.xlu0 %3256
        %3258 = vrot.lane.b32.xlu0 %v2719, 16
        %v3259 = vpop.permute.xlu0 %3258
        %3264 = vrot.lane.b32.xlu0 %v3167, 24
        %v3265 = vpop.permute.xlu0 %3264
        %3266 = vrot.lane.b32.xlu0 %v3243, 24
        %v3267 = vpop.permute.xlu0 %3266
        %v3270 = vsel %vm1303, %v1596, %v3249
        %v3271 = vsel %vm1303, %v1669, %v3251
        %vm3272 = vcmask 130048
        %v3273 = vsel %vm3272, %v3270, %v3257
        %v3274 = vsel %vm3272, %v3271, %v3259
        %vm3275 = vcmask 195584
        %v3276 = vsel %vm3275, %v3273, %v3265
        %v3277 = vsel %vm3275, %v3274, %v3267
        %v3278 = vpack.c.bf16 %v3277, %v3276
        %s3279 = scalar_lea.vmem %s654, 48
        %v3280 = vld [vmem:[%s3279] sm:$0xf]
        %v3281 = vld [vmem:[%s3279 + $0x4] sm:$0xf]
        %v3282 = vld [vmem:[%s3279 + $0x8] sm:$0xf]
        %v3283 = vld [vmem:[%s3279 + $0xc] sm:$0xf]
        %v3288 = vunpack.c.l.b16 %v3280
        %v3289 = vunpack.c.l.b16 %v3281
        %v3290 = vunpack.c.l.b16 %v3282
        %v3291 = vunpack.c.l.b16 %v3283
        %v3292 = vpack.c.b16 %v3289, %v3288
        %v3293 = vpack.c.b16 %v3291, %v3290
        %v3297 = vsel %vm917, %v3278, 0
        %3299 = vmatprep.subr.bf16.mxu0 0
        %3300 = vmatpush1.bf16.msra.mxu0 0
        %3301 = vmatprep.subr.bf16.mxu0 0
        %3302 = vmatpush1.bf16.msra.mxu0 0
        %3303 = vmatprep.subr.bf16.mxu0 0
        %3304 = vmatpush1.bf16.msra.mxu0 0
        %3305 = vmatprep.subr.bf16.mxu0 0
        %3306 = vmatpush1.bf16.msra.mxu0 0
        %3307 = vmatprep.subr.bf16.mxu0 0
        %3308 = vmatpush1.bf16.msra.mxu0 0
        %3309 = vmatprep.subr.bf16.mxu0 0
        %3310 = vmatpush1.bf16.msra.mxu0 0
        %3311 = vmatprep.subr.bf16.mxu0 0
        %3312 = vmatpush1.bf16.msra.mxu0 %v3293
        %3313 = vmatprep.subr.bf16.mxu0 0
        %3314 = vmatpush1.bf16.msra.mxu0 %v3292
        %3315 = vmatprep.subr.bf16.mxu0 0
        %3316 = vmatpush2.bf16.msra.mxu0 0
        %3317 = vmatprep.subr.bf16.mxu0 0
        %3318 = vmatpush2.bf16.msra.mxu0 0
        %3319 = vmatprep.subr.bf16.mxu0 0
        %3320 = vmatpush2.bf16.msra.mxu0 0
        %3321 = vmatprep.subr.bf16.mxu0 0
        %3322 = vmatpush2.bf16.msra.mxu0 0
        %3323 = vmatprep.subr.bf16.mxu0 0
        %3324 = vmatpush2.bf16.msra.mxu0 0
        %3325 = vmatprep.subr.bf16.mxu0 0
        %3326 = vmatpush2.bf16.msra.mxu0 0
        %3327 = vmatprep.subr.bf16.mxu0 0
        %3328 = vmatpush2.bf16.msra.mxu0 0
        %3329 = vmatprep.subr.bf16.mxu0 0
        %3330 = vmatpush2.bf16.msra.mxu0 0
        %3331 = vmatprep.mubr.bf16.mxu0 0
        %3332 = vmatmul.mubr.bf16.gmra.mxu0 %v3297
        %v3333 = vpop.f32.mrf.mxu0
        %v3334 = vadd.f32 0.0, %v3333
        %v3335 = vpop.f32.mrf.mxu0
        %v3336 = vpop.f32.mrf.mxu0
        %v3337 = vadd.f32 0.0, %v3336
        %v3338 = vpop.f32.mrf.mxu0
        %3339 = vdwg.mxu0
        %v3340 = vadd.f32 %v814, %v3334
        %v3341 = vadd.f32 %v815, %v3337
        %v3342 = vlaneseq
        %v3343 = vshrl.u32 %v3342, 7
        %v3344 = vsub.s32 5, %v3343
        %v3345 = vrot.slane %v816, %v3344
        %v3346 = vadd.f32 %v3340, %v3345
        %v3347 = vadd.f32 %v3341, %v3345
        %v3348 = vsel %vm917, %v3346, 0.0
        %3349 = vadd.xlane.f32.xlu0 %v3348
        %v3350 = vpop.xlane.xlu0 %3349
        %v3351 = vsel %vm917, %v3347, 0.0
        %3352 = vadd.xlane.f32.xlu0 %v3351
        %v3353 = vpop.xlane.xlu0 %3352
        %v3354 = vmul.f32 %v3350, %v924
        %v3355 = vmul.f32 %v3353, %v924
        %v3356 = vsub.f32 %v3346, %v3354
        %v3357 = vsub.f32 %v3347, %v3355
        %v3358 = vmul.f32 %v3356, %v3356
        %v3359 = vmul.f32 %v3357, %v3357
        %v3360 = vsel %vm917, %v3358, 0.0
        %3361 = vadd.xlane.f32.xlu0 %v3360
        %v3362 = vpop.xlane.xlu0 %3361
        %v3363 = vsel %vm917, %v3359, 0.0
        %3364 = vadd.xlane.f32.xlu0 %v3363
        %v3365 = vpop.xlane.xlu0 %3364
        %v3366 = vmul.f32 %v3362, %v924
        %v3367 = vmul.f32 %v3365, %v924
        %v3368 = vadd.f32 %v3366, 1e-05
        %v3369 = vadd.f32 %v3367, 1e-05
        %v3370 = vrsqrt.pop %v3368
        %v3371 = vrsqrt.pop %v3369
        %v3372 = vmul.f32 %v3356, %v3370
        %v3373 = vmul.f32 %v3357, %v3371
        %v3374 = vlaneseq
        %v3375 = vshrl.u32 %v3374, 7
        %v3376 = vsub.s32 6, %v3375
        %v3377 = vrot.slane %v816, %v3376
        %v3378 = vmul.f32 %v3372, %v3377
        %v3379 = vmul.f32 %v3373, %v3377
        %v3380 = vlaneseq
        %v3381 = vshrl.u32 %v3380, 7
        %v3382 = vsub.s32 7, %v3381
        %v3383 = vrot.slane %v816, %v3382
        %v3384 = vadd.f32 %v3378, %v3383
        %v3385 = vadd.f32 %v3379, %v3383
        %v3386 = vpack.c.bf16 %v3385, %v3384
        %v3387 = vld [vmem:[%s659] sm:$0xf]
        %v3388 = vld [vmem:[%s659 + $0x4] sm:$0xf]
        %v3389 = vld [vmem:[%s659 + $0x8] sm:$0xf]
        %v3390 = vld [vmem:[%s659 + $0xc] sm:$0xf]
        %v3391 = vld [vmem:[%s662] sm:$0x1]
        %v3393 = vlaneseq
        %v3394 = vshrl.u32 %v3393, 7
        %v3395 = vsub.s32 0, %v3394
        %v3396 = vrot.slane %v3391, %v3395
        %v3402 = vunpack.c.l.b16 %v3387
        %v3403 = vunpack.c.l.b16 %v3388
        %v3404 = vunpack.c.l.b16 %v3389
        %v3405 = vunpack.c.l.b16 %v3390
        %v3406 = vpack.c.b16 %v3403, %v3402
        %v3407 = vpack.c.b16 %v3405, %v3404
        %v3411 = vsel %vm917, %v3386, 0
        %3413 = vmatprep.subr.bf16.mxu0 0
        %3414 = vmatpush1.bf16.msra.mxu0 0
        %3415 = vmatprep.subr.bf16.mxu0 0
        %3416 = vmatpush1.bf16.msra.mxu0 0
        %3417 = vmatprep.subr.bf16.mxu0 0
        %3418 = vmatpush1.bf16.msra.mxu0 0
        %3419 = vmatprep.subr.bf16.mxu0 0
        %3420 = vmatpush1.bf16.msra.mxu0 0
        %3421 = vmatprep.subr.bf16.mxu0 0
        %3422 = vmatpush1.bf16.msra.mxu0 0
        %3423 = vmatprep.subr.bf16.mxu0 0
        %3424 = vmatpush1.bf16.msra.mxu0 0
        %3425 = vmatprep.subr.bf16.mxu0 0
        %3426 = vmatpush1.bf16.msra.mxu0 %v3407
        %3427 = vmatprep.subr.bf16.mxu0 0
        %3428 = vmatpush1.bf16.msra.mxu0 %v3406
        %3429 = vmatprep.subr.bf16.mxu0 0
        %3430 = vmatpush2.bf16.msra.mxu0 0
        %3431 = vmatprep.subr.bf16.mxu0 0
        %3432 = vmatpush2.bf16.msra.mxu0 0
        %3433 = vmatprep.subr.bf16.mxu0 0
        %3434 = vmatpush2.bf16.msra.mxu0 0
        %3435 = vmatprep.subr.bf16.mxu0 0
        %3436 = vmatpush2.bf16.msra.mxu0 0
        %3437 = vmatprep.subr.bf16.mxu0 0
        %3438 = vmatpush2.bf16.msra.mxu0 0
        %3439 = vmatprep.subr.bf16.mxu0 0
        %3440 = vmatpush2.bf16.msra.mxu0 0
        %3441 = vmatprep.subr.bf16.mxu0 0
        %3442 = vmatpush2.bf16.msra.mxu0 0
        %3443 = vmatprep.subr.bf16.mxu0 0
        %3444 = vmatpush2.bf16.msra.mxu0 0
        %3445 = vmatprep.mubr.bf16.mxu0 0
        %3446 = vmatmul.mubr.bf16.gmra.mxu0 %v3411
        %v3447 = vpop.f32.mrf.mxu0
        %v3448 = vadd.f32 %v3396, %v3447
        %v3449 = vpop.f32.mrf.mxu0
        %v3450 = vpop.f32.mrf.mxu0
        %v3451 = vadd.f32 %v3396, %v3450
        %v3452 = vpop.f32.mrf.mxu0
        %3453 = vdwg.mxu0
        %v3454 = vmul.f32 %v3448, 0.5
        %v3455 = vmul.f32 %v3451, 0.5
        %v3456 = vmul.f32 %v3448, 0.70710677
        %v3457 = vmul.f32 %v3451, 0.70710677
        %vm3458 = vcmp.ge.f32.partialorder %v3456, 0.0
        %vm3459 = vcmp.ge.f32.partialorder %v3457, 0.0
        %v3460 = vsel %vm3458, 1.0, -1.0
        %v3461 = vsel %vm3459, 1.0, -1.0
        %v3462 = vand.u32 2147483647, %v3456
        %v3463 = vand.u32 2147483647, %v3457
        %v3464 = vmul.f32 %v3462, 0.3275911
        %v3465 = vmul.f32 %v3463, 0.3275911
        %v3466 = vadd.f32 %v3464, 1.0
        %v3467 = vadd.f32 %v3465, 1.0
        %v3468 = vrcp.pop %v3466
        %v3469 = vmul.f32 1.0, %v3468
        %v3470 = vrcp.pop %v3467
        %v3471 = vmul.f32 1.0, %v3470
        %v3472 = vmul.f32 %v3469, 1.0614054
        %v3473 = vmul.f32 %v3471, 1.0614054
        %v3474 = vadd.f32 %v3472, -1.4531521
        %v3475 = vadd.f32 %v3473, -1.4531521
        %v3476 = vmul.f32 %v3474, %v3469
        %v3477 = vmul.f32 %v3475, %v3471
        %v3478 = vadd.f32 %v3476, 1.4214138
        %v3479 = vadd.f32 %v3477, 1.4214138
        %v3480 = vmul.f32 %v3478, %v3469
        %v3481 = vmul.f32 %v3479, %v3471
        %v3482 = vadd.f32 %v3480, -0.28449672
        %v3483 = vadd.f32 %v3481, -0.28449672
        %v3484 = vmul.f32 %v3482, %v3469
        %v3485 = vmul.f32 %v3483, %v3471
        %v3486 = vadd.f32 %v3484, 0.2548296
        %v3487 = vadd.f32 %v3485, 0.2548296
        %v3488 = vmul.f32 %v3486, %v3469
        %v3489 = vmul.f32 %v3487, %v3471
        %v3490 = vsub.f32 0.0, %v3462
        %v3491 = vsub.f32 0.0, %v3463
        %v3492 = vmul.f32 %v3490, %v3462
        %v3493 = vmul.f32 %v3491, %v3463
        %v3494 = vmul.f32 %v3492, 1.442695
        %v3495 = vpow.pop %v3494
        %v3496 = vmul.f32 %v3493, 1.442695
        %v3497 = vpow.pop %v3496
        %v3498 = vmul.f32 %v3488, %v3495
        %v3499 = vmul.f32 %v3489, %v3497
        %v3500 = vsub.f32 1.0, %v3498
        %v3501 = vsub.f32 1.0, %v3499
        %v3502 = vmul.f32 %v3460, %v3500
        %v3503 = vmul.f32 %v3461, %v3501
        %v3504 = vadd.f32 %v3502, 1.0
        %v3505 = vadd.f32 %v3503, 1.0
        %v3506 = vmul.f32 %v3454, %v3504
        %v3507 = vmul.f32 %v3455, %v3505
        %v3508 = vpack.c.bf16 %v3507, %v3506
        %v3509 = vld [vmem:[%s667] sm:$0xf]
        %v3510 = vld [vmem:[%s667 + $0x4] sm:$0xf]
        %v3511 = vld [vmem:[%s667 + $0x8] sm:$0xf]
        %v3512 = vld [vmem:[%s667 + $0xc] sm:$0xf]
        %v3513 = vld [vmem:[%s667 + $0x10] sm:$0xf]
        %v3514 = vld [vmem:[%s667 + $0x14] sm:$0xf]
        %v3515 = vld [vmem:[%s667 + $0x18] sm:$0xf]
        %v3516 = vld [vmem:[%s667 + $0x1c] sm:$0xf]
        %v3525 = vunpack.c.l.b16 %v3509
        %v3526 = vunpack.c.l.b16 %v3510
        %v3527 = vunpack.c.l.b16 %v3511
        %v3528 = vunpack.c.l.b16 %v3512
        %v3529 = vunpack.c.l.b16 %v3513
        %v3530 = vunpack.c.l.b16 %v3514
        %v3531 = vunpack.c.l.b16 %v3515
        %v3532 = vunpack.c.l.b16 %v3516
        %v3533 = vpack.c.b16 %v3526, %v3525
        %v3534 = vpack.c.b16 %v3528, %v3527
        %v3535 = vpack.c.b16 %v3530, %v3529
        %v3536 = vpack.c.b16 %v3532, %v3531
        %vm3541 = vcmask 523264
        %v3543 = vsel %vm3541, %v3508, 0
        %3545 = vmatprep.subr.bf16.mxu0 0
        %3546 = vmatpush1.bf16.msra.mxu0 0
        %3547 = vmatprep.subr.bf16.mxu0 0
        %3548 = vmatpush1.bf16.msra.mxu0 0
        %3549 = vmatprep.subr.bf16.mxu0 0
        %3550 = vmatpush1.bf16.msra.mxu0 0
        %3551 = vmatprep.subr.bf16.mxu0 0
        %3552 = vmatpush1.bf16.msra.mxu0 0
        %3553 = vmatprep.subr.bf16.mxu0 0
        %3554 = vmatpush1.bf16.msra.mxu0 %v3536
        %3555 = vmatprep.subr.bf16.mxu0 0
        %3556 = vmatpush1.bf16.msra.mxu0 %v3535
        %3557 = vmatprep.subr.bf16.mxu0 0
        %3558 = vmatpush1.bf16.msra.mxu0 %v3534
        %3559 = vmatprep.subr.bf16.mxu0 0
        %3560 = vmatpush1.bf16.msra.mxu0 %v3533
        %3561 = vmatprep.subr.bf16.mxu0 0
        %3562 = vmatpush2.bf16.msra.mxu0 0
        %3563 = vmatprep.subr.bf16.mxu0 0
        %3564 = vmatpush2.bf16.msra.mxu0 0
        %3565 = vmatprep.subr.bf16.mxu0 0
        %3566 = vmatpush2.bf16.msra.mxu0 0
        %3567 = vmatprep.subr.bf16.mxu0 0
        %3568 = vmatpush2.bf16.msra.mxu0 0
        %3569 = vmatprep.subr.bf16.mxu0 0
        %3570 = vmatpush2.bf16.msra.mxu0 0
        %3571 = vmatprep.subr.bf16.mxu0 0
        %3572 = vmatpush2.bf16.msra.mxu0 0
        %3573 = vmatprep.subr.bf16.mxu0 0
        %3574 = vmatpush2.bf16.msra.mxu0 0
        %3575 = vmatprep.subr.bf16.mxu0 0
        %3576 = vmatpush2.bf16.msra.mxu0 0
        %3577 = vmatprep.mubr.bf16.mxu0 0
        %3578 = vmatmul.mubr.bf16.gmra.mxu0 %v3543
        %v3579 = vpop.f32.mrf.mxu0
        %v3580 = vadd.f32 0.0, %v3579
        %v3581 = vpop.f32.mrf.mxu0
        %v3582 = vpop.f32.mrf.mxu0
        %v3583 = vadd.f32 0.0, %v3582
        %v3584 = vpop.f32.mrf.mxu0
        %3585 = vdwg.mxu0
        %v3586 = vadd.f32 %v3346, %v3580
        %v3587 = vadd.f32 %v3347, %v3583
        %v3588 = vlaneseq
        %v3589 = vshrl.u32 %v3588, 7
        %v3590 = vsub.s32 0, %v3589
        %v3591 = vrot.slane %v817, %v3590
        %v3592 = vadd.f32 %v3586, %v3591
        %v3593 = vadd.f32 %v3587, %v3591
        %3594 = vst.msk [vmem:[#allocation2] sm:$0xff] %vm917, %v3592
        %3595 = vst.msk [vmem:[#allocation2 + $0x8] sm:$0xff] %vm917, %v3593
        %p3596 = scmp.eq.s32.totalorder %s34, 1
        // Predicated region
        $region85: #{gt_forward.1} parent=79 // pred_check
          %p3597 = pneg %p3596
        $region86: #{gt_forward.1} parent=79 // pred_check_branch
          %3599 = sbr.rel (%p3597) target = $region88
        $region87: #{gt_forward.1} parent=79 // pred_region
          %v3600 = vld [vmem:[%s12] sm:$0x1]
          %v3601 = vld [vmem:[%s12 + $0x1] sm:$0x1]
          %v3604 = vrot.slane %v3593, 7
          %v3605 = vsel %vm1288, %v3604, %v3592
          %vm3607 = vcmask 254976
          %v3608 = vsel %vm3607, %v3605, 0.0
          %3609 = vadd.xlane.f32.xlu0 %v3608
          %v3610 = vpop.xlane.xlu0 %3609
          %v3611 = vmul.f32 %v3610, %v924
          %v3613 = vrot.slane %v3611, 1
          %v3616 = vsub.f32 %v3592, %v3611
          %v3617 = vsub.f32 %v3593, %v3613
          %v3618 = vmul.f32 %v3616, %v3616
          %v3619 = vmul.f32 %v3617, %v3617
          %v3622 = vrot.slane %v3619, 7
          %v3623 = vsel %vm1288, %v3622, %v3618
          %v3625 = vsel %vm3607, %v3623, 0.0
          %3626 = vadd.xlane.f32.xlu0 %v3625
          %v3627 = vpop.xlane.xlu0 %3626
          %v3628 = vmul.f32 %v3627, %v924
          %v3629 = vadd.f32 %v3628, 1e-05
          %v3630 = vrsqrt.pop %v3629
          %v3632 = vrot.slane %v3630, 1
          %v3635 = vmul.f32 %v3616, %v3630
          %v3636 = vmul.f32 %v3617, %v3632
          %v3637 = vlaneseq
          %v3638 = vshrl.u32 %v3637, 7
          %v3639 = vsub.s32 0, %v3638
          %v3640 = vrot.slane %v3600, %v3639
          %v3641 = vmul.f32 %v3635, %v3640
          %v3642 = vmul.f32 %v3636, %v3640
          %v3643 = vlaneseq
          %v3644 = vshrl.u32 %v3643, 7
          %v3645 = vsub.s32 0, %v3644
          %v3646 = vrot.slane %v3601, %v3645
          %v3647 = vadd.f32 %v3641, %v3646
          %v3648 = vadd.f32 %v3642, %v3646
          %v3649 = vld [vmem:[%s13] sm:$0xff]
          %v3650 = vld [vmem:[%s13 + $0x8] sm:$0xff]
          %v3651 = vld [vmem:[%s13 + $0x10] sm:$0xff]
          %v3652 = vld [vmem:[%s13 + $0x18] sm:$0xff]
          %v3653 = vld [vmem:[%s14] sm:$0x1]
          %v3655 = vlaneseq
          %v3656 = vshrl.u32 %v3655, 7
          %v3657 = vsub.s32 0, %v3656
          %v3658 = vrot.slane %v3653, %v3657
          %v3662 = vrot.slane %v3648, 7
          %v3663 = vsel %vm1288, %v3662, %v3647
          %v3664 = vsel %vm917, %v3663, 0
          %3666 = vmatprep.subr.mxu0 0.0
          %3667 = vmatpush1.msra.mxu0 0.0
          %3668 = vmatprep.subr.mxu0 0.0
          %3669 = vmatpush1.msra.mxu0 0.0
          %3670 = vmatprep.subr.mxu0 0.0
          %3671 = vmatpush1.msra.mxu0 0.0
          %3672 = vmatprep.subr.mxu0 0.0
          %3673 = vmatpush1.msra.mxu0 0.0
          %3674 = vmatprep.subr.mxu0 0.0
          %3675 = vmatpush1.msra.mxu0 0.0
          %3676 = vmatprep.subr.mxu0 0.0
          %3677 = vmatpush1.msra.mxu0 0.0
          %3678 = vmatprep.subr.mxu0 0.0
          %3679 = vmatpush1.msra.mxu0 0.0
          %3680 = vmatprep.subr.mxu0 0.0
          %3681 = vmatpush1.msra.mxu0 0.0
          %3682 = vmatprep.subr.mxu0 0.0
          %3683 = vmatpush1.msra.mxu0 0.0
          %3684 = vmatprep.subr.mxu0 0.0
          %3685 = vmatpush1.msra.mxu0 0.0
          %3686 = vmatprep.subr.mxu0 0.0
          %3687 = vmatpush1.msra.mxu0 0.0
          %3688 = vmatprep.subr.mxu0 0.0
          %3689 = vmatpush1.msra.mxu0 0.0
          %3690 = vmatprep.subr.mxu0 0.0
          %3691 = vmatpush1.msra.mxu0 %v3652
          %3692 = vmatprep.subr.mxu0 0.0
          %3693 = vmatpush1.msra.mxu0 %v3651
          %3694 = vmatprep.subr.mxu0 0.0
          %3695 = vmatpush1.msra.mxu0 %v3650
          %3696 = vmatprep.subr.mxu0 0.0
          %3697 = vmatpush1.msra.mxu0 %v3649
          %3698 = vmatprep.subr.mxu0 0.0
          %3699 = vmatpush2.msra.mxu0 0.0
          %3700 = vmatprep.subr.mxu0 0.0
          %3701 = vmatpush2.msra.mxu0 0.0
          %3702 = vmatprep.subr.mxu0 0.0
          %3703 = vmatpush2.msra.mxu0 0.0
          %3704 = vmatprep.subr.mxu0 0.0
          %3705 = vmatpush2.msra.mxu0 0.0
          %3706 = vmatprep.subr.mxu0 0.0
          %3707 = vmatpush2.msra.mxu0 0.0
          %3708 = vmatprep.subr.mxu0 0.0
          %3709 = vmatpush2.msra.mxu0 0.0
          %3710 = vmatprep.subr.mxu0 0.0
          %3711 = vmatpush2.msra.mxu0 0.0
          %3712 = vmatprep.subr.mxu0 0.0
          %3713 = vmatpush2.msra.mxu0 0.0
          %3714 = vmatprep.subr.mxu0 0.0
          %3715 = vmatpush2.msra.mxu0 0.0
          %3716 = vmatprep.subr.mxu0 0.0
          %3717 = vmatpush2.msra.mxu0 0.0
          %3718 = vmatprep.subr.mxu0 0.0
          %3719 = vmatpush2.msra.mxu0 0.0
          %3720 = vmatprep.subr.mxu0 0.0
          %3721 = vmatpush2.msra.mxu0 0.0
          %3722 = vmatprep.subr.mxu0 0.0
          %3723 = vmatpush2.msra.mxu0 0.0
          %3724 = vmatprep.subr.mxu0 0.0
          %3725 = vmatpush2.msra.mxu0 0.0
          %3726 = vmatprep.subr.mxu0 0.0
          %3727 = vmatpush2.msra.mxu0 0.0
          %3728 = vmatprep.subr.mxu0 0.0
          %3729 = vmatpush2.msra.mxu0 0.0
          %3730 = vmatprep.mubr.f32.mxu0 0.0
          %3731 = vmatmul.mubr.f32.gmra.mxu0 %v3664
          %v3732 = vpop.f32.mrf.mxu0
          %v3733 = vadd.f32 %v3658, %v3732
          %v3734 = vpop.f32.mrf.mxu0
          %3735 = vdwg.mxu0
          %v3738 = vunpack.c.l.s4 1966171168
          %v3739 = vunpack.c.0.s8 %v3738
          %v3740 = vlaneseq
          %v3741 = vshrl.u32 %v3740, 7
          %v3742 = vsub.s32 %v3739, %v3741
          %v3743 = vrot.slane %v3733, %v3742
          %v3744 = vcombine.high %v3743, %v3743
          %v3746 = vunpack.c.l.s4 1966171168
          %v3747 = vunpack.c.0.s8 %v3746
          %v3748 = vlaneseq
          %v3749 = vshrl.u32 %v3748, 7
          %v3750 = vsub.s32 %v3747, %v3749
          %v3751 = vrot.slane %v3743, %v3750
          %v3753 = vunpack.c.l.s4 1966171168
          %v3754 = vunpack.c.0.s8 %v3753
          %v3755 = vlaneseq
          %v3756 = vshrl.u32 %v3755, 7
          %v3757 = vsub.s32 %v3754, %v3756
          %v3758 = vrot.slane %v3744, %v3757
          %vm3761 = vcmask 57344
          %3762 = vst.msk [vmem:[%s620] sm:$0x1] %vm3761, %v3751
          %3763 = vst.msk [vmem:[%s620 + $0x1] sm:$0x1] %vm3761, %v3758
        $region88: #{gt_forward.1} parent=79 // pred_fallthru
          _
        %s3764 = sand.u32 %s409, 1
        %s3765 = scalar_lea.sflag [#allocation4], %s3764
        %s3766 = sand.u32 %s409, 1
        %s3767 = smul.addr %s3766, 2
        %s3768 = scalar_lea.vmem [#allocation3], %s3767
        // Predicated region
        $region89: #{gt_forward.1} parent=79 // pred_check
          %p3769 = pneg %p419
        $region90: #{gt_forward.1} parent=79 // pred_check_branch
          %3771 = sbr.rel (%p3769) target = $region92
        $region91: #{gt_forward.1} parent=79 // pred_region
          %s3772 = smul.u32 2, %s33
          %s3774 = ssub.s32 32, 32
          %3775 = vsyncadd %s3765, %s3774
          %s3776 = smul.addr %s3772, 16
          %s3777 = scalar_lea.hbm %s15, %s3776
          %s3778 = sshll.u32 %s3768, 4
          %s3779 = int_to_ptr.vmem [resolvable:$true] %s3778
          %3784 = dma.vmem_to_hbm [thread:$0]  %s3779, 32, %s3777, %s3765, 16, 16, 1
        $region92: #{gt_forward.1} parent=79 // pred_fallthru
          _
      $region80: #{gt_forward.1} parent=5 // pred_fallthru
        _
      %p3785 = scmp.le.s32.totalorder 2, %s24
      // Predicated region
      $region93: #{gt_forward.1} parent=5 // pred_check
        %p3786 = pneg %p3785
      $region94: #{gt_forward.1} parent=5 // pred_check_branch
        %3788 = sbr.rel (%p3786) target = $region96
      $region95: #{gt_forward.1} parent=5 // pred_region
        %s3789 = ssub.s32 %s24, 2
        // Predicated region
        $region97: #{gt_forward.1} parent=95 // pred_check
          %p3790 = pneg %p425
        $region98: #{gt_forward.1} parent=95 // pred_check_branch
          %3792 = sbr.rel (%p3790) target = $region100
        $region99: #{gt_forward.1} parent=95 // pred_region
          %s3793 = sand.u32 %s410, 1
          %s3794 = scalar_lea.sflag [#allocation4], %s3793
          %s3795 = sand.u32 %s410, 1
          %s3796 = smul.addr %s3795, 2
          %s3797 = scalar_lea.vmem [#allocation3], %s3796
          %3798 = dma.done %s3794, 32
        $region100: #{gt_forward.1} parent=95 // pred_fallthru
          _
      $region96: #{gt_forward.1} parent=5 // pred_fallthru
        _
    $region6: #{gt_forward.1} parent=1 // loop_footer
      %s28 = sadd.s32 1, %s24
    $region7: #{gt_forward.1} parent=1 // loop_footer_branch
      %23 = sbr.rel target = $region3
    $region8: #{gt_forward.1} parent=1 // loop_exit
      _
    %3799 = vsyncpa [#allocation4], 1
    %s3800 = scalar_lea.sflag [#allocation4], 1
    %3801 = vsyncpa %s3800, 1

</llo_original>
